<compile_context>
chip_gen: v6e
topology: v6e:2x2x1
jax: 0.10.0
libtpu: 0.0.40
codegen_flags: <defaults>
</compile_context>

<pallas_src>
import jax
import jax.numpy as jnp
from jax import lax
from jax.experimental import pallas as pl
from jax.experimental.pallas import tpu as pltpu


_BATCH_TILE = 128   # images per grid step -> fills the 128-wide lane axis
_K = 3              # conv kernel size


# ---------------------------------------------------------------------------
# Fused forward kernel
# ---------------------------------------------------------------------------
def _fused_forward_kernel(
        x_ref,                    # (CIN, H, W, BT)        VMEM input tile
        c1w_ref, c1b_ref,         # (C1, CIN*9), (C1,)     SMEM conv1 params
        c2w_ref, c2b_ref,         # (C2, C1*9), (C2,)      SMEM conv2 params
        f1w_ref, f1b_ref,         # (PH2, F1, C2*PW2), (F1, 1)  VMEM
        f2w_ref, f2b_ref,         # (F2, F1), (F2, 1)      VMEM
        f3w_ref, f3b_ref,         # (NCLS, F2), (NCLS, 1)  VMEM
        out_ref,                  # (NCLS, BT)             lane-dense logits
        p1_ref,                   # (C1, PH1, PW1, BT)     pool1 output scratch
        flat_ref,                 # (PH2, C2*PW2, BT)      flattened pool2 scratch
        tmp_ref,                  # (C2, PW2, BT)          per-row staging scratch
        rowbuf_ref,               # (ROWBUF, BT)           W-pool staging scratch
):
    f32 = jnp.float32
    cin, _, ww, bt = x_ref.shape
    c1, ph1, pw1, _ = p1_ref.shape
    c2, pw2, _ = tmp_ref.shape
    ph2 = flat_ref.shape[0]
    ow1 = ww - (_K - 1)       # conv1 output width  (30)
    ow2 = pw1 - (_K - 1)      # conv2 output width  (13)

    # ---------------- conv1 + bias + ReLU + 2x2/2 maxpool (fused) ------------
    def conv1_pooled_row(pr, carry):
        h0 = 2 * pr
        # The four input rows feeding conv rows 2*pr and 2*pr+1, pre-shifted by
        # the three kernel-column offsets; reused by every output channel.
        xs = []
        for ci in range(cin):
            rows = []
            for r in range(_K + 1):
                row = x_ref[ci, pl.ds(h0 + r, 1), :, :][0]          # (W, BT)
                rows.append([row[j:j + ow1, :] for j in range(_K)])
            xs.append(rows)

        def one_channel(co, inner):
            acc0 = jnp.zeros((ow1, bt), f32)
            acc1 = jnp.zeros((ow1, bt), f32)
            for ci in range(cin):
                for i in range(_K):
                    for j in range(_K):
                        w = c1w_ref[co, (ci * _K + i) * _K + j]     # SMEM scalar
                        acc0 = acc0 + xs[ci][i][j] * w
                        acc1 = acc1 + xs[ci][i + 1][j] * w
            rowbuf_ref[pl.ds(0, ow1), :] = jnp.maximum(acc0, acc1)  # H-max
            wmax = jnp.maximum(rowbuf_ref[pl.ds(0, pw1, stride=2), :],
                               rowbuf_ref[pl.ds(1, pw1, stride=2), :])
            p1_ref[pl.ds(co, 1), pl.ds(pr, 1), :, :] = jnp.maximum(
                wmax + c1b_ref[co], 0.0)[None, None]
            return inner

        lax.fori_loop(0, c1, one_channel, 0)
        return carry

    lax.fori_loop(0, ph1, conv1_pooled_row, 0)

    # ---------------- conv2 + bias + ReLU + 2x2/2 maxpool + flatten ----------
    def conv2_pooled_row(pr, carry):
        h0 = 2 * pr
        ps = []
        for ci in range(c1):
            rows = []
            for r in range(_K + 1):
                row = p1_ref[ci, pl.ds(h0 + r, 1), :, :][0]         # (PW1, BT)
                rows.append([row[j:j + ow2, :] for j in range(_K)])
            ps.append(rows)

        def one_channel(co, inner):
            acc0 = jnp.zeros((ow2, bt), f32)
            acc1 = jnp.zeros((ow2, bt), f32)
            for ci in range(c1):
                for i in range(_K):
                    for j in range(_K):
                        w = c2w_ref[co, (ci * _K + i) * _K + j]
                        acc0 = acc0 + ps[ci][i][j] * w
                        acc1 = acc1 + ps[ci][i + 1][j] * w
            rowbuf_ref[pl.ds(0, ow2), :] = jnp.maximum(acc0, acc1)
            wmax = jnp.maximum(rowbuf_ref[pl.ds(0, pw2, stride=2), :],
                               rowbuf_ref[pl.ds(1, pw2, stride=2), :])
            tmp_ref[pl.ds(co, 1), :, :] = jnp.maximum(
                wmax + c2b_ref[co], 0.0)[None]
            return inner

        lax.fori_loop(0, c2, one_channel, 0)

        # Scatter this pooled row into the flattened activation buffer.  Only
        # the leading (untiled) dim is dynamic; sublane offsets are static.
        for co in range(c2):
            flat_ref[pl.ds(pr, 1), pl.ds(co * pw2, pw2), :] = tmp_ref[co][None]
        return carry

    lax.fori_loop(0, ph2, conv2_pooled_row, 0)

    # ---------------- MLP head on the MXU (batch = 128-wide N dim) -----------
    f1 = f1b_ref.shape[0]
    h1 = jnp.zeros((f1, bt), f32)
    for p in range(ph2):      # fc1: K=576 contraction, issued as PH2 K=96 dots
        h1 = h1 + jnp.dot(f1w_ref[p], flat_ref[p],
                          preferred_element_type=f32)
    h1 = jnp.maximum(h1 + f1b_ref[...], 0.0)
    h2 = jnp.maximum(
        jnp.dot(f2w_ref[...], h1, preferred_element_type=f32) + f2b_ref[...],
        0.0)
    out_ref[...] = (
        jnp.dot(f3w_ref[...], h2, preferred_element_type=f32) + f3b_ref[...])


# ---------------------------------------------------------------------------
# Wrapper
# ---------------------------------------------------------------------------
def image_classification_forward(x_nchw, params, *, batch_tile=_BATCH_TILE):
    """Forward pass of the PyTorch module.  x_nchw: (N, 3, 32, 32) float32."""
    n, cin, h_dim, w_dim = x_nchw.shape
    bt = batch_tile
    n_pad = ((n + bt - 1) // bt) * bt

    # NCHW -> CHWB so the batch tile fills the 128-wide lane axis in-kernel.
    x = jnp.transpose(x_nchw.astype(jnp.float32), (1, 2, 3, 0))
    if n_pad != n:
        x = jnp.pad(x, ((0, 0), (0, 0), (0, 0), (0, n_pad - n)))

    c1 = params["conv1_b"].shape[0]
    c2 = params["conv2_b"].shape[0]
    f1 = params["fc1_b"].shape[0]
    f2 = params["fc2_b"].shape[0]
    ncls = params["fc3_b"].shape[0]

    oh1, ow1 = h_dim - _K + 1, w_dim - _K + 1
    ph1, pw1 = oh1 // 2, ow1 // 2
    oh2, ow2 = ph1 - _K + 1, pw1 - _K + 1
    ph2, pw2 = oh2 // 2, ow2 // 2
    assert params["fc1_w"].shape == (ph2, f1, c2 * pw2), params["fc1_w"].shape

    rowbuf_rows = ((max(ow1, ow2) + 7) // 8) * 8
    smem = pltpu.MemorySpace.SMEM

    out = pl.pallas_call(
        _fused_forward_kernel,
        out_shape=jax.ShapeDtypeStruct((ncls, n_pad), jnp.float32),
        grid_spec=pltpu.PrefetchScalarGridSpec(
            num_scalar_prefetch=0,
            grid=(n_pad // bt,),
            in_specs=[
                pl.BlockSpec((cin, h_dim, w_dim, bt), lambda b: (0, 0, 0, b)),
                pl.BlockSpec(memory_space=smem),              # conv1 weights
                pl.BlockSpec(memory_space=smem),              # conv1 bias
                pl.BlockSpec(memory_space=smem),              # conv2 weights
                pl.BlockSpec(memory_space=smem),              # conv2 bias
                pl.BlockSpec((ph2, f1, c2 * pw2), lambda b: (0, 0, 0)),
                pl.BlockSpec((f1, 1), lambda b: (0, 0)),
                pl.BlockSpec((f2, f1), lambda b: (0, 0)),
                pl.BlockSpec((f2, 1), lambda b: (0, 0)),
                pl.BlockSpec((ncls, f2), lambda b: (0, 0)),
                pl.BlockSpec((ncls, 1), lambda b: (0, 0)),
            ],
            out_specs=pl.BlockSpec((ncls, bt), lambda b: (0, b)),
            scratch_shapes=[
                pltpu.VMEM((c1, ph1, pw1, bt), jnp.float32),   # pool1 output
                pltpu.VMEM((ph2, c2 * pw2, bt), jnp.float32),  # flattened pool2
                pltpu.VMEM((c2, pw2, bt), jnp.float32),        # per-row staging
                pltpu.VMEM((rowbuf_rows, bt), jnp.float32),    # W-pool staging
            ],
        ),
        compiler_params=pltpu.CompilerParams(
            dimension_semantics=("parallel",),    # shard batch tiles across TCs
        ),
    )(x,
      params["conv1_w"], params["conv1_b"],
      params["conv2_w"], params["conv2_b"],
      params["fc1_w"], params["fc1_b"],
      params["fc2_w"], params["fc2_b"],
      params["fc3_w"], params["fc3_b"])

    return out[:, :n].T


# ---------------------------------------------------------------------------
# Parameters: torch-style init + one-time packing into kernel layouts
# ---------------------------------------------------------------------------
def init_raw_params(key):
    """Torch-equivalent shapes, U(-1/sqrt(fan_in), 1/sqrt(fan_in)) init."""
    def uniform(k, shape, fan_in):
        bound = 1.0 / float(fan_in) ** 0.5
        return jax.random.uniform(k, shape, jnp.float32, -bound, bound)

    ks = jax.random.split(key, 10)
    return {
        "conv1_w": uniform(ks[0], (6, 3, 3, 3), 3 * 9),    # (Cout, Cin, KH, KW)
        "conv1_b": uniform(ks[1], (6,), 3 * 9),
        "conv2_w": uniform(ks[2], (16, 6, 3, 3), 6 * 9),
        "conv2_b": uniform(ks[3], (16,), 6 * 9),
        "fc1_w": uniform(ks[4], (120, 576), 576),          # torch layout (out, in)
        "fc1_b": uniform(ks[5], (120,), 576),
        "fc2_w": uniform(ks[6], (84, 120), 120),
        "fc2_b": uniform(ks[7], (84,), 120),
        "fc3_w": uniform(ks[8], (10, 84), 84),
        "fc3_b": uniform(ks[9], (10,), 84),
    }


def pack_params(raw, *, pooled_hw=6):
    """One-time (offline) repack of the weights into the fused-kernel layouts."""
    c2 = raw["conv2_w"].shape[0]
    f1, k1 = raw["fc1_w"].shape
    ph2 = pw2 = pooled_hw
    assert k1 == c2 * ph2 * pw2
    # fc1: fold torch's NCHW flatten (k = c*PH2*PW2 + p*PW2 + w) into a
    # per-pooled-row (PH2, F1, C2*PW2) weight so the kernel never reshapes or
    # transposes the activations.
    f1w = (raw["fc1_w"].reshape(f1, c2, ph2, pw2)
           .transpose(2, 0, 1, 3)
           .reshape(ph2, f1, c2 * pw2))
    return {
        # conv: (Cout, Cin, KH, KW) -> (Cout, Cin*9), tap index = ci*9 + i*3 + j
        "conv1_w": raw["conv1_w"].reshape(raw["conv1_w"].shape[0], -1),
        "conv1_b": raw["conv1_b"],
        "conv2_w": raw["conv2_w"].reshape(c2, -1),
        "conv2_b": raw["conv2_b"],
        "fc1_w": f1w, "fc1_b": raw["fc1_b"].reshape(-1, 1),
        "fc2_w": raw["fc2_w"], "fc2_b": raw["fc2_b"].reshape(-1, 1),
        "fc3_w": raw["fc3_w"], "fc3_b": raw["fc3_b"].reshape(-1, 1),
    }


# ---------------------------------------------------------------------------
# Pure-JAX reference (correctness check against the PyTorch semantics)
# ---------------------------------------------------------------------------
def reference_forward(x_nchw, raw):
    prec = jax.lax.Precision.HIGHEST
    y = lax.conv_general_dilated(
        x_nchw, raw["conv1_w"], (1, 1), "VALID",
        dimension_numbers=("NCHW", "OIHW", "NCHW"), precision=prec)
    y = jax.nn.relu(y + raw["conv1_b"][None, :, None, None])
    y = lax.reduce_window(y, -jnp.inf, lax.max, (1, 1, 2, 2), (1, 1, 2, 2), "VALID")
    y = lax.conv_general_dilated(
        y, raw["conv2_w"], (1, 1), "VALID",
        dimension_numbers=("NCHW", "OIHW", "NCHW"), precision=prec)
    y = jax.nn.relu(y + raw["conv2_b"][None, :, None, None])
    y = lax.reduce_window(y, -jnp.inf, lax.max, (1, 1, 2, 2), (1, 1, 2, 2), "VALID")
    flat = y.reshape(y.shape[0], -1)                   # torch NCHW flatten order
    h = jax.nn.relu(flat @ raw["fc1_w"].T + raw["fc1_b"])
    h = jax.nn.relu(h @ raw["fc2_w"].T + raw["fc2_b"])
    return h @ raw["fc3_w"].T + raw["fc3_b"]


if __name__ == "__main__":
    key = jax.random.PRNGKey(0)
    k_x, k_p = jax.random.split(key)

    # 32x32 RGB input is implied by linear1.in_features == 576 (= 16*6*6); batch=2.
    x = jax.random.normal(k_x, (2, 3, 32, 32), dtype=jnp.float32)
    raw = init_raw_params(k_p)
    params = pack_params(raw)            # one-time packing, outside the forward

    fwd = jax.jit(image_classification_forward)
    logits = fwd(x, params)
    jax.block_until_ready(logits)

    assert logits.shape == (2, 10), logits.shape
    assert logits.dtype == jnp.float32
    assert bool(jnp.all(jnp.isfinite(logits)))

    ref = reference_forward(x, raw)
    err = float(jnp.max(jnp.abs(logits - ref)))
    assert err < 2e-2, f"mismatch vs reference: max abs err = {err}"

    print("KERNEL_OK")
</pallas_src>

<mosaic_0001>
module attributes {stable_mosaic.version = 11 : i64} {
  func.func @_fused_forward_kernel(%arg0: i32, %arg1: memref<3x32x32x128xf32, #tpu.memory_space<vmem>>, %arg2: memref<6x27xf32, #tpu.memory_space<smem>>, %arg3: memref<6xf32, #tpu.memory_space<smem>>, %arg4: memref<16x54xf32, #tpu.memory_space<smem>>, %arg5: memref<16xf32, #tpu.memory_space<smem>>, %arg6: memref<6x120x96xf32, #tpu.memory_space<vmem>>, %arg7: memref<120x1xf32, #tpu.memory_space<vmem>>, %arg8: memref<84x120xf32, #tpu.memory_space<vmem>>, %arg9: memref<84x1xf32, #tpu.memory_space<vmem>>, %arg10: memref<10x84xf32, #tpu.memory_space<vmem>>, %arg11: memref<10x1xf32, #tpu.memory_space<vmem>>, %arg12: memref<10x128xf32, #tpu.memory_space<vmem>>, %arg13: memref<6x15x15x128xf32, #tpu.memory_space<vmem>>, %arg14: memref<6x96x128xf32, #tpu.memory_space<vmem>>, %arg15: memref<16x6x128xf32, #tpu.memory_space<vmem>>, %arg16: memref<32x128xf32, #tpu.memory_space<vmem>>) attributes {dimension_semantics = [#tpu.dimension_semantics<parallel>], iteration_bounds = array<i64: 1>, scalar_prefetch = 0 : i64, scratch_operands = 4 : i64, tpu.core_type = #tpu.core_type<tc>, window_params = [{transform_indices = @transform_0, window_bounds = array<i64: 3, 32, 32, 128>}, {transform_indices = @transform_1, window_bounds = array<i64: 6, 27>}, {transform_indices = @transform_2, window_bounds = array<i64: 6>}, {transform_indices = @transform_3, window_bounds = array<i64: 16, 54>}, {transform_indices = @transform_4, window_bounds = array<i64: 16>}, {pipeline_mode = #tpu.pipeline_mode<synchronous>, transform_indices = @transform_5, window_bounds = array<i64: 6, 120, 96>}, {pipeline_mode = #tpu.pipeline_mode<synchronous>, transform_indices = @transform_6, window_bounds = array<i64: 120, 1>}, {pipeline_mode = #tpu.pipeline_mode<synchronous>, transform_indices = @transform_7, window_bounds = array<i64: 84, 120>}, {pipeline_mode = #tpu.pipeline_mode<synchronous>, transform_indices = @transform_8, window_bounds = array<i64: 84, 1>}, {pipeline_mode = #tpu.pipeline_mode<synchronous>, transform_indices = @transform_9, window_bounds = array<i64: 10, 84>}, {pipeline_mode = #tpu.pipeline_mode<synchronous>, transform_indices = @transform_10, window_bounds = array<i64: 10, 1>}, {transform_indices = @transform_11, window_bounds = array<i64: 10, 128>}]} {
    %c0_i32 = arith.constant 0 : i32
    %c15_i32 = arith.constant 15 : i32
    %0 = arith.addi %c0_i32, %c15_i32 : i32
    %c1_i32 = arith.constant 1 : i32
    scf.for %arg17 = %c0_i32 to %0 step %c1_i32  : i32 {
      %c2_i32 = arith.constant 2 : i32
      %57 = arith.muli %c2_i32, %arg17 : i32
      %c0_i32_56 = arith.constant 0 : i32
      %58 = arith.addi %57, %c0_i32_56 : i32
      %c0_57 = arith.constant 0 : index
      %59 = arith.index_cast %58 : i32 to index
      %c0_58 = arith.constant 0 : index
      %c0_59 = arith.constant 0 : index
      %60 = vector.load %arg1[%c0_57, %59, %c0_58, %c0_59] : memref<3x32x32x128xf32, #tpu.memory_space<vmem>>, vector<1x1x32x128xf32>
      %61 = vector.shape_cast %60 : vector<1x1x32x128xf32> to vector<1x32x128xf32>
      %62 = vector.shape_cast %61 : vector<1x32x128xf32> to vector<32x128xf32>
      %63 = vector.extract_strided_slice %62 {offsets = [0, 0], sizes = [30, 128], strides = [1, 1]} : vector<32x128xf32> to vector<30x128xf32>
      %64 = vector.extract_strided_slice %62 {offsets = [1, 0], sizes = [30, 128], strides = [1, 1]} : vector<32x128xf32> to vector<30x128xf32>
      %65 = vector.extract_strided_slice %62 {offsets = [2, 0], sizes = [30, 128], strides = [1, 1]} : vector<32x128xf32> to vector<30x128xf32>
      %c1_i32_60 = arith.constant 1 : i32
      %66 = arith.addi %57, %c1_i32_60 : i32
      %c0_61 = arith.constant 0 : index
      %67 = arith.index_cast %66 : i32 to index
      %c0_62 = arith.constant 0 : index
      %c0_63 = arith.constant 0 : index
      %68 = vector.load %arg1[%c0_61, %67, %c0_62, %c0_63] : memref<3x32x32x128xf32, #tpu.memory_space<vmem>>, vector<1x1x32x128xf32>
      %69 = vector.shape_cast %68 : vector<1x1x32x128xf32> to vector<1x32x128xf32>
      %70 = vector.shape_cast %69 : vector<1x32x128xf32> to vector<32x128xf32>
      %71 = vector.extract_strided_slice %70 {offsets = [0, 0], sizes = [30, 128], strides = [1, 1]} : vector<32x128xf32> to vector<30x128xf32>
      %72 = vector.extract_strided_slice %70 {offsets = [1, 0], sizes = [30, 128], strides = [1, 1]} : vector<32x128xf32> to vector<30x128xf32>
      %73 = vector.extract_strided_slice %70 {offsets = [2, 0], sizes = [30, 128], strides = [1, 1]} : vector<32x128xf32> to vector<30x128xf32>
      %c2_i32_64 = arith.constant 2 : i32
      %74 = arith.addi %57, %c2_i32_64 : i32
      %c0_65 = arith.constant 0 : index
      %75 = arith.index_cast %74 : i32 to index
      %c0_66 = arith.constant 0 : index
      %c0_67 = arith.constant 0 : index
      %76 = vector.load %arg1[%c0_65, %75, %c0_66, %c0_67] : memref<3x32x32x128xf32, #tpu.memory_space<vmem>>, vector<1x1x32x128xf32>
      %77 = vector.shape_cast %76 : vector<1x1x32x128xf32> to vector<1x32x128xf32>
      %78 = vector.shape_cast %77 : vector<1x32x128xf32> to vector<32x128xf32>
      %79 = vector.extract_strided_slice %78 {offsets = [0, 0], sizes = [30, 128], strides = [1, 1]} : vector<32x128xf32> to vector<30x128xf32>
      %80 = vector.extract_strided_slice %78 {offsets = [1, 0], sizes = [30, 128], strides = [1, 1]} : vector<32x128xf32> to vector<30x128xf32>
      %81 = vector.extract_strided_slice %78 {offsets = [2, 0], sizes = [30, 128], strides = [1, 1]} : vector<32x128xf32> to vector<30x128xf32>
      %c3_i32 = arith.constant 3 : i32
      %82 = arith.addi %57, %c3_i32 : i32
      %c0_68 = arith.constant 0 : index
      %83 = arith.index_cast %82 : i32 to index
      %c0_69 = arith.constant 0 : index
      %c0_70 = arith.constant 0 : index
      %84 = vector.load %arg1[%c0_68, %83, %c0_69, %c0_70] : memref<3x32x32x128xf32, #tpu.memory_space<vmem>>, vector<1x1x32x128xf32>
      %85 = vector.shape_cast %84 : vector<1x1x32x128xf32> to vector<1x32x128xf32>
      %86 = vector.shape_cast %85 : vector<1x32x128xf32> to vector<32x128xf32>
      %87 = vector.extract_strided_slice %86 {offsets = [0, 0], sizes = [30, 128], strides = [1, 1]} : vector<32x128xf32> to vector<30x128xf32>
      %88 = vector.extract_strided_slice %86 {offsets = [1, 0], sizes = [30, 128], strides = [1, 1]} : vector<32x128xf32> to vector<30x128xf32>
      %89 = vector.extract_strided_slice %86 {offsets = [2, 0], sizes = [30, 128], strides = [1, 1]} : vector<32x128xf32> to vector<30x128xf32>
      %c0_i32_71 = arith.constant 0 : i32
      %90 = arith.addi %57, %c0_i32_71 : i32
      %c1_72 = arith.constant 1 : index
      %91 = arith.index_cast %90 : i32 to index
      %c0_73 = arith.constant 0 : index
      %c0_74 = arith.constant 0 : index
      %92 = vector.load %arg1[%c1_72, %91, %c0_73, %c0_74] : memref<3x32x32x128xf32, #tpu.memory_space<vmem>>, vector<1x1x32x128xf32>
      %93 = vector.shape_cast %92 : vector<1x1x32x128xf32> to vector<1x32x128xf32>
      %94 = vector.shape_cast %93 : vector<1x32x128xf32> to vector<32x128xf32>
      %95 = vector.extract_strided_slice %94 {offsets = [0, 0], sizes = [30, 128], strides = [1, 1]} : vector<32x128xf32> to vector<30x128xf32>
      %96 = vector.extract_strided_slice %94 {offsets = [1, 0], sizes = [30, 128], strides = [1, 1]} : vector<32x128xf32> to vector<30x128xf32>
      %97 = vector.extract_strided_slice %94 {offsets = [2, 0], sizes = [30, 128], strides = [1, 1]} : vector<32x128xf32> to vector<30x128xf32>
      %c1_i32_75 = arith.constant 1 : i32
      %98 = arith.addi %57, %c1_i32_75 : i32
      %c1_76 = arith.constant 1 : index
      %99 = arith.index_cast %98 : i32 to index
      %c0_77 = arith.constant 0 : index
      %c0_78 = arith.constant 0 : index
      %100 = vector.load %arg1[%c1_76, %99, %c0_77, %c0_78] : memref<3x32x32x128xf32, #tpu.memory_space<vmem>>, vector<1x1x32x128xf32>
      %101 = vector.shape_cast %100 : vector<1x1x32x128xf32> to vector<1x32x128xf32>
      %102 = vector.shape_cast %101 : vector<1x32x128xf32> to vector<32x128xf32>
      %103 = vector.extract_strided_slice %102 {offsets = [0, 0], sizes = [30, 128], strides = [1, 1]} : vector<32x128xf32> to vector<30x128xf32>
      %104 = vector.extract_strided_slice %102 {offsets = [1, 0], sizes = [30, 128], strides = [1, 1]} : vector<32x128xf32> to vector<30x128xf32>
      %105 = vector.extract_strided_slice %102 {offsets = [2, 0], sizes = [30, 128], strides = [1, 1]} : vector<32x128xf32> to vector<30x128xf32>
      %c2_i32_79 = arith.constant 2 : i32
      %106 = arith.addi %57, %c2_i32_79 : i32
      %c1_80 = arith.constant 1 : index
      %107 = arith.index_cast %106 : i32 to index
      %c0_81 = arith.constant 0 : index
      %c0_82 = arith.constant 0 : index
      %108 = vector.load %arg1[%c1_80, %107, %c0_81, %c0_82] : memref<3x32x32x128xf32, #tpu.memory_space<vmem>>, vector<1x1x32x128xf32>
      %109 = vector.shape_cast %108 : vector<1x1x32x128xf32> to vector<1x32x128xf32>
      %110 = vector.shape_cast %109 : vector<1x32x128xf32> to vector<32x128xf32>
      %111 = vector.extract_strided_slice %110 {offsets = [0, 0], sizes = [30, 128], strides = [1, 1]} : vector<32x128xf32> to vector<30x128xf32>
      %112 = vector.extract_strided_slice %110 {offsets = [1, 0], sizes = [30, 128], strides = [1, 1]} : vector<32x128xf32> to vector<30x128xf32>
      %113 = vector.extract_strided_slice %110 {offsets = [2, 0], sizes = [30, 128], strides = [1, 1]} : vector<32x128xf32> to vector<30x128xf32>
      %c3_i32_83 = arith.constant 3 : i32
      %114 = arith.addi %57, %c3_i32_83 : i32
      %c1_84 = arith.constant 1 : index
      %115 = arith.index_cast %114 : i32 to index
      %c0_85 = arith.constant 0 : index
      %c0_86 = arith.constant 0 : index
      %116 = vector.load %arg1[%c1_84, %115, %c0_85, %c0_86] : memref<3x32x32x128xf32, #tpu.memory_space<vmem>>, vector<1x1x32x128xf32>
      %117 = vector.shape_cast %116 : vector<1x1x32x128xf32> to vector<1x32x128xf32>
      %118 = vector.shape_cast %117 : vector<1x32x128xf32> to vector<32x128xf32>
      %119 = vector.extract_strided_slice %118 {offsets = [0, 0], sizes = [30, 128], strides = [1, 1]} : vector<32x128xf32> to vector<30x128xf32>
      %120 = vector.extract_strided_slice %118 {offsets = [1, 0], sizes = [30, 128], strides = [1, 1]} : vector<32x128xf32> to vector<30x128xf32>
      %121 = vector.extract_strided_slice %118 {offsets = [2, 0], sizes = [30, 128], strides = [1, 1]} : vector<32x128xf32> to vector<30x128xf32>
      %c0_i32_87 = arith.constant 0 : i32
      %122 = arith.addi %57, %c0_i32_87 : i32
      %c2_88 = arith.constant 2 : index
      %123 = arith.index_cast %122 : i32 to index
      %c0_89 = arith.constant 0 : index
      %c0_90 = arith.constant 0 : index
      %124 = vector.load %arg1[%c2_88, %123, %c0_89, %c0_90] : memref<3x32x32x128xf32, #tpu.memory_space<vmem>>, vector<1x1x32x128xf32>
      %125 = vector.shape_cast %124 : vector<1x1x32x128xf32> to vector<1x32x128xf32>
      %126 = vector.shape_cast %125 : vector<1x32x128xf32> to vector<32x128xf32>
      %127 = vector.extract_strided_slice %126 {offsets = [0, 0], sizes = [30, 128], strides = [1, 1]} : vector<32x128xf32> to vector<30x128xf32>
      %128 = vector.extract_strided_slice %126 {offsets = [1, 0], sizes = [30, 128], strides = [1, 1]} : vector<32x128xf32> to vector<30x128xf32>
      %129 = vector.extract_strided_slice %126 {offsets = [2, 0], sizes = [30, 128], strides = [1, 1]} : vector<32x128xf32> to vector<30x128xf32>
      %c1_i32_91 = arith.constant 1 : i32
      %130 = arith.addi %57, %c1_i32_91 : i32
      %c2_92 = arith.constant 2 : index
      %131 = arith.index_cast %130 : i32 to index
      %c0_93 = arith.constant 0 : index
      %c0_94 = arith.constant 0 : index
      %132 = vector.load %arg1[%c2_92, %131, %c0_93, %c0_94] : memref<3x32x32x128xf32, #tpu.memory_space<vmem>>, vector<1x1x32x128xf32>
      %133 = vector.shape_cast %132 : vector<1x1x32x128xf32> to vector<1x32x128xf32>
      %134 = vector.shape_cast %133 : vector<1x32x128xf32> to vector<32x128xf32>
      %135 = vector.extract_strided_slice %134 {offsets = [0, 0], sizes = [30, 128], strides = [1, 1]} : vector<32x128xf32> to vector<30x128xf32>
      %136 = vector.extract_strided_slice %134 {offsets = [1, 0], sizes = [30, 128], strides = [1, 1]} : vector<32x128xf32> to vector<30x128xf32>
      %137 = vector.extract_strided_slice %134 {offsets = [2, 0], sizes = [30, 128], strides = [1, 1]} : vector<32x128xf32> to vector<30x128xf32>
      %c2_i32_95 = arith.constant 2 : i32
      %138 = arith.addi %57, %c2_i32_95 : i32
      %c2_96 = arith.constant 2 : index
      %139 = arith.index_cast %138 : i32 to index
      %c0_97 = arith.constant 0 : index
      %c0_98 = arith.constant 0 : index
      %140 = vector.load %arg1[%c2_96, %139, %c0_97, %c0_98] : memref<3x32x32x128xf32, #tpu.memory_space<vmem>>, vector<1x1x32x128xf32>
      %141 = vector.shape_cast %140 : vector<1x1x32x128xf32> to vector<1x32x128xf32>
      %142 = vector.shape_cast %141 : vector<1x32x128xf32> to vector<32x128xf32>
      %143 = vector.extract_strided_slice %142 {offsets = [0, 0], sizes = [30, 128], strides = [1, 1]} : vector<32x128xf32> to vector<30x128xf32>
      %144 = vector.extract_strided_slice %142 {offsets = [1, 0], sizes = [30, 128], strides = [1, 1]} : vector<32x128xf32> to vector<30x128xf32>
      %145 = vector.extract_strided_slice %142 {offsets = [2, 0], sizes = [30, 128], strides = [1, 1]} : vector<32x128xf32> to vector<30x128xf32>
      %c3_i32_99 = arith.constant 3 : i32
      %146 = arith.addi %57, %c3_i32_99 : i32
      %c2_100 = arith.constant 2 : index
      %147 = arith.index_cast %146 : i32 to index
      %c0_101 = arith.constant 0 : index
      %c0_102 = arith.constant 0 : index
      %148 = vector.load %arg1[%c2_100, %147, %c0_101, %c0_102] : memref<3x32x32x128xf32, #tpu.memory_space<vmem>>, vector<1x1x32x128xf32>
      %149 = vector.shape_cast %148 : vector<1x1x32x128xf32> to vector<1x32x128xf32>
      %150 = vector.shape_cast %149 : vector<1x32x128xf32> to vector<32x128xf32>
      %151 = vector.extract_strided_slice %150 {offsets = [0, 0], sizes = [30, 128], strides = [1, 1]} : vector<32x128xf32> to vector<30x128xf32>
      %152 = vector.extract_strided_slice %150 {offsets = [1, 0], sizes = [30, 128], strides = [1, 1]} : vector<32x128xf32> to vector<30x128xf32>
      %153 = vector.extract_strided_slice %150 {offsets = [2, 0], sizes = [30, 128], strides = [1, 1]} : vector<32x128xf32> to vector<30x128xf32>
      %c0_i32_103 = arith.constant 0 : i32
      %c6_i32_104 = arith.constant 6 : i32
      %154 = arith.addi %c0_i32_103, %c6_i32_104 : i32
      %c1_i32_105 = arith.constant 1 : i32
      scf.for %arg18 = %c0_i32_103 to %154 step %c1_i32_105  : i32 {
        %cst_107 = arith.constant 0.000000e+00 : f32
        %155 = vector.broadcast %cst_107 : f32 to vector<30x128xf32>
        %cst_108 = arith.constant 0.000000e+00 : f32
        %156 = vector.broadcast %cst_108 : f32 to vector<30x128xf32>
        %157 = arith.index_cast %arg18 : i32 to index
        %c0_109 = arith.constant 0 : index
        %158 = memref.load %arg2[%157, %c0_109] : memref<6x27xf32, #tpu.memory_space<smem>>
        %159 = vector.broadcast %158 : f32 to vector<30x128xf32>
        %160 = arith.mulf %63, %159 : vector<30x128xf32>
        %161 = arith.addf %155, %160 : vector<30x128xf32>
        %162 = vector.broadcast %158 : f32 to vector<30x128xf32>
        %163 = arith.mulf %71, %162 : vector<30x128xf32>
        %164 = arith.addf %156, %163 : vector<30x128xf32>
        %165 = arith.index_cast %arg18 : i32 to index
        %c1_110 = arith.constant 1 : index
        %166 = memref.load %arg2[%165, %c1_110] : memref<6x27xf32, #tpu.memory_space<smem>>
        %167 = vector.broadcast %166 : f32 to vector<30x128xf32>
        %168 = arith.mulf %64, %167 : vector<30x128xf32>
        %169 = arith.addf %161, %168 : vector<30x128xf32>
        %170 = vector.broadcast %166 : f32 to vector<30x128xf32>
        %171 = arith.mulf %72, %170 : vector<30x128xf32>
        %172 = arith.addf %164, %171 : vector<30x128xf32>
        %173 = arith.index_cast %arg18 : i32 to index
        %c2_111 = arith.constant 2 : index
        %174 = memref.load %arg2[%173, %c2_111] : memref<6x27xf32, #tpu.memory_space<smem>>
        %175 = vector.broadcast %174 : f32 to vector<30x128xf32>
        %176 = arith.mulf %65, %175 : vector<30x128xf32>
        %177 = arith.addf %169, %176 : vector<30x128xf32>
        %178 = vector.broadcast %174 : f32 to vector<30x128xf32>
        %179 = arith.mulf %73, %178 : vector<30x128xf32>
        %180 = arith.addf %172, %179 : vector<30x128xf32>
        %181 = arith.index_cast %arg18 : i32 to index
        %c3_112 = arith.constant 3 : index
        %182 = memref.load %arg2[%181, %c3_112] : memref<6x27xf32, #tpu.memory_space<smem>>
        %183 = vector.broadcast %182 : f32 to vector<30x128xf32>
        %184 = arith.mulf %71, %183 : vector<30x128xf32>
        %185 = arith.addf %177, %184 : vector<30x128xf32>
        %186 = vector.broadcast %182 : f32 to vector<30x128xf32>
        %187 = arith.mulf %79, %186 : vector<30x128xf32>
        %188 = arith.addf %180, %187 : vector<30x128xf32>
        %189 = arith.index_cast %arg18 : i32 to index
        %c4_113 = arith.constant 4 : index
        %190 = memref.load %arg2[%189, %c4_113] : memref<6x27xf32, #tpu.memory_space<smem>>
        %191 = vector.broadcast %190 : f32 to vector<30x128xf32>
        %192 = arith.mulf %72, %191 : vector<30x128xf32>
        %193 = arith.addf %185, %192 : vector<30x128xf32>
        %194 = vector.broadcast %190 : f32 to vector<30x128xf32>
        %195 = arith.mulf %80, %194 : vector<30x128xf32>
        %196 = arith.addf %188, %195 : vector<30x128xf32>
        %197 = arith.index_cast %arg18 : i32 to index
        %c5_114 = arith.constant 5 : index
        %198 = memref.load %arg2[%197, %c5_114] : memref<6x27xf32, #tpu.memory_space<smem>>
        %199 = vector.broadcast %198 : f32 to vector<30x128xf32>
        %200 = arith.mulf %73, %199 : vector<30x128xf32>
        %201 = arith.addf %193, %200 : vector<30x128xf32>
        %202 = vector.broadcast %198 : f32 to vector<30x128xf32>
        %203 = arith.mulf %81, %202 : vector<30x128xf32>
        %204 = arith.addf %196, %203 : vector<30x128xf32>
        %205 = arith.index_cast %arg18 : i32 to index
        %c6 = arith.constant 6 : index
        %206 = memref.load %arg2[%205, %c6] : memref<6x27xf32, #tpu.memory_space<smem>>
        %207 = vector.broadcast %206 : f32 to vector<30x128xf32>
        %208 = arith.mulf %79, %207 : vector<30x128xf32>
        %209 = arith.addf %201, %208 : vector<30x128xf32>
        %210 = vector.broadcast %206 : f32 to vector<30x128xf32>
        %211 = arith.mulf %87, %210 : vector<30x128xf32>
        %212 = arith.addf %204, %211 : vector<30x128xf32>
        %213 = arith.index_cast %arg18 : i32 to index
        %c7 = arith.constant 7 : index
        %214 = memref.load %arg2[%213, %c7] : memref<6x27xf32, #tpu.memory_space<smem>>
        %215 = vector.broadcast %214 : f32 to vector<30x128xf32>
        %216 = arith.mulf %80, %215 : vector<30x128xf32>
        %217 = arith.addf %209, %216 : vector<30x128xf32>
        %218 = vector.broadcast %214 : f32 to vector<30x128xf32>
        %219 = arith.mulf %88, %218 : vector<30x128xf32>
        %220 = arith.addf %212, %219 : vector<30x128xf32>
        %221 = arith.index_cast %arg18 : i32 to index
        %c8 = arith.constant 8 : index
        %222 = memref.load %arg2[%221, %c8] : memref<6x27xf32, #tpu.memory_space<smem>>
        %223 = vector.broadcast %222 : f32 to vector<30x128xf32>
        %224 = arith.mulf %81, %223 : vector<30x128xf32>
        %225 = arith.addf %217, %224 : vector<30x128xf32>
        %226 = vector.broadcast %222 : f32 to vector<30x128xf32>
        %227 = arith.mulf %89, %226 : vector<30x128xf32>
        %228 = arith.addf %220, %227 : vector<30x128xf32>
        %229 = arith.index_cast %arg18 : i32 to index
        %c9 = arith.constant 9 : index
        %230 = memref.load %arg2[%229, %c9] : memref<6x27xf32, #tpu.memory_space<smem>>
        %231 = vector.broadcast %230 : f32 to vector<30x128xf32>
        %232 = arith.mulf %95, %231 : vector<30x128xf32>
        %233 = arith.addf %225, %232 : vector<30x128xf32>
        %234 = vector.broadcast %230 : f32 to vector<30x128xf32>
        %235 = arith.mulf %103, %234 : vector<30x128xf32>
        %236 = arith.addf %228, %235 : vector<30x128xf32>
        %237 = arith.index_cast %arg18 : i32 to index
        %c10 = arith.constant 10 : index
        %238 = memref.load %arg2[%237, %c10] : memref<6x27xf32, #tpu.memory_space<smem>>
        %239 = vector.broadcast %238 : f32 to vector<30x128xf32>
        %240 = arith.mulf %96, %239 : vector<30x128xf32>
        %241 = arith.addf %233, %240 : vector<30x128xf32>
        %242 = vector.broadcast %238 : f32 to vector<30x128xf32>
        %243 = arith.mulf %104, %242 : vector<30x128xf32>
        %244 = arith.addf %236, %243 : vector<30x128xf32>
        %245 = arith.index_cast %arg18 : i32 to index
        %c11 = arith.constant 11 : index
        %246 = memref.load %arg2[%245, %c11] : memref<6x27xf32, #tpu.memory_space<smem>>
        %247 = vector.broadcast %246 : f32 to vector<30x128xf32>
        %248 = arith.mulf %97, %247 : vector<30x128xf32>
        %249 = arith.addf %241, %248 : vector<30x128xf32>
        %250 = vector.broadcast %246 : f32 to vector<30x128xf32>
        %251 = arith.mulf %105, %250 : vector<30x128xf32>
        %252 = arith.addf %244, %251 : vector<30x128xf32>
        %253 = arith.index_cast %arg18 : i32 to index
        %c12 = arith.constant 12 : index
        %254 = memref.load %arg2[%253, %c12] : memref<6x27xf32, #tpu.memory_space<smem>>
        %255 = vector.broadcast %254 : f32 to vector<30x128xf32>
        %256 = arith.mulf %103, %255 : vector<30x128xf32>
        %257 = arith.addf %249, %256 : vector<30x128xf32>
        %258 = vector.broadcast %254 : f32 to vector<30x128xf32>
        %259 = arith.mulf %111, %258 : vector<30x128xf32>
        %260 = arith.addf %252, %259 : vector<30x128xf32>
        %261 = arith.index_cast %arg18 : i32 to index
        %c13 = arith.constant 13 : index
        %262 = memref.load %arg2[%261, %c13] : memref<6x27xf32, #tpu.memory_space<smem>>
        %263 = vector.broadcast %262 : f32 to vector<30x128xf32>
        %264 = arith.mulf %104, %263 : vector<30x128xf32>
        %265 = arith.addf %257, %264 : vector<30x128xf32>
        %266 = vector.broadcast %262 : f32 to vector<30x128xf32>
        %267 = arith.mulf %112, %266 : vector<30x128xf32>
        %268 = arith.addf %260, %267 : vector<30x128xf32>
        %269 = arith.index_cast %arg18 : i32 to index
        %c14 = arith.constant 14 : index
        %270 = memref.load %arg2[%269, %c14] : memref<6x27xf32, #tpu.memory_space<smem>>
        %271 = vector.broadcast %270 : f32 to vector<30x128xf32>
        %272 = arith.mulf %105, %271 : vector<30x128xf32>
        %273 = arith.addf %265, %272 : vector<30x128xf32>
        %274 = vector.broadcast %270 : f32 to vector<30x128xf32>
        %275 = arith.mulf %113, %274 : vector<30x128xf32>
        %276 = arith.addf %268, %275 : vector<30x128xf32>
        %277 = arith.index_cast %arg18 : i32 to index
        %c15 = arith.constant 15 : index
        %278 = memref.load %arg2[%277, %c15] : memref<6x27xf32, #tpu.memory_space<smem>>
        %279 = vector.broadcast %278 : f32 to vector<30x128xf32>
        %280 = arith.mulf %111, %279 : vector<30x128xf32>
        %281 = arith.addf %273, %280 : vector<30x128xf32>
        %282 = vector.broadcast %278 : f32 to vector<30x128xf32>
        %283 = arith.mulf %119, %282 : vector<30x128xf32>
        %284 = arith.addf %276, %283 : vector<30x128xf32>
        %285 = arith.index_cast %arg18 : i32 to index
        %c16 = arith.constant 16 : index
        %286 = memref.load %arg2[%285, %c16] : memref<6x27xf32, #tpu.memory_space<smem>>
        %287 = vector.broadcast %286 : f32 to vector<30x128xf32>
        %288 = arith.mulf %112, %287 : vector<30x128xf32>
        %289 = arith.addf %281, %288 : vector<30x128xf32>
        %290 = vector.broadcast %286 : f32 to vector<30x128xf32>
        %291 = arith.mulf %120, %290 : vector<30x128xf32>
        %292 = arith.addf %284, %291 : vector<30x128xf32>
        %293 = arith.index_cast %arg18 : i32 to index
        %c17 = arith.constant 17 : index
        %294 = memref.load %arg2[%293, %c17] : memref<6x27xf32, #tpu.memory_space<smem>>
        %295 = vector.broadcast %294 : f32 to vector<30x128xf32>
        %296 = arith.mulf %113, %295 : vector<30x128xf32>
        %297 = arith.addf %289, %296 : vector<30x128xf32>
        %298 = vector.broadcast %294 : f32 to vector<30x128xf32>
        %299 = arith.mulf %121, %298 : vector<30x128xf32>
        %300 = arith.addf %292, %299 : vector<30x128xf32>
        %301 = arith.index_cast %arg18 : i32 to index
        %c18 = arith.constant 18 : index
        %302 = memref.load %arg2[%301, %c18] : memref<6x27xf32, #tpu.memory_space<smem>>
        %303 = vector.broadcast %302 : f32 to vector<30x128xf32>
        %304 = arith.mulf %127, %303 : vector<30x128xf32>
        %305 = arith.addf %297, %304 : vector<30x128xf32>
        %306 = vector.broadcast %302 : f32 to vector<30x128xf32>
        %307 = arith.mulf %135, %306 : vector<30x128xf32>
        %308 = arith.addf %300, %307 : vector<30x128xf32>
        %309 = arith.index_cast %arg18 : i32 to index
        %c19 = arith.constant 19 : index
        %310 = memref.load %arg2[%309, %c19] : memref<6x27xf32, #tpu.memory_space<smem>>
        %311 = vector.broadcast %310 : f32 to vector<30x128xf32>
        %312 = arith.mulf %128, %311 : vector<30x128xf32>
        %313 = arith.addf %305, %312 : vector<30x128xf32>
        %314 = vector.broadcast %310 : f32 to vector<30x128xf32>
        %315 = arith.mulf %136, %314 : vector<30x128xf32>
        %316 = arith.addf %308, %315 : vector<30x128xf32>
        %317 = arith.index_cast %arg18 : i32 to index
        %c20 = arith.constant 20 : index
        %318 = memref.load %arg2[%317, %c20] : memref<6x27xf32, #tpu.memory_space<smem>>
        %319 = vector.broadcast %318 : f32 to vector<30x128xf32>
        %320 = arith.mulf %129, %319 : vector<30x128xf32>
        %321 = arith.addf %313, %320 : vector<30x128xf32>
        %322 = vector.broadcast %318 : f32 to vector<30x128xf32>
        %323 = arith.mulf %137, %322 : vector<30x128xf32>
        %324 = arith.addf %316, %323 : vector<30x128xf32>
        %325 = arith.index_cast %arg18 : i32 to index
        %c21 = arith.constant 21 : index
        %326 = memref.load %arg2[%325, %c21] : memref<6x27xf32, #tpu.memory_space<smem>>
        %327 = vector.broadcast %326 : f32 to vector<30x128xf32>
        %328 = arith.mulf %135, %327 : vector<30x128xf32>
        %329 = arith.addf %321, %328 : vector<30x128xf32>
        %330 = vector.broadcast %326 : f32 to vector<30x128xf32>
        %331 = arith.mulf %143, %330 : vector<30x128xf32>
        %332 = arith.addf %324, %331 : vector<30x128xf32>
        %333 = arith.index_cast %arg18 : i32 to index
        %c22 = arith.constant 22 : index
        %334 = memref.load %arg2[%333, %c22] : memref<6x27xf32, #tpu.memory_space<smem>>
        %335 = vector.broadcast %334 : f32 to vector<30x128xf32>
        %336 = arith.mulf %136, %335 : vector<30x128xf32>
        %337 = arith.addf %329, %336 : vector<30x128xf32>
        %338 = vector.broadcast %334 : f32 to vector<30x128xf32>
        %339 = arith.mulf %144, %338 : vector<30x128xf32>
        %340 = arith.addf %332, %339 : vector<30x128xf32>
        %341 = arith.index_cast %arg18 : i32 to index
        %c23 = arith.constant 23 : index
        %342 = memref.load %arg2[%341, %c23] : memref<6x27xf32, #tpu.memory_space<smem>>
        %343 = vector.broadcast %342 : f32 to vector<30x128xf32>
        %344 = arith.mulf %137, %343 : vector<30x128xf32>
        %345 = arith.addf %337, %344 : vector<30x128xf32>
        %346 = vector.broadcast %342 : f32 to vector<30x128xf32>
        %347 = arith.mulf %145, %346 : vector<30x128xf32>
        %348 = arith.addf %340, %347 : vector<30x128xf32>
        %349 = arith.index_cast %arg18 : i32 to index
        %c24 = arith.constant 24 : index
        %350 = memref.load %arg2[%349, %c24] : memref<6x27xf32, #tpu.memory_space<smem>>
        %351 = vector.broadcast %350 : f32 to vector<30x128xf32>
        %352 = arith.mulf %143, %351 : vector<30x128xf32>
        %353 = arith.addf %345, %352 : vector<30x128xf32>
        %354 = vector.broadcast %350 : f32 to vector<30x128xf32>
        %355 = arith.mulf %151, %354 : vector<30x128xf32>
        %356 = arith.addf %348, %355 : vector<30x128xf32>
        %357 = arith.index_cast %arg18 : i32 to index
        %c25 = arith.constant 25 : index
        %358 = memref.load %arg2[%357, %c25] : memref<6x27xf32, #tpu.memory_space<smem>>
        %359 = vector.broadcast %358 : f32 to vector<30x128xf32>
        %360 = arith.mulf %144, %359 : vector<30x128xf32>
        %361 = arith.addf %353, %360 : vector<30x128xf32>
        %362 = vector.broadcast %358 : f32 to vector<30x128xf32>
        %363 = arith.mulf %152, %362 : vector<30x128xf32>
        %364 = arith.addf %356, %363 : vector<30x128xf32>
        %365 = arith.index_cast %arg18 : i32 to index
        %c26 = arith.constant 26 : index
        %366 = memref.load %arg2[%365, %c26] : memref<6x27xf32, #tpu.memory_space<smem>>
        %367 = vector.broadcast %366 : f32 to vector<30x128xf32>
        %368 = arith.mulf %145, %367 : vector<30x128xf32>
        %369 = arith.addf %361, %368 : vector<30x128xf32>
        %370 = vector.broadcast %366 : f32 to vector<30x128xf32>
        %371 = arith.mulf %153, %370 : vector<30x128xf32>
        %372 = arith.addf %364, %371 : vector<30x128xf32>
        %373 = arith.maximumf %369, %372 : vector<30x128xf32>
        %c0_115 = arith.constant 0 : index
        %c0_116 = arith.constant 0 : index
        %374 = vector.load %arg16[%c0_115, %c0_116] : memref<32x128xf32, #tpu.memory_space<vmem>>, vector<30x128xf32>
        tpu.vector_store %arg16[%c0_115, %c0_116], %373 {strides = array<i32>} : memref<32x128xf32, #tpu.memory_space<vmem>>, vector<30x128xf32>,
        %c0_117 = arith.constant 0 : index
        %c0_118 = arith.constant 0 : index
        %375 = tpu.strided_load %arg16[%c0_117, %c0_118] {strides = array<i32: 2, 1>} : memref<32x128xf32, #tpu.memory_space<vmem>>, vector<15x128xf32>
        %c1_119 = arith.constant 1 : index
        %c0_120 = arith.constant 0 : index
        %376 = tpu.strided_load %arg16[%c1_119, %c0_120] {strides = array<i32: 2, 1>} : memref<32x128xf32, #tpu.memory_space<vmem>>, vector<15x128xf32>
        %377 = arith.maximumf %375, %376 : vector<15x128xf32>
        %378 = arith.index_cast %arg18 : i32 to index
        %379 = memref.load %arg3[%378] : memref<6xf32, #tpu.memory_space<smem>>
        %380 = vector.broadcast %379 : f32 to vector<15x128xf32>
        %381 = arith.addf %377, %380 : vector<15x128xf32>
        %cst_121 = arith.constant 0.000000e+00 : f32
        %382 = vector.broadcast %cst_121 : f32 to vector<15x128xf32>
        %383 = arith.maximumf %381, %382 : vector<15x128xf32>
        %384 = vector.shape_cast %383 : vector<15x128xf32> to vector<1x1x15x128xf32>
        %385 = arith.index_cast %arg18 : i32 to index
        %386 = arith.index_cast %arg17 : i32 to index
        %c0_122 = arith.constant 0 : index
        %c0_123 = arith.constant 0 : index
        %387 = vector.load %arg13[%385, %386, %c0_122, %c0_123] : memref<6x15x15x128xf32, #tpu.memory_space<vmem>>, vector<1x1x15x128xf32>
        tpu.vector_store %arg13[%385, %386, %c0_122, %c0_123], %384 {strides = array<i32>} : memref<6x15x15x128xf32, #tpu.memory_space<vmem>>, vector<1x1x15x128xf32>,
      }
      %c6_i32_106 = arith.constant 6 : i32
    }
    %c15_i32_0 = arith.constant 15 : i32
    %c0_i32_1 = arith.constant 0 : i32
    %c6_i32 = arith.constant 6 : i32
    %1 = arith.addi %c0_i32_1, %c6_i32 : i32
    %c1_i32_2 = arith.constant 1 : i32
    scf.for %arg17 = %c0_i32_1 to %1 step %c1_i32_2  : i32 {
      %c2_i32 = arith.constant 2 : i32
      %57 = arith.muli %c2_i32, %arg17 : i32
      %c0_i32_56 = arith.constant 0 : i32
      %58 = arith.addi %57, %c0_i32_56 : i32
      %c0_57 = arith.constant 0 : index
      %59 = arith.index_cast %58 : i32 to index
      %c0_58 = arith.constant 0 : index
      %c0_59 = arith.constant 0 : index
      %60 = vector.load %arg13[%c0_57, %59, %c0_58, %c0_59] : memref<6x15x15x128xf32, #tpu.memory_space<vmem>>, vector<1x1x15x128xf32>
      %61 = vector.shape_cast %60 : vector<1x1x15x128xf32> to vector<1x15x128xf32>
      %62 = vector.shape_cast %61 : vector<1x15x128xf32> to vector<15x128xf32>
      %63 = vector.extract_strided_slice %62 {offsets = [0, 0], sizes = [13, 128], strides = [1, 1]} : vector<15x128xf32> to vector<13x128xf32>
      %64 = vector.extract_strided_slice %62 {offsets = [1, 0], sizes = [13, 128], strides = [1, 1]} : vector<15x128xf32> to vector<13x128xf32>
      %65 = vector.extract_strided_slice %62 {offsets = [2, 0], sizes = [13, 128], strides = [1, 1]} : vector<15x128xf32> to vector<13x128xf32>
      %c1_i32_60 = arith.constant 1 : i32
      %66 = arith.addi %57, %c1_i32_60 : i32
      %c0_61 = arith.constant 0 : index
      %67 = arith.index_cast %66 : i32 to index
      %c0_62 = arith.constant 0 : index
      %c0_63 = arith.constant 0 : index
      %68 = vector.load %arg13[%c0_61, %67, %c0_62, %c0_63] : memref<6x15x15x128xf32, #tpu.memory_space<vmem>>, vector<1x1x15x128xf32>
      %69 = vector.shape_cast %68 : vector<1x1x15x128xf32> to vector<1x15x128xf32>
      %70 = vector.shape_cast %69 : vector<1x15x128xf32> to vector<15x128xf32>
      %71 = vector.extract_strided_slice %70 {offsets = [0, 0], sizes = [13, 128], strides = [1, 1]} : vector<15x128xf32> to vector<13x128xf32>
      %72 = vector.extract_strided_slice %70 {offsets = [1, 0], sizes = [13, 128], strides = [1, 1]} : vector<15x128xf32> to vector<13x128xf32>
      %73 = vector.extract_strided_slice %70 {offsets = [2, 0], sizes = [13, 128], strides = [1, 1]} : vector<15x128xf32> to vector<13x128xf32>
      %c2_i32_64 = arith.constant 2 : i32
      %74 = arith.addi %57, %c2_i32_64 : i32
      %c0_65 = arith.constant 0 : index
      %75 = arith.index_cast %74 : i32 to index
      %c0_66 = arith.constant 0 : index
      %c0_67 = arith.constant 0 : index
      %76 = vector.load %arg13[%c0_65, %75, %c0_66, %c0_67] : memref<6x15x15x128xf32, #tpu.memory_space<vmem>>, vector<1x1x15x128xf32>
      %77 = vector.shape_cast %76 : vector<1x1x15x128xf32> to vector<1x15x128xf32>
      %78 = vector.shape_cast %77 : vector<1x15x128xf32> to vector<15x128xf32>
      %79 = vector.extract_strided_slice %78 {offsets = [0, 0], sizes = [13, 128], strides = [1, 1]} : vector<15x128xf32> to vector<13x128xf32>
      %80 = vector.extract_strided_slice %78 {offsets = [1, 0], sizes = [13, 128], strides = [1, 1]} : vector<15x128xf32> to vector<13x128xf32>
      %81 = vector.extract_strided_slice %78 {offsets = [2, 0], sizes = [13, 128], strides = [1, 1]} : vector<15x128xf32> to vector<13x128xf32>
      %c3_i32 = arith.constant 3 : i32
      %82 = arith.addi %57, %c3_i32 : i32
      %c0_68 = arith.constant 0 : index
      %83 = arith.index_cast %82 : i32 to index
      %c0_69 = arith.constant 0 : index
      %c0_70 = arith.constant 0 : index
      %84 = vector.load %arg13[%c0_68, %83, %c0_69, %c0_70] : memref<6x15x15x128xf32, #tpu.memory_space<vmem>>, vector<1x1x15x128xf32>
      %85 = vector.shape_cast %84 : vector<1x1x15x128xf32> to vector<1x15x128xf32>
      %86 = vector.shape_cast %85 : vector<1x15x128xf32> to vector<15x128xf32>
      %87 = vector.extract_strided_slice %86 {offsets = [0, 0], sizes = [13, 128], strides = [1, 1]} : vector<15x128xf32> to vector<13x128xf32>
      %88 = vector.extract_strided_slice %86 {offsets = [1, 0], sizes = [13, 128], strides = [1, 1]} : vector<15x128xf32> to vector<13x128xf32>
      %89 = vector.extract_strided_slice %86 {offsets = [2, 0], sizes = [13, 128], strides = [1, 1]} : vector<15x128xf32> to vector<13x128xf32>
      %c0_i32_71 = arith.constant 0 : i32
      %90 = arith.addi %57, %c0_i32_71 : i32
      %c1_72 = arith.constant 1 : index
      %91 = arith.index_cast %90 : i32 to index
      %c0_73 = arith.constant 0 : index
      %c0_74 = arith.constant 0 : index
      %92 = vector.load %arg13[%c1_72, %91, %c0_73, %c0_74] : memref<6x15x15x128xf32, #tpu.memory_space<vmem>>, vector<1x1x15x128xf32>
      %93 = vector.shape_cast %92 : vector<1x1x15x128xf32> to vector<1x15x128xf32>
      %94 = vector.shape_cast %93 : vector<1x15x128xf32> to vector<15x128xf32>
      %95 = vector.extract_strided_slice %94 {offsets = [0, 0], sizes = [13, 128], strides = [1, 1]} : vector<15x128xf32> to vector<13x128xf32>
      %96 = vector.extract_strided_slice %94 {offsets = [1, 0], sizes = [13, 128], strides = [1, 1]} : vector<15x128xf32> to vector<13x128xf32>
      %97 = vector.extract_strided_slice %94 {offsets = [2, 0], sizes = [13, 128], strides = [1, 1]} : vector<15x128xf32> to vector<13x128xf32>
      %c1_i32_75 = arith.constant 1 : i32
      %98 = arith.addi %57, %c1_i32_75 : i32
      %c1_76 = arith.constant 1 : index
      %99 = arith.index_cast %98 : i32 to index
      %c0_77 = arith.constant 0 : index
      %c0_78 = arith.constant 0 : index
      %100 = vector.load %arg13[%c1_76, %99, %c0_77, %c0_78] : memref<6x15x15x128xf32, #tpu.memory_space<vmem>>, vector<1x1x15x128xf32>
      %101 = vector.shape_cast %100 : vector<1x1x15x128xf32> to vector<1x15x128xf32>
      %102 = vector.shape_cast %101 : vector<1x15x128xf32> to vector<15x128xf32>
      %103 = vector.extract_strided_slice %102 {offsets = [0, 0], sizes = [13, 128], strides = [1, 1]} : vector<15x128xf32> to vector<13x128xf32>
      %104 = vector.extract_strided_slice %102 {offsets = [1, 0], sizes = [13, 128], strides = [1, 1]} : vector<15x128xf32> to vector<13x128xf32>
      %105 = vector.extract_strided_slice %102 {offsets = [2, 0], sizes = [13, 128], strides = [1, 1]} : vector<15x128xf32> to vector<13x128xf32>
      %c2_i32_79 = arith.constant 2 : i32
      %106 = arith.addi %57, %c2_i32_79 : i32
      %c1_80 = arith.constant 1 : index
      %107 = arith.index_cast %106 : i32 to index
      %c0_81 = arith.constant 0 : index
      %c0_82 = arith.constant 0 : index
      %108 = vector.load %arg13[%c1_80, %107, %c0_81, %c0_82] : memref<6x15x15x128xf32, #tpu.memory_space<vmem>>, vector<1x1x15x128xf32>
      %109 = vector.shape_cast %108 : vector<1x1x15x128xf32> to vector<1x15x128xf32>
      %110 = vector.shape_cast %109 : vector<1x15x128xf32> to vector<15x128xf32>
      %111 = vector.extract_strided_slice %110 {offsets = [0, 0], sizes = [13, 128], strides = [1, 1]} : vector<15x128xf32> to vector<13x128xf32>
      %112 = vector.extract_strided_slice %110 {offsets = [1, 0], sizes = [13, 128], strides = [1, 1]} : vector<15x128xf32> to vector<13x128xf32>
      %113 = vector.extract_strided_slice %110 {offsets = [2, 0], sizes = [13, 128], strides = [1, 1]} : vector<15x128xf32> to vector<13x128xf32>
      %c3_i32_83 = arith.constant 3 : i32
      %114 = arith.addi %57, %c3_i32_83 : i32
      %c1_84 = arith.constant 1 : index
      %115 = arith.index_cast %114 : i32 to index
      %c0_85 = arith.constant 0 : index
      %c0_86 = arith.constant 0 : index
      %116 = vector.load %arg13[%c1_84, %115, %c0_85, %c0_86] : memref<6x15x15x128xf32, #tpu.memory_space<vmem>>, vector<1x1x15x128xf32>
      %117 = vector.shape_cast %116 : vector<1x1x15x128xf32> to vector<1x15x128xf32>
      %118 = vector.shape_cast %117 : vector<1x15x128xf32> to vector<15x128xf32>
      %119 = vector.extract_strided_slice %118 {offsets = [0, 0], sizes = [13, 128], strides = [1, 1]} : vector<15x128xf32> to vector<13x128xf32>
      %120 = vector.extract_strided_slice %118 {offsets = [1, 0], sizes = [13, 128], strides = [1, 1]} : vector<15x128xf32> to vector<13x128xf32>
      %121 = vector.extract_strided_slice %118 {offsets = [2, 0], sizes = [13, 128], strides = [1, 1]} : vector<15x128xf32> to vector<13x128xf32>
      %c0_i32_87 = arith.constant 0 : i32
      %122 = arith.addi %57, %c0_i32_87 : i32
      %c2_88 = arith.constant 2 : index
      %123 = arith.index_cast %122 : i32 to index
      %c0_89 = arith.constant 0 : index
      %c0_90 = arith.constant 0 : index
      %124 = vector.load %arg13[%c2_88, %123, %c0_89, %c0_90] : memref<6x15x15x128xf32, #tpu.memory_space<vmem>>, vector<1x1x15x128xf32>
      %125 = vector.shape_cast %124 : vector<1x1x15x128xf32> to vector<1x15x128xf32>
      %126 = vector.shape_cast %125 : vector<1x15x128xf32> to vector<15x128xf32>
      %127 = vector.extract_strided_slice %126 {offsets = [0, 0], sizes = [13, 128], strides = [1, 1]} : vector<15x128xf32> to vector<13x128xf32>
      %128 = vector.extract_strided_slice %126 {offsets = [1, 0], sizes = [13, 128], strides = [1, 1]} : vector<15x128xf32> to vector<13x128xf32>
      %129 = vector.extract_strided_slice %126 {offsets = [2, 0], sizes = [13, 128], strides = [1, 1]} : vector<15x128xf32> to vector<13x128xf32>
      %c1_i32_91 = arith.constant 1 : i32
      %130 = arith.addi %57, %c1_i32_91 : i32
      %c2_92 = arith.constant 2 : index
      %131 = arith.index_cast %130 : i32 to index
      %c0_93 = arith.constant 0 : index
      %c0_94 = arith.constant 0 : index
      %132 = vector.load %arg13[%c2_92, %131, %c0_93, %c0_94] : memref<6x15x15x128xf32, #tpu.memory_space<vmem>>, vector<1x1x15x128xf32>
      %133 = vector.shape_cast %132 : vector<1x1x15x128xf32> to vector<1x15x128xf32>
      %134 = vector.shape_cast %133 : vector<1x15x128xf32> to vector<15x128xf32>
      %135 = vector.extract_strided_slice %134 {offsets = [0, 0], sizes = [13, 128], strides = [1, 1]} : vector<15x128xf32> to vector<13x128xf32>
      %136 = vector.extract_strided_slice %134 {offsets = [1, 0], sizes = [13, 128], strides = [1, 1]} : vector<15x128xf32> to vector<13x128xf32>
      %137 = vector.extract_strided_slice %134 {offsets = [2, 0], sizes = [13, 128], strides = [1, 1]} : vector<15x128xf32> to vector<13x128xf32>
      %c2_i32_95 = arith.constant 2 : i32
      %138 = arith.addi %57, %c2_i32_95 : i32
      %c2_96 = arith.constant 2 : index
      %139 = arith.index_cast %138 : i32 to index
      %c0_97 = arith.constant 0 : index
      %c0_98 = arith.constant 0 : index
      %140 = vector.load %arg13[%c2_96, %139, %c0_97, %c0_98] : memref<6x15x15x128xf32, #tpu.memory_space<vmem>>, vector<1x1x15x128xf32>
      %141 = vector.shape_cast %140 : vector<1x1x15x128xf32> to vector<1x15x128xf32>
      %142 = vector.shape_cast %141 : vector<1x15x128xf32> to vector<15x128xf32>
      %143 = vector.extract_strided_slice %142 {offsets = [0, 0], sizes = [13, 128], strides = [1, 1]} : vector<15x128xf32> to vector<13x128xf32>
      %144 = vector.extract_strided_slice %142 {offsets = [1, 0], sizes = [13, 128], strides = [1, 1]} : vector<15x128xf32> to vector<13x128xf32>
      %145 = vector.extract_strided_slice %142 {offsets = [2, 0], sizes = [13, 128], strides = [1, 1]} : vector<15x128xf32> to vector<13x128xf32>
      %c3_i32_99 = arith.constant 3 : i32
      %146 = arith.addi %57, %c3_i32_99 : i32
      %c2_100 = arith.constant 2 : index
      %147 = arith.index_cast %146 : i32 to index
      %c0_101 = arith.constant 0 : index
      %c0_102 = arith.constant 0 : index
      %148 = vector.load %arg13[%c2_100, %147, %c0_101, %c0_102] : memref<6x15x15x128xf32, #tpu.memory_space<vmem>>, vector<1x1x15x128xf32>
      %149 = vector.shape_cast %148 : vector<1x1x15x128xf32> to vector<1x15x128xf32>
      %150 = vector.shape_cast %149 : vector<1x15x128xf32> to vector<15x128xf32>
      %151 = vector.extract_strided_slice %150 {offsets = [0, 0], sizes = [13, 128], strides = [1, 1]} : vector<15x128xf32> to vector<13x128xf32>
      %152 = vector.extract_strided_slice %150 {offsets = [1, 0], sizes = [13, 128], strides = [1, 1]} : vector<15x128xf32> to vector<13x128xf32>
      %153 = vector.extract_strided_slice %150 {offsets = [2, 0], sizes = [13, 128], strides = [1, 1]} : vector<15x128xf32> to vector<13x128xf32>
      %c0_i32_103 = arith.constant 0 : i32
      %154 = arith.addi %57, %c0_i32_103 : i32
      %c3_104 = arith.constant 3 : index
      %155 = arith.index_cast %154 : i32 to index
      %c0_105 = arith.constant 0 : index
      %c0_106 = arith.constant 0 : index
      %156 = vector.load %arg13[%c3_104, %155, %c0_105, %c0_106] : memref<6x15x15x128xf32, #tpu.memory_space<vmem>>, vector<1x1x15x128xf32>
      %157 = vector.shape_cast %156 : vector<1x1x15x128xf32> to vector<1x15x128xf32>
      %158 = vector.shape_cast %157 : vector<1x15x128xf32> to vector<15x128xf32>
      %159 = vector.extract_strided_slice %158 {offsets = [0, 0], sizes = [13, 128], strides = [1, 1]} : vector<15x128xf32> to vector<13x128xf32>
      %160 = vector.extract_strided_slice %158 {offsets = [1, 0], sizes = [13, 128], strides = [1, 1]} : vector<15x128xf32> to vector<13x128xf32>
      %161 = vector.extract_strided_slice %158 {offsets = [2, 0], sizes = [13, 128], strides = [1, 1]} : vector<15x128xf32> to vector<13x128xf32>
      %c1_i32_107 = arith.constant 1 : i32
      %162 = arith.addi %57, %c1_i32_107 : i32
      %c3_108 = arith.constant 3 : index
      %163 = arith.index_cast %162 : i32 to index
      %c0_109 = arith.constant 0 : index
      %c0_110 = arith.constant 0 : index
      %164 = vector.load %arg13[%c3_108, %163, %c0_109, %c0_110] : memref<6x15x15x128xf32, #tpu.memory_space<vmem>>, vector<1x1x15x128xf32>
      %165 = vector.shape_cast %164 : vector<1x1x15x128xf32> to vector<1x15x128xf32>
      %166 = vector.shape_cast %165 : vector<1x15x128xf32> to vector<15x128xf32>
      %167 = vector.extract_strided_slice %166 {offsets = [0, 0], sizes = [13, 128], strides = [1, 1]} : vector<15x128xf32> to vector<13x128xf32>
      %168 = vector.extract_strided_slice %166 {offsets = [1, 0], sizes = [13, 128], strides = [1, 1]} : vector<15x128xf32> to vector<13x128xf32>
      %169 = vector.extract_strided_slice %166 {offsets = [2, 0], sizes = [13, 128], strides = [1, 1]} : vector<15x128xf32> to vector<13x128xf32>
      %c2_i32_111 = arith.constant 2 : i32
      %170 = arith.addi %57, %c2_i32_111 : i32
      %c3_112 = arith.constant 3 : index
      %171 = arith.index_cast %170 : i32 to index
      %c0_113 = arith.constant 0 : index
      %c0_114 = arith.constant 0 : index
      %172 = vector.load %arg13[%c3_112, %171, %c0_113, %c0_114] : memref<6x15x15x128xf32, #tpu.memory_space<vmem>>, vector<1x1x15x128xf32>
      %173 = vector.shape_cast %172 : vector<1x1x15x128xf32> to vector<1x15x128xf32>
      %174 = vector.shape_cast %173 : vector<1x15x128xf32> to vector<15x128xf32>
      %175 = vector.extract_strided_slice %174 {offsets = [0, 0], sizes = [13, 128], strides = [1, 1]} : vector<15x128xf32> to vector<13x128xf32>
      %176 = vector.extract_strided_slice %174 {offsets = [1, 0], sizes = [13, 128], strides = [1, 1]} : vector<15x128xf32> to vector<13x128xf32>
      %177 = vector.extract_strided_slice %174 {offsets = [2, 0], sizes = [13, 128], strides = [1, 1]} : vector<15x128xf32> to vector<13x128xf32>
      %c3_i32_115 = arith.constant 3 : i32
      %178 = arith.addi %57, %c3_i32_115 : i32
      %c3_116 = arith.constant 3 : index
      %179 = arith.index_cast %178 : i32 to index
      %c0_117 = arith.constant 0 : index
      %c0_118 = arith.constant 0 : index
      %180 = vector.load %arg13[%c3_116, %179, %c0_117, %c0_118] : memref<6x15x15x128xf32, #tpu.memory_space<vmem>>, vector<1x1x15x128xf32>
      %181 = vector.shape_cast %180 : vector<1x1x15x128xf32> to vector<1x15x128xf32>
      %182 = vector.shape_cast %181 : vector<1x15x128xf32> to vector<15x128xf32>
      %183 = vector.extract_strided_slice %182 {offsets = [0, 0], sizes = [13, 128], strides = [1, 1]} : vector<15x128xf32> to vector<13x128xf32>
      %184 = vector.extract_strided_slice %182 {offsets = [1, 0], sizes = [13, 128], strides = [1, 1]} : vector<15x128xf32> to vector<13x128xf32>
      %185 = vector.extract_strided_slice %182 {offsets = [2, 0], sizes = [13, 128], strides = [1, 1]} : vector<15x128xf32> to vector<13x128xf32>
      %c0_i32_119 = arith.constant 0 : i32
      %186 = arith.addi %57, %c0_i32_119 : i32
      %c4_120 = arith.constant 4 : index
      %187 = arith.index_cast %186 : i32 to index
      %c0_121 = arith.constant 0 : index
      %c0_122 = arith.constant 0 : index
      %188 = vector.load %arg13[%c4_120, %187, %c0_121, %c0_122] : memref<6x15x15x128xf32, #tpu.memory_space<vmem>>, vector<1x1x15x128xf32>
      %189 = vector.shape_cast %188 : vector<1x1x15x128xf32> to vector<1x15x128xf32>
      %190 = vector.shape_cast %189 : vector<1x15x128xf32> to vector<15x128xf32>
      %191 = vector.extract_strided_slice %190 {offsets = [0, 0], sizes = [13, 128], strides = [1, 1]} : vector<15x128xf32> to vector<13x128xf32>
      %192 = vector.extract_strided_slice %190 {offsets = [1, 0], sizes = [13, 128], strides = [1, 1]} : vector<15x128xf32> to vector<13x128xf32>
      %193 = vector.extract_strided_slice %190 {offsets = [2, 0], sizes = [13, 128], strides = [1, 1]} : vector<15x128xf32> to vector<13x128xf32>
      %c1_i32_123 = arith.constant 1 : i32
      %194 = arith.addi %57, %c1_i32_123 : i32
      %c4_124 = arith.constant 4 : index
      %195 = arith.index_cast %194 : i32 to index
      %c0_125 = arith.constant 0 : index
      %c0_126 = arith.constant 0 : index
      %196 = vector.load %arg13[%c4_124, %195, %c0_125, %c0_126] : memref<6x15x15x128xf32, #tpu.memory_space<vmem>>, vector<1x1x15x128xf32>
      %197 = vector.shape_cast %196 : vector<1x1x15x128xf32> to vector<1x15x128xf32>
      %198 = vector.shape_cast %197 : vector<1x15x128xf32> to vector<15x128xf32>
      %199 = vector.extract_strided_slice %198 {offsets = [0, 0], sizes = [13, 128], strides = [1, 1]} : vector<15x128xf32> to vector<13x128xf32>
      %200 = vector.extract_strided_slice %198 {offsets = [1, 0], sizes = [13, 128], strides = [1, 1]} : vector<15x128xf32> to vector<13x128xf32>
      %201 = vector.extract_strided_slice %198 {offsets = [2, 0], sizes = [13, 128], strides = [1, 1]} : vector<15x128xf32> to vector<13x128xf32>
      %c2_i32_127 = arith.constant 2 : i32
      %202 = arith.addi %57, %c2_i32_127 : i32
      %c4_128 = arith.constant 4 : index
      %203 = arith.index_cast %202 : i32 to index
      %c0_129 = arith.constant 0 : index
      %c0_130 = arith.constant 0 : index
      %204 = vector.load %arg13[%c4_128, %203, %c0_129, %c0_130] : memref<6x15x15x128xf32, #tpu.memory_space<vmem>>, vector<1x1x15x128xf32>
      %205 = vector.shape_cast %204 : vector<1x1x15x128xf32> to vector<1x15x128xf32>
      %206 = vector.shape_cast %205 : vector<1x15x128xf32> to vector<15x128xf32>
      %207 = vector.extract_strided_slice %206 {offsets = [0, 0], sizes = [13, 128], strides = [1, 1]} : vector<15x128xf32> to vector<13x128xf32>
      %208 = vector.extract_strided_slice %206 {offsets = [1, 0], sizes = [13, 128], strides = [1, 1]} : vector<15x128xf32> to vector<13x128xf32>
      %209 = vector.extract_strided_slice %206 {offsets = [2, 0], sizes = [13, 128], strides = [1, 1]} : vector<15x128xf32> to vector<13x128xf32>
      %c3_i32_131 = arith.constant 3 : i32
      %210 = arith.addi %57, %c3_i32_131 : i32
      %c4_132 = arith.constant 4 : index
      %211 = arith.index_cast %210 : i32 to index
      %c0_133 = arith.constant 0 : index
      %c0_134 = arith.constant 0 : index
      %212 = vector.load %arg13[%c4_132, %211, %c0_133, %c0_134] : memref<6x15x15x128xf32, #tpu.memory_space<vmem>>, vector<1x1x15x128xf32>
      %213 = vector.shape_cast %212 : vector<1x1x15x128xf32> to vector<1x15x128xf32>
      %214 = vector.shape_cast %213 : vector<1x15x128xf32> to vector<15x128xf32>
      %215 = vector.extract_strided_slice %214 {offsets = [0, 0], sizes = [13, 128], strides = [1, 1]} : vector<15x128xf32> to vector<13x128xf32>
      %216 = vector.extract_strided_slice %214 {offsets = [1, 0], sizes = [13, 128], strides = [1, 1]} : vector<15x128xf32> to vector<13x128xf32>
      %217 = vector.extract_strided_slice %214 {offsets = [2, 0], sizes = [13, 128], strides = [1, 1]} : vector<15x128xf32> to vector<13x128xf32>
      %c0_i32_135 = arith.constant 0 : i32
      %218 = arith.addi %57, %c0_i32_135 : i32
      %c5_136 = arith.constant 5 : index
      %219 = arith.index_cast %218 : i32 to index
      %c0_137 = arith.constant 0 : index
      %c0_138 = arith.constant 0 : index
      %220 = vector.load %arg13[%c5_136, %219, %c0_137, %c0_138] : memref<6x15x15x128xf32, #tpu.memory_space<vmem>>, vector<1x1x15x128xf32>
      %221 = vector.shape_cast %220 : vector<1x1x15x128xf32> to vector<1x15x128xf32>
      %222 = vector.shape_cast %221 : vector<1x15x128xf32> to vector<15x128xf32>
      %223 = vector.extract_strided_slice %222 {offsets = [0, 0], sizes = [13, 128], strides = [1, 1]} : vector<15x128xf32> to vector<13x128xf32>
      %224 = vector.extract_strided_slice %222 {offsets = [1, 0], sizes = [13, 128], strides = [1, 1]} : vector<15x128xf32> to vector<13x128xf32>
      %225 = vector.extract_strided_slice %222 {offsets = [2, 0], sizes = [13, 128], strides = [1, 1]} : vector<15x128xf32> to vector<13x128xf32>
      %c1_i32_139 = arith.constant 1 : i32
      %226 = arith.addi %57, %c1_i32_139 : i32
      %c5_140 = arith.constant 5 : index
      %227 = arith.index_cast %226 : i32 to index
      %c0_141 = arith.constant 0 : index
      %c0_142 = arith.constant 0 : index
      %228 = vector.load %arg13[%c5_140, %227, %c0_141, %c0_142] : memref<6x15x15x128xf32, #tpu.memory_space<vmem>>, vector<1x1x15x128xf32>
      %229 = vector.shape_cast %228 : vector<1x1x15x128xf32> to vector<1x15x128xf32>
      %230 = vector.shape_cast %229 : vector<1x15x128xf32> to vector<15x128xf32>
      %231 = vector.extract_strided_slice %230 {offsets = [0, 0], sizes = [13, 128], strides = [1, 1]} : vector<15x128xf32> to vector<13x128xf32>
      %232 = vector.extract_strided_slice %230 {offsets = [1, 0], sizes = [13, 128], strides = [1, 1]} : vector<15x128xf32> to vector<13x128xf32>
      %233 = vector.extract_strided_slice %230 {offsets = [2, 0], sizes = [13, 128], strides = [1, 1]} : vector<15x128xf32> to vector<13x128xf32>
      %c2_i32_143 = arith.constant 2 : i32
      %234 = arith.addi %57, %c2_i32_143 : i32
      %c5_144 = arith.constant 5 : index
      %235 = arith.index_cast %234 : i32 to index
      %c0_145 = arith.constant 0 : index
      %c0_146 = arith.constant 0 : index
      %236 = vector.load %arg13[%c5_144, %235, %c0_145, %c0_146] : memref<6x15x15x128xf32, #tpu.memory_space<vmem>>, vector<1x1x15x128xf32>
      %237 = vector.shape_cast %236 : vector<1x1x15x128xf32> to vector<1x15x128xf32>
      %238 = vector.shape_cast %237 : vector<1x15x128xf32> to vector<15x128xf32>
      %239 = vector.extract_strided_slice %238 {offsets = [0, 0], sizes = [13, 128], strides = [1, 1]} : vector<15x128xf32> to vector<13x128xf32>
      %240 = vector.extract_strided_slice %238 {offsets = [1, 0], sizes = [13, 128], strides = [1, 1]} : vector<15x128xf32> to vector<13x128xf32>
      %241 = vector.extract_strided_slice %238 {offsets = [2, 0], sizes = [13, 128], strides = [1, 1]} : vector<15x128xf32> to vector<13x128xf32>
      %c3_i32_147 = arith.constant 3 : i32
      %242 = arith.addi %57, %c3_i32_147 : i32
      %c5_148 = arith.constant 5 : index
      %243 = arith.index_cast %242 : i32 to index
      %c0_149 = arith.constant 0 : index
      %c0_150 = arith.constant 0 : index
      %244 = vector.load %arg13[%c5_148, %243, %c0_149, %c0_150] : memref<6x15x15x128xf32, #tpu.memory_space<vmem>>, vector<1x1x15x128xf32>
      %245 = vector.shape_cast %244 : vector<1x1x15x128xf32> to vector<1x15x128xf32>
      %246 = vector.shape_cast %245 : vector<1x15x128xf32> to vector<15x128xf32>
      %247 = vector.extract_strided_slice %246 {offsets = [0, 0], sizes = [13, 128], strides = [1, 1]} : vector<15x128xf32> to vector<13x128xf32>
      %248 = vector.extract_strided_slice %246 {offsets = [1, 0], sizes = [13, 128], strides = [1, 1]} : vector<15x128xf32> to vector<13x128xf32>
      %249 = vector.extract_strided_slice %246 {offsets = [2, 0], sizes = [13, 128], strides = [1, 1]} : vector<15x128xf32> to vector<13x128xf32>
      %c0_i32_151 = arith.constant 0 : i32
      %c16_i32 = arith.constant 16 : i32
      %250 = arith.addi %c0_i32_151, %c16_i32 : i32
      %c1_i32_152 = arith.constant 1 : i32
      scf.for %arg18 = %c0_i32_151 to %250 step %c1_i32_152  : i32 {
        %cst_211 = arith.constant 0.000000e+00 : f32
        %331 = vector.broadcast %cst_211 : f32 to vector<13x128xf32>
        %cst_212 = arith.constant 0.000000e+00 : f32
        %332 = vector.broadcast %cst_212 : f32 to vector<13x128xf32>
        %333 = arith.index_cast %arg18 : i32 to index
        %c0_213 = arith.constant 0 : index
        %334 = memref.load %arg4[%333, %c0_213] : memref<16x54xf32, #tpu.memory_space<smem>>
        %335 = vector.broadcast %334 : f32 to vector<13x128xf32>
        %336 = arith.mulf %63, %335 : vector<13x128xf32>
        %337 = arith.addf %331, %336 : vector<13x128xf32>
        %338 = vector.broadcast %334 : f32 to vector<13x128xf32>
        %339 = arith.mulf %71, %338 : vector<13x128xf32>
        %340 = arith.addf %332, %339 : vector<13x128xf32>
        %341 = arith.index_cast %arg18 : i32 to index
        %c1_214 = arith.constant 1 : index
        %342 = memref.load %arg4[%341, %c1_214] : memref<16x54xf32, #tpu.memory_space<smem>>
        %343 = vector.broadcast %342 : f32 to vector<13x128xf32>
        %344 = arith.mulf %64, %343 : vector<13x128xf32>
        %345 = arith.addf %337, %344 : vector<13x128xf32>
        %346 = vector.broadcast %342 : f32 to vector<13x128xf32>
        %347 = arith.mulf %72, %346 : vector<13x128xf32>
        %348 = arith.addf %340, %347 : vector<13x128xf32>
        %349 = arith.index_cast %arg18 : i32 to index
        %c2_215 = arith.constant 2 : index
        %350 = memref.load %arg4[%349, %c2_215] : memref<16x54xf32, #tpu.memory_space<smem>>
        %351 = vector.broadcast %350 : f32 to vector<13x128xf32>
        %352 = arith.mulf %65, %351 : vector<13x128xf32>
        %353 = arith.addf %345, %352 : vector<13x128xf32>
        %354 = vector.broadcast %350 : f32 to vector<13x128xf32>
        %355 = arith.mulf %73, %354 : vector<13x128xf32>
        %356 = arith.addf %348, %355 : vector<13x128xf32>
        %357 = arith.index_cast %arg18 : i32 to index
        %c3_216 = arith.constant 3 : index
        %358 = memref.load %arg4[%357, %c3_216] : memref<16x54xf32, #tpu.memory_space<smem>>
        %359 = vector.broadcast %358 : f32 to vector<13x128xf32>
        %360 = arith.mulf %71, %359 : vector<13x128xf32>
        %361 = arith.addf %353, %360 : vector<13x128xf32>
        %362 = vector.broadcast %358 : f32 to vector<13x128xf32>
        %363 = arith.mulf %79, %362 : vector<13x128xf32>
        %364 = arith.addf %356, %363 : vector<13x128xf32>
        %365 = arith.index_cast %arg18 : i32 to index
        %c4_217 = arith.constant 4 : index
        %366 = memref.load %arg4[%365, %c4_217] : memref<16x54xf32, #tpu.memory_space<smem>>
        %367 = vector.broadcast %366 : f32 to vector<13x128xf32>
        %368 = arith.mulf %72, %367 : vector<13x128xf32>
        %369 = arith.addf %361, %368 : vector<13x128xf32>
        %370 = vector.broadcast %366 : f32 to vector<13x128xf32>
        %371 = arith.mulf %80, %370 : vector<13x128xf32>
        %372 = arith.addf %364, %371 : vector<13x128xf32>
        %373 = arith.index_cast %arg18 : i32 to index
        %c5_218 = arith.constant 5 : index
        %374 = memref.load %arg4[%373, %c5_218] : memref<16x54xf32, #tpu.memory_space<smem>>
        %375 = vector.broadcast %374 : f32 to vector<13x128xf32>
        %376 = arith.mulf %73, %375 : vector<13x128xf32>
        %377 = arith.addf %369, %376 : vector<13x128xf32>
        %378 = vector.broadcast %374 : f32 to vector<13x128xf32>
        %379 = arith.mulf %81, %378 : vector<13x128xf32>
        %380 = arith.addf %372, %379 : vector<13x128xf32>
        %381 = arith.index_cast %arg18 : i32 to index
        %c6_219 = arith.constant 6 : index
        %382 = memref.load %arg4[%381, %c6_219] : memref<16x54xf32, #tpu.memory_space<smem>>
        %383 = vector.broadcast %382 : f32 to vector<13x128xf32>
        %384 = arith.mulf %79, %383 : vector<13x128xf32>
        %385 = arith.addf %377, %384 : vector<13x128xf32>
        %386 = vector.broadcast %382 : f32 to vector<13x128xf32>
        %387 = arith.mulf %87, %386 : vector<13x128xf32>
        %388 = arith.addf %380, %387 : vector<13x128xf32>
        %389 = arith.index_cast %arg18 : i32 to index
        %c7_220 = arith.constant 7 : index
        %390 = memref.load %arg4[%389, %c7_220] : memref<16x54xf32, #tpu.memory_space<smem>>
        %391 = vector.broadcast %390 : f32 to vector<13x128xf32>
        %392 = arith.mulf %80, %391 : vector<13x128xf32>
        %393 = arith.addf %385, %392 : vector<13x128xf32>
        %394 = vector.broadcast %390 : f32 to vector<13x128xf32>
        %395 = arith.mulf %88, %394 : vector<13x128xf32>
        %396 = arith.addf %388, %395 : vector<13x128xf32>
        %397 = arith.index_cast %arg18 : i32 to index
        %c8_221 = arith.constant 8 : index
        %398 = memref.load %arg4[%397, %c8_221] : memref<16x54xf32, #tpu.memory_space<smem>>
        %399 = vector.broadcast %398 : f32 to vector<13x128xf32>
        %400 = arith.mulf %81, %399 : vector<13x128xf32>
        %401 = arith.addf %393, %400 : vector<13x128xf32>
        %402 = vector.broadcast %398 : f32 to vector<13x128xf32>
        %403 = arith.mulf %89, %402 : vector<13x128xf32>
        %404 = arith.addf %396, %403 : vector<13x128xf32>
        %405 = arith.index_cast %arg18 : i32 to index
        %c9_222 = arith.constant 9 : index
        %406 = memref.load %arg4[%405, %c9_222] : memref<16x54xf32, #tpu.memory_space<smem>>
        %407 = vector.broadcast %406 : f32 to vector<13x128xf32>
        %408 = arith.mulf %95, %407 : vector<13x128xf32>
        %409 = arith.addf %401, %408 : vector<13x128xf32>
        %410 = vector.broadcast %406 : f32 to vector<13x128xf32>
        %411 = arith.mulf %103, %410 : vector<13x128xf32>
        %412 = arith.addf %404, %411 : vector<13x128xf32>
        %413 = arith.index_cast %arg18 : i32 to index
        %c10_223 = arith.constant 10 : index
        %414 = memref.load %arg4[%413, %c10_223] : memref<16x54xf32, #tpu.memory_space<smem>>
        %415 = vector.broadcast %414 : f32 to vector<13x128xf32>
        %416 = arith.mulf %96, %415 : vector<13x128xf32>
        %417 = arith.addf %409, %416 : vector<13x128xf32>
        %418 = vector.broadcast %414 : f32 to vector<13x128xf32>
        %419 = arith.mulf %104, %418 : vector<13x128xf32>
        %420 = arith.addf %412, %419 : vector<13x128xf32>
        %421 = arith.index_cast %arg18 : i32 to index
        %c11_224 = arith.constant 11 : index
        %422 = memref.load %arg4[%421, %c11_224] : memref<16x54xf32, #tpu.memory_space<smem>>
        %423 = vector.broadcast %422 : f32 to vector<13x128xf32>
        %424 = arith.mulf %97, %423 : vector<13x128xf32>
        %425 = arith.addf %417, %424 : vector<13x128xf32>
        %426 = vector.broadcast %422 : f32 to vector<13x128xf32>
        %427 = arith.mulf %105, %426 : vector<13x128xf32>
        %428 = arith.addf %420, %427 : vector<13x128xf32>
        %429 = arith.index_cast %arg18 : i32 to index
        %c12_225 = arith.constant 12 : index
        %430 = memref.load %arg4[%429, %c12_225] : memref<16x54xf32, #tpu.memory_space<smem>>
        %431 = vector.broadcast %430 : f32 to vector<13x128xf32>
        %432 = arith.mulf %103, %431 : vector<13x128xf32>
        %433 = arith.addf %425, %432 : vector<13x128xf32>
        %434 = vector.broadcast %430 : f32 to vector<13x128xf32>
        %435 = arith.mulf %111, %434 : vector<13x128xf32>
        %436 = arith.addf %428, %435 : vector<13x128xf32>
        %437 = arith.index_cast %arg18 : i32 to index
        %c13_226 = arith.constant 13 : index
        %438 = memref.load %arg4[%437, %c13_226] : memref<16x54xf32, #tpu.memory_space<smem>>
        %439 = vector.broadcast %438 : f32 to vector<13x128xf32>
        %440 = arith.mulf %104, %439 : vector<13x128xf32>
        %441 = arith.addf %433, %440 : vector<13x128xf32>
        %442 = vector.broadcast %438 : f32 to vector<13x128xf32>
        %443 = arith.mulf %112, %442 : vector<13x128xf32>
        %444 = arith.addf %436, %443 : vector<13x128xf32>
        %445 = arith.index_cast %arg18 : i32 to index
        %c14_227 = arith.constant 14 : index
        %446 = memref.load %arg4[%445, %c14_227] : memref<16x54xf32, #tpu.memory_space<smem>>
        %447 = vector.broadcast %446 : f32 to vector<13x128xf32>
        %448 = arith.mulf %105, %447 : vector<13x128xf32>
        %449 = arith.addf %441, %448 : vector<13x128xf32>
        %450 = vector.broadcast %446 : f32 to vector<13x128xf32>
        %451 = arith.mulf %113, %450 : vector<13x128xf32>
        %452 = arith.addf %444, %451 : vector<13x128xf32>
        %453 = arith.index_cast %arg18 : i32 to index
        %c15_228 = arith.constant 15 : index
        %454 = memref.load %arg4[%453, %c15_228] : memref<16x54xf32, #tpu.memory_space<smem>>
        %455 = vector.broadcast %454 : f32 to vector<13x128xf32>
        %456 = arith.mulf %111, %455 : vector<13x128xf32>
        %457 = arith.addf %449, %456 : vector<13x128xf32>
        %458 = vector.broadcast %454 : f32 to vector<13x128xf32>
        %459 = arith.mulf %119, %458 : vector<13x128xf32>
        %460 = arith.addf %452, %459 : vector<13x128xf32>
        %461 = arith.index_cast %arg18 : i32 to index
        %c16 = arith.constant 16 : index
        %462 = memref.load %arg4[%461, %c16] : memref<16x54xf32, #tpu.memory_space<smem>>
        %463 = vector.broadcast %462 : f32 to vector<13x128xf32>
        %464 = arith.mulf %112, %463 : vector<13x128xf32>
        %465 = arith.addf %457, %464 : vector<13x128xf32>
        %466 = vector.broadcast %462 : f32 to vector<13x128xf32>
        %467 = arith.mulf %120, %466 : vector<13x128xf32>
        %468 = arith.addf %460, %467 : vector<13x128xf32>
        %469 = arith.index_cast %arg18 : i32 to index
        %c17 = arith.constant 17 : index
        %470 = memref.load %arg4[%469, %c17] : memref<16x54xf32, #tpu.memory_space<smem>>
        %471 = vector.broadcast %470 : f32 to vector<13x128xf32>
        %472 = arith.mulf %113, %471 : vector<13x128xf32>
        %473 = arith.addf %465, %472 : vector<13x128xf32>
        %474 = vector.broadcast %470 : f32 to vector<13x128xf32>
        %475 = arith.mulf %121, %474 : vector<13x128xf32>
        %476 = arith.addf %468, %475 : vector<13x128xf32>
        %477 = arith.index_cast %arg18 : i32 to index
        %c18_229 = arith.constant 18 : index
        %478 = memref.load %arg4[%477, %c18_229] : memref<16x54xf32, #tpu.memory_space<smem>>
        %479 = vector.broadcast %478 : f32 to vector<13x128xf32>
        %480 = arith.mulf %127, %479 : vector<13x128xf32>
        %481 = arith.addf %473, %480 : vector<13x128xf32>
        %482 = vector.broadcast %478 : f32 to vector<13x128xf32>
        %483 = arith.mulf %135, %482 : vector<13x128xf32>
        %484 = arith.addf %476, %483 : vector<13x128xf32>
        %485 = arith.index_cast %arg18 : i32 to index
        %c19 = arith.constant 19 : index
        %486 = memref.load %arg4[%485, %c19] : memref<16x54xf32, #tpu.memory_space<smem>>
        %487 = vector.broadcast %486 : f32 to vector<13x128xf32>
        %488 = arith.mulf %128, %487 : vector<13x128xf32>
        %489 = arith.addf %481, %488 : vector<13x128xf32>
        %490 = vector.broadcast %486 : f32 to vector<13x128xf32>
        %491 = arith.mulf %136, %490 : vector<13x128xf32>
        %492 = arith.addf %484, %491 : vector<13x128xf32>
        %493 = arith.index_cast %arg18 : i32 to index
        %c20 = arith.constant 20 : index
        %494 = memref.load %arg4[%493, %c20] : memref<16x54xf32, #tpu.memory_space<smem>>
        %495 = vector.broadcast %494 : f32 to vector<13x128xf32>
        %496 = arith.mulf %129, %495 : vector<13x128xf32>
        %497 = arith.addf %489, %496 : vector<13x128xf32>
        %498 = vector.broadcast %494 : f32 to vector<13x128xf32>
        %499 = arith.mulf %137, %498 : vector<13x128xf32>
        %500 = arith.addf %492, %499 : vector<13x128xf32>
        %501 = arith.index_cast %arg18 : i32 to index
        %c21 = arith.constant 21 : index
        %502 = memref.load %arg4[%501, %c21] : memref<16x54xf32, #tpu.memory_space<smem>>
        %503 = vector.broadcast %502 : f32 to vector<13x128xf32>
        %504 = arith.mulf %135, %503 : vector<13x128xf32>
        %505 = arith.addf %497, %504 : vector<13x128xf32>
        %506 = vector.broadcast %502 : f32 to vector<13x128xf32>
        %507 = arith.mulf %143, %506 : vector<13x128xf32>
        %508 = arith.addf %500, %507 : vector<13x128xf32>
        %509 = arith.index_cast %arg18 : i32 to index
        %c22 = arith.constant 22 : index
        %510 = memref.load %arg4[%509, %c22] : memref<16x54xf32, #tpu.memory_space<smem>>
        %511 = vector.broadcast %510 : f32 to vector<13x128xf32>
        %512 = arith.mulf %136, %511 : vector<13x128xf32>
        %513 = arith.addf %505, %512 : vector<13x128xf32>
        %514 = vector.broadcast %510 : f32 to vector<13x128xf32>
        %515 = arith.mulf %144, %514 : vector<13x128xf32>
        %516 = arith.addf %508, %515 : vector<13x128xf32>
        %517 = arith.index_cast %arg18 : i32 to index
        %c23 = arith.constant 23 : index
        %518 = memref.load %arg4[%517, %c23] : memref<16x54xf32, #tpu.memory_space<smem>>
        %519 = vector.broadcast %518 : f32 to vector<13x128xf32>
        %520 = arith.mulf %137, %519 : vector<13x128xf32>
        %521 = arith.addf %513, %520 : vector<13x128xf32>
        %522 = vector.broadcast %518 : f32 to vector<13x128xf32>
        %523 = arith.mulf %145, %522 : vector<13x128xf32>
        %524 = arith.addf %516, %523 : vector<13x128xf32>
        %525 = arith.index_cast %arg18 : i32 to index
        %c24_230 = arith.constant 24 : index
        %526 = memref.load %arg4[%525, %c24_230] : memref<16x54xf32, #tpu.memory_space<smem>>
        %527 = vector.broadcast %526 : f32 to vector<13x128xf32>
        %528 = arith.mulf %143, %527 : vector<13x128xf32>
        %529 = arith.addf %521, %528 : vector<13x128xf32>
        %530 = vector.broadcast %526 : f32 to vector<13x128xf32>
        %531 = arith.mulf %151, %530 : vector<13x128xf32>
        %532 = arith.addf %524, %531 : vector<13x128xf32>
        %533 = arith.index_cast %arg18 : i32 to index
        %c25 = arith.constant 25 : index
        %534 = memref.load %arg4[%533, %c25] : memref<16x54xf32, #tpu.memory_space<smem>>
        %535 = vector.broadcast %534 : f32 to vector<13x128xf32>
        %536 = arith.mulf %144, %535 : vector<13x128xf32>
        %537 = arith.addf %529, %536 : vector<13x128xf32>
        %538 = vector.broadcast %534 : f32 to vector<13x128xf32>
        %539 = arith.mulf %152, %538 : vector<13x128xf32>
        %540 = arith.addf %532, %539 : vector<13x128xf32>
        %541 = arith.index_cast %arg18 : i32 to index
        %c26 = arith.constant 26 : index
        %542 = memref.load %arg4[%541, %c26] : memref<16x54xf32, #tpu.memory_space<smem>>
        %543 = vector.broadcast %542 : f32 to vector<13x128xf32>
        %544 = arith.mulf %145, %543 : vector<13x128xf32>
        %545 = arith.addf %537, %544 : vector<13x128xf32>
        %546 = vector.broadcast %542 : f32 to vector<13x128xf32>
        %547 = arith.mulf %153, %546 : vector<13x128xf32>
        %548 = arith.addf %540, %547 : vector<13x128xf32>
        %549 = arith.index_cast %arg18 : i32 to index
        %c27 = arith.constant 27 : index
        %550 = memref.load %arg4[%549, %c27] : memref<16x54xf32, #tpu.memory_space<smem>>
        %551 = vector.broadcast %550 : f32 to vector<13x128xf32>
        %552 = arith.mulf %159, %551 : vector<13x128xf32>
        %553 = arith.addf %545, %552 : vector<13x128xf32>
        %554 = vector.broadcast %550 : f32 to vector<13x128xf32>
        %555 = arith.mulf %167, %554 : vector<13x128xf32>
        %556 = arith.addf %548, %555 : vector<13x128xf32>
        %557 = arith.index_cast %arg18 : i32 to index
        %c28 = arith.constant 28 : index
        %558 = memref.load %arg4[%557, %c28] : memref<16x54xf32, #tpu.memory_space<smem>>
        %559 = vector.broadcast %558 : f32 to vector<13x128xf32>
        %560 = arith.mulf %160, %559 : vector<13x128xf32>
        %561 = arith.addf %553, %560 : vector<13x128xf32>
        %562 = vector.broadcast %558 : f32 to vector<13x128xf32>
        %563 = arith.mulf %168, %562 : vector<13x128xf32>
        %564 = arith.addf %556, %563 : vector<13x128xf32>
        %565 = arith.index_cast %arg18 : i32 to index
        %c29 = arith.constant 29 : index
        %566 = memref.load %arg4[%565, %c29] : memref<16x54xf32, #tpu.memory_space<smem>>
        %567 = vector.broadcast %566 : f32 to vector<13x128xf32>
        %568 = arith.mulf %161, %567 : vector<13x128xf32>
        %569 = arith.addf %561, %568 : vector<13x128xf32>
        %570 = vector.broadcast %566 : f32 to vector<13x128xf32>
        %571 = arith.mulf %169, %570 : vector<13x128xf32>
        %572 = arith.addf %564, %571 : vector<13x128xf32>
        %573 = arith.index_cast %arg18 : i32 to index
        %c30_231 = arith.constant 30 : index
        %574 = memref.load %arg4[%573, %c30_231] : memref<16x54xf32, #tpu.memory_space<smem>>
        %575 = vector.broadcast %574 : f32 to vector<13x128xf32>
        %576 = arith.mulf %167, %575 : vector<13x128xf32>
        %577 = arith.addf %569, %576 : vector<13x128xf32>
        %578 = vector.broadcast %574 : f32 to vector<13x128xf32>
        %579 = arith.mulf %175, %578 : vector<13x128xf32>
        %580 = arith.addf %572, %579 : vector<13x128xf32>
        %581 = arith.index_cast %arg18 : i32 to index
        %c31 = arith.constant 31 : index
        %582 = memref.load %arg4[%581, %c31] : memref<16x54xf32, #tpu.memory_space<smem>>
        %583 = vector.broadcast %582 : f32 to vector<13x128xf32>
        %584 = arith.mulf %168, %583 : vector<13x128xf32>
        %585 = arith.addf %577, %584 : vector<13x128xf32>
        %586 = vector.broadcast %582 : f32 to vector<13x128xf32>
        %587 = arith.mulf %176, %586 : vector<13x128xf32>
        %588 = arith.addf %580, %587 : vector<13x128xf32>
        %589 = arith.index_cast %arg18 : i32 to index
        %c32 = arith.constant 32 : index
        %590 = memref.load %arg4[%589, %c32] : memref<16x54xf32, #tpu.memory_space<smem>>
        %591 = vector.broadcast %590 : f32 to vector<13x128xf32>
        %592 = arith.mulf %169, %591 : vector<13x128xf32>
        %593 = arith.addf %585, %592 : vector<13x128xf32>
        %594 = vector.broadcast %590 : f32 to vector<13x128xf32>
        %595 = arith.mulf %177, %594 : vector<13x128xf32>
        %596 = arith.addf %588, %595 : vector<13x128xf32>
        %597 = arith.index_cast %arg18 : i32 to index
        %c33 = arith.constant 33 : index
        %598 = memref.load %arg4[%597, %c33] : memref<16x54xf32, #tpu.memory_space<smem>>
        %599 = vector.broadcast %598 : f32 to vector<13x128xf32>
        %600 = arith.mulf %175, %599 : vector<13x128xf32>
        %601 = arith.addf %593, %600 : vector<13x128xf32>
        %602 = vector.broadcast %598 : f32 to vector<13x128xf32>
        %603 = arith.mulf %183, %602 : vector<13x128xf32>
        %604 = arith.addf %596, %603 : vector<13x128xf32>
        %605 = arith.index_cast %arg18 : i32 to index
        %c34 = arith.constant 34 : index
        %606 = memref.load %arg4[%605, %c34] : memref<16x54xf32, #tpu.memory_space<smem>>
        %607 = vector.broadcast %606 : f32 to vector<13x128xf32>
        %608 = arith.mulf %176, %607 : vector<13x128xf32>
        %609 = arith.addf %601, %608 : vector<13x128xf32>
        %610 = vector.broadcast %606 : f32 to vector<13x128xf32>
        %611 = arith.mulf %184, %610 : vector<13x128xf32>
        %612 = arith.addf %604, %611 : vector<13x128xf32>
        %613 = arith.index_cast %arg18 : i32 to index
        %c35 = arith.constant 35 : index
        %614 = memref.load %arg4[%613, %c35] : memref<16x54xf32, #tpu.memory_space<smem>>
        %615 = vector.broadcast %614 : f32 to vector<13x128xf32>
        %616 = arith.mulf %177, %615 : vector<13x128xf32>
        %617 = arith.addf %609, %616 : vector<13x128xf32>
        %618 = vector.broadcast %614 : f32 to vector<13x128xf32>
        %619 = arith.mulf %185, %618 : vector<13x128xf32>
        %620 = arith.addf %612, %619 : vector<13x128xf32>
        %621 = arith.index_cast %arg18 : i32 to index
        %c36_232 = arith.constant 36 : index
        %622 = memref.load %arg4[%621, %c36_232] : memref<16x54xf32, #tpu.memory_space<smem>>
        %623 = vector.broadcast %622 : f32 to vector<13x128xf32>
        %624 = arith.mulf %191, %623 : vector<13x128xf32>
        %625 = arith.addf %617, %624 : vector<13x128xf32>
        %626 = vector.broadcast %622 : f32 to vector<13x128xf32>
        %627 = arith.mulf %199, %626 : vector<13x128xf32>
        %628 = arith.addf %620, %627 : vector<13x128xf32>
        %629 = arith.index_cast %arg18 : i32 to index
        %c37 = arith.constant 37 : index
        %630 = memref.load %arg4[%629, %c37] : memref<16x54xf32, #tpu.memory_space<smem>>
        %631 = vector.broadcast %630 : f32 to vector<13x128xf32>
        %632 = arith.mulf %192, %631 : vector<13x128xf32>
        %633 = arith.addf %625, %632 : vector<13x128xf32>
        %634 = vector.broadcast %630 : f32 to vector<13x128xf32>
        %635 = arith.mulf %200, %634 : vector<13x128xf32>
        %636 = arith.addf %628, %635 : vector<13x128xf32>
        %637 = arith.index_cast %arg18 : i32 to index
        %c38 = arith.constant 38 : index
        %638 = memref.load %arg4[%637, %c38] : memref<16x54xf32, #tpu.memory_space<smem>>
        %639 = vector.broadcast %638 : f32 to vector<13x128xf32>
        %640 = arith.mulf %193, %639 : vector<13x128xf32>
        %641 = arith.addf %633, %640 : vector<13x128xf32>
        %642 = vector.broadcast %638 : f32 to vector<13x128xf32>
        %643 = arith.mulf %201, %642 : vector<13x128xf32>
        %644 = arith.addf %636, %643 : vector<13x128xf32>
        %645 = arith.index_cast %arg18 : i32 to index
        %c39 = arith.constant 39 : index
        %646 = memref.load %arg4[%645, %c39] : memref<16x54xf32, #tpu.memory_space<smem>>
        %647 = vector.broadcast %646 : f32 to vector<13x128xf32>
        %648 = arith.mulf %199, %647 : vector<13x128xf32>
        %649 = arith.addf %641, %648 : vector<13x128xf32>
        %650 = vector.broadcast %646 : f32 to vector<13x128xf32>
        %651 = arith.mulf %207, %650 : vector<13x128xf32>
        %652 = arith.addf %644, %651 : vector<13x128xf32>
        %653 = arith.index_cast %arg18 : i32 to index
        %c40 = arith.constant 40 : index
        %654 = memref.load %arg4[%653, %c40] : memref<16x54xf32, #tpu.memory_space<smem>>
        %655 = vector.broadcast %654 : f32 to vector<13x128xf32>
        %656 = arith.mulf %200, %655 : vector<13x128xf32>
        %657 = arith.addf %649, %656 : vector<13x128xf32>
        %658 = vector.broadcast %654 : f32 to vector<13x128xf32>
        %659 = arith.mulf %208, %658 : vector<13x128xf32>
        %660 = arith.addf %652, %659 : vector<13x128xf32>
        %661 = arith.index_cast %arg18 : i32 to index
        %c41 = arith.constant 41 : index
        %662 = memref.load %arg4[%661, %c41] : memref<16x54xf32, #tpu.memory_space<smem>>
        %663 = vector.broadcast %662 : f32 to vector<13x128xf32>
        %664 = arith.mulf %201, %663 : vector<13x128xf32>
        %665 = arith.addf %657, %664 : vector<13x128xf32>
        %666 = vector.broadcast %662 : f32 to vector<13x128xf32>
        %667 = arith.mulf %209, %666 : vector<13x128xf32>
        %668 = arith.addf %660, %667 : vector<13x128xf32>
        %669 = arith.index_cast %arg18 : i32 to index
        %c42_233 = arith.constant 42 : index
        %670 = memref.load %arg4[%669, %c42_233] : memref<16x54xf32, #tpu.memory_space<smem>>
        %671 = vector.broadcast %670 : f32 to vector<13x128xf32>
        %672 = arith.mulf %207, %671 : vector<13x128xf32>
        %673 = arith.addf %665, %672 : vector<13x128xf32>
        %674 = vector.broadcast %670 : f32 to vector<13x128xf32>
        %675 = arith.mulf %215, %674 : vector<13x128xf32>
        %676 = arith.addf %668, %675 : vector<13x128xf32>
        %677 = arith.index_cast %arg18 : i32 to index
        %c43 = arith.constant 43 : index
        %678 = memref.load %arg4[%677, %c43] : memref<16x54xf32, #tpu.memory_space<smem>>
        %679 = vector.broadcast %678 : f32 to vector<13x128xf32>
        %680 = arith.mulf %208, %679 : vector<13x128xf32>
        %681 = arith.addf %673, %680 : vector<13x128xf32>
        %682 = vector.broadcast %678 : f32 to vector<13x128xf32>
        %683 = arith.mulf %216, %682 : vector<13x128xf32>
        %684 = arith.addf %676, %683 : vector<13x128xf32>
        %685 = arith.index_cast %arg18 : i32 to index
        %c44 = arith.constant 44 : index
        %686 = memref.load %arg4[%685, %c44] : memref<16x54xf32, #tpu.memory_space<smem>>
        %687 = vector.broadcast %686 : f32 to vector<13x128xf32>
        %688 = arith.mulf %209, %687 : vector<13x128xf32>
        %689 = arith.addf %681, %688 : vector<13x128xf32>
        %690 = vector.broadcast %686 : f32 to vector<13x128xf32>
        %691 = arith.mulf %217, %690 : vector<13x128xf32>
        %692 = arith.addf %684, %691 : vector<13x128xf32>
        %693 = arith.index_cast %arg18 : i32 to index
        %c45 = arith.constant 45 : index
        %694 = memref.load %arg4[%693, %c45] : memref<16x54xf32, #tpu.memory_space<smem>>
        %695 = vector.broadcast %694 : f32 to vector<13x128xf32>
        %696 = arith.mulf %223, %695 : vector<13x128xf32>
        %697 = arith.addf %689, %696 : vector<13x128xf32>
        %698 = vector.broadcast %694 : f32 to vector<13x128xf32>
        %699 = arith.mulf %231, %698 : vector<13x128xf32>
        %700 = arith.addf %692, %699 : vector<13x128xf32>
        %701 = arith.index_cast %arg18 : i32 to index
        %c46 = arith.constant 46 : index
        %702 = memref.load %arg4[%701, %c46] : memref<16x54xf32, #tpu.memory_space<smem>>
        %703 = vector.broadcast %702 : f32 to vector<13x128xf32>
        %704 = arith.mulf %224, %703 : vector<13x128xf32>
        %705 = arith.addf %697, %704 : vector<13x128xf32>
        %706 = vector.broadcast %702 : f32 to vector<13x128xf32>
        %707 = arith.mulf %232, %706 : vector<13x128xf32>
        %708 = arith.addf %700, %707 : vector<13x128xf32>
        %709 = arith.index_cast %arg18 : i32 to index
        %c47 = arith.constant 47 : index
        %710 = memref.load %arg4[%709, %c47] : memref<16x54xf32, #tpu.memory_space<smem>>
        %711 = vector.broadcast %710 : f32 to vector<13x128xf32>
        %712 = arith.mulf %225, %711 : vector<13x128xf32>
        %713 = arith.addf %705, %712 : vector<13x128xf32>
        %714 = vector.broadcast %710 : f32 to vector<13x128xf32>
        %715 = arith.mulf %233, %714 : vector<13x128xf32>
        %716 = arith.addf %708, %715 : vector<13x128xf32>
        %717 = arith.index_cast %arg18 : i32 to index
        %c48_234 = arith.constant 48 : index
        %718 = memref.load %arg4[%717, %c48_234] : memref<16x54xf32, #tpu.memory_space<smem>>
        %719 = vector.broadcast %718 : f32 to vector<13x128xf32>
        %720 = arith.mulf %231, %719 : vector<13x128xf32>
        %721 = arith.addf %713, %720 : vector<13x128xf32>
        %722 = vector.broadcast %718 : f32 to vector<13x128xf32>
        %723 = arith.mulf %239, %722 : vector<13x128xf32>
        %724 = arith.addf %716, %723 : vector<13x128xf32>
        %725 = arith.index_cast %arg18 : i32 to index
        %c49 = arith.constant 49 : index
        %726 = memref.load %arg4[%725, %c49] : memref<16x54xf32, #tpu.memory_space<smem>>
        %727 = vector.broadcast %726 : f32 to vector<13x128xf32>
        %728 = arith.mulf %232, %727 : vector<13x128xf32>
        %729 = arith.addf %721, %728 : vector<13x128xf32>
        %730 = vector.broadcast %726 : f32 to vector<13x128xf32>
        %731 = arith.mulf %240, %730 : vector<13x128xf32>
        %732 = arith.addf %724, %731 : vector<13x128xf32>
        %733 = arith.index_cast %arg18 : i32 to index
        %c50 = arith.constant 50 : index
        %734 = memref.load %arg4[%733, %c50] : memref<16x54xf32, #tpu.memory_space<smem>>
        %735 = vector.broadcast %734 : f32 to vector<13x128xf32>
        %736 = arith.mulf %233, %735 : vector<13x128xf32>
        %737 = arith.addf %729, %736 : vector<13x128xf32>
        %738 = vector.broadcast %734 : f32 to vector<13x128xf32>
        %739 = arith.mulf %241, %738 : vector<13x128xf32>
        %740 = arith.addf %732, %739 : vector<13x128xf32>
        %741 = arith.index_cast %arg18 : i32 to index
        %c51 = arith.constant 51 : index
        %742 = memref.load %arg4[%741, %c51] : memref<16x54xf32, #tpu.memory_space<smem>>
        %743 = vector.broadcast %742 : f32 to vector<13x128xf32>
        %744 = arith.mulf %239, %743 : vector<13x128xf32>
        %745 = arith.addf %737, %744 : vector<13x128xf32>
        %746 = vector.broadcast %742 : f32 to vector<13x128xf32>
        %747 = arith.mulf %247, %746 : vector<13x128xf32>
        %748 = arith.addf %740, %747 : vector<13x128xf32>
        %749 = arith.index_cast %arg18 : i32 to index
        %c52 = arith.constant 52 : index
        %750 = memref.load %arg4[%749, %c52] : memref<16x54xf32, #tpu.memory_space<smem>>
        %751 = vector.broadcast %750 : f32 to vector<13x128xf32>
        %752 = arith.mulf %240, %751 : vector<13x128xf32>
        %753 = arith.addf %745, %752 : vector<13x128xf32>
        %754 = vector.broadcast %750 : f32 to vector<13x128xf32>
        %755 = arith.mulf %248, %754 : vector<13x128xf32>
        %756 = arith.addf %748, %755 : vector<13x128xf32>
        %757 = arith.index_cast %arg18 : i32 to index
        %c53 = arith.constant 53 : index
        %758 = memref.load %arg4[%757, %c53] : memref<16x54xf32, #tpu.memory_space<smem>>
        %759 = vector.broadcast %758 : f32 to vector<13x128xf32>
        %760 = arith.mulf %241, %759 : vector<13x128xf32>
        %761 = arith.addf %753, %760 : vector<13x128xf32>
        %762 = vector.broadcast %758 : f32 to vector<13x128xf32>
        %763 = arith.mulf %249, %762 : vector<13x128xf32>
        %764 = arith.addf %756, %763 : vector<13x128xf32>
        %765 = arith.maximumf %761, %764 : vector<13x128xf32>
        %c0_235 = arith.constant 0 : index
        %c0_236 = arith.constant 0 : index
        %766 = vector.load %arg16[%c0_235, %c0_236] : memref<32x128xf32, #tpu.memory_space<vmem>>, vector<13x128xf32>
        tpu.vector_store %arg16[%c0_235, %c0_236], %765 {strides = array<i32>} : memref<32x128xf32, #tpu.memory_space<vmem>>, vector<13x128xf32>,
        %c0_237 = arith.constant 0 : index
        %c0_238 = arith.constant 0 : index
        %767 = tpu.strided_load %arg16[%c0_237, %c0_238] {strides = array<i32: 2, 1>} : memref<32x128xf32, #tpu.memory_space<vmem>>, vector<6x128xf32>
        %c1_239 = arith.constant 1 : index
        %c0_240 = arith.constant 0 : index
        %768 = tpu.strided_load %arg16[%c1_239, %c0_240] {strides = array<i32: 2, 1>} : memref<32x128xf32, #tpu.memory_space<vmem>>, vector<6x128xf32>
        %769 = arith.maximumf %767, %768 : vector<6x128xf32>
        %770 = arith.index_cast %arg18 : i32 to index
        %771 = memref.load %arg5[%770] : memref<16xf32, #tpu.memory_space<smem>>
        %772 = vector.broadcast %771 : f32 to vector<6x128xf32>
        %773 = arith.addf %769, %772 : vector<6x128xf32>
        %cst_241 = arith.constant 0.000000e+00 : f32
        %774 = vector.broadcast %cst_241 : f32 to vector<6x128xf32>
        %775 = arith.maximumf %773, %774 : vector<6x128xf32>
        %776 = vector.shape_cast %775 : vector<6x128xf32> to vector<1x6x128xf32>
        %777 = arith.index_cast %arg18 : i32 to index
        %c0_242 = arith.constant 0 : index
        %c0_243 = arith.constant 0 : index
        %778 = vector.load %arg15[%777, %c0_242, %c0_243] : memref<16x6x128xf32, #tpu.memory_space<vmem>>, vector<1x6x128xf32>
        tpu.vector_store %arg15[%777, %c0_242, %c0_243], %776 {strides = array<i32>} : memref<16x6x128xf32, #tpu.memory_space<vmem>>, vector<1x6x128xf32>,
      }
      %c16_i32_153 = arith.constant 16 : i32
      %c0_154 = arith.constant 0 : index
      %c0_155 = arith.constant 0 : index
      %c0_156 = arith.constant 0 : index
      %251 = vector.load %arg15[%c0_154, %c0_155, %c0_156] : memref<16x6x128xf32, #tpu.memory_space<vmem>>, vector<1x6x128xf32>
      %252 = vector.shape_cast %251 : vector<1x6x128xf32> to vector<6x128xf32>
      %253 = vector.shape_cast %252 : vector<6x128xf32> to vector<1x6x128xf32>
      %254 = arith.index_cast %arg17 : i32 to index
      %c0_157 = arith.constant 0 : index
      %c0_158 = arith.constant 0 : index
      %255 = vector.load %arg14[%254, %c0_157, %c0_158] : memref<6x96x128xf32, #tpu.memory_space<vmem>>, vector<1x6x128xf32>
      tpu.vector_store %arg14[%254, %c0_157, %c0_158], %253 {strides = array<i32>} : memref<6x96x128xf32, #tpu.memory_space<vmem>>, vector<1x6x128xf32>,
      %c1_159 = arith.constant 1 : index
      %c0_160 = arith.constant 0 : index
      %c0_161 = arith.constant 0 : index
      %256 = vector.load %arg15[%c1_159, %c0_160, %c0_161] : memref<16x6x128xf32, #tpu.memory_space<vmem>>, vector<1x6x128xf32>
      %257 = vector.shape_cast %256 : vector<1x6x128xf32> to vector<6x128xf32>
      %258 = vector.shape_cast %257 : vector<6x128xf32> to vector<1x6x128xf32>
      %259 = arith.index_cast %arg17 : i32 to index
      %c6 = arith.constant 6 : index
      %c0_162 = arith.constant 0 : index
      %260 = vector.load %arg14[%259, %c6, %c0_162] : memref<6x96x128xf32, #tpu.memory_space<vmem>>, vector<1x6x128xf32>
      tpu.vector_store %arg14[%259, %c6, %c0_162], %258 {strides = array<i32>} : memref<6x96x128xf32, #tpu.memory_space<vmem>>, vector<1x6x128xf32>,
      %c2_163 = arith.constant 2 : index
      %c0_164 = arith.constant 0 : index
      %c0_165 = arith.constant 0 : index
      %261 = vector.load %arg15[%c2_163, %c0_164, %c0_165] : memref<16x6x128xf32, #tpu.memory_space<vmem>>, vector<1x6x128xf32>
      %262 = vector.shape_cast %261 : vector<1x6x128xf32> to vector<6x128xf32>
      %263 = vector.shape_cast %262 : vector<6x128xf32> to vector<1x6x128xf32>
      %264 = arith.index_cast %arg17 : i32 to index
      %c12 = arith.constant 12 : index
      %c0_166 = arith.constant 0 : index
      %265 = vector.load %arg14[%264, %c12, %c0_166] : memref<6x96x128xf32, #tpu.memory_space<vmem>>, vector<1x6x128xf32>
      tpu.vector_store %arg14[%264, %c12, %c0_166], %263 {strides = array<i32>} : memref<6x96x128xf32, #tpu.memory_space<vmem>>, vector<1x6x128xf32>,
      %c3_167 = arith.constant 3 : index
      %c0_168 = arith.constant 0 : index
      %c0_169 = arith.constant 0 : index
      %266 = vector.load %arg15[%c3_167, %c0_168, %c0_169] : memref<16x6x128xf32, #tpu.memory_space<vmem>>, vector<1x6x128xf32>
      %267 = vector.shape_cast %266 : vector<1x6x128xf32> to vector<6x128xf32>
      %268 = vector.shape_cast %267 : vector<6x128xf32> to vector<1x6x128xf32>
      %269 = arith.index_cast %arg17 : i32 to index
      %c18 = arith.constant 18 : index
      %c0_170 = arith.constant 0 : index
      %270 = vector.load %arg14[%269, %c18, %c0_170] : memref<6x96x128xf32, #tpu.memory_space<vmem>>, vector<1x6x128xf32>
      tpu.vector_store %arg14[%269, %c18, %c0_170], %268 {strides = array<i32>} : memref<6x96x128xf32, #tpu.memory_space<vmem>>, vector<1x6x128xf32>,
      %c4_171 = arith.constant 4 : index
      %c0_172 = arith.constant 0 : index
      %c0_173 = arith.constant 0 : index
      %271 = vector.load %arg15[%c4_171, %c0_172, %c0_173] : memref<16x6x128xf32, #tpu.memory_space<vmem>>, vector<1x6x128xf32>
      %272 = vector.shape_cast %271 : vector<1x6x128xf32> to vector<6x128xf32>
      %273 = vector.shape_cast %272 : vector<6x128xf32> to vector<1x6x128xf32>
      %274 = arith.index_cast %arg17 : i32 to index
      %c24 = arith.constant 24 : index
      %c0_174 = arith.constant 0 : index
      %275 = vector.load %arg14[%274, %c24, %c0_174] : memref<6x96x128xf32, #tpu.memory_space<vmem>>, vector<1x6x128xf32>
      tpu.vector_store %arg14[%274, %c24, %c0_174], %273 {strides = array<i32>} : memref<6x96x128xf32, #tpu.memory_space<vmem>>, vector<1x6x128xf32>,
      %c5_175 = arith.constant 5 : index
      %c0_176 = arith.constant 0 : index
      %c0_177 = arith.constant 0 : index
      %276 = vector.load %arg15[%c5_175, %c0_176, %c0_177] : memref<16x6x128xf32, #tpu.memory_space<vmem>>, vector<1x6x128xf32>
      %277 = vector.shape_cast %276 : vector<1x6x128xf32> to vector<6x128xf32>
      %278 = vector.shape_cast %277 : vector<6x128xf32> to vector<1x6x128xf32>
      %279 = arith.index_cast %arg17 : i32 to index
      %c30 = arith.constant 30 : index
      %c0_178 = arith.constant 0 : index
      %280 = vector.load %arg14[%279, %c30, %c0_178] : memref<6x96x128xf32, #tpu.memory_space<vmem>>, vector<1x6x128xf32>
      tpu.vector_store %arg14[%279, %c30, %c0_178], %278 {strides = array<i32>} : memref<6x96x128xf32, #tpu.memory_space<vmem>>, vector<1x6x128xf32>,
      %c6_179 = arith.constant 6 : index
      %c0_180 = arith.constant 0 : index
      %c0_181 = arith.constant 0 : index
      %281 = vector.load %arg15[%c6_179, %c0_180, %c0_181] : memref<16x6x128xf32, #tpu.memory_space<vmem>>, vector<1x6x128xf32>
      %282 = vector.shape_cast %281 : vector<1x6x128xf32> to vector<6x128xf32>
      %283 = vector.shape_cast %282 : vector<6x128xf32> to vector<1x6x128xf32>
      %284 = arith.index_cast %arg17 : i32 to index
      %c36 = arith.constant 36 : index
      %c0_182 = arith.constant 0 : index
      %285 = vector.load %arg14[%284, %c36, %c0_182] : memref<6x96x128xf32, #tpu.memory_space<vmem>>, vector<1x6x128xf32>
      tpu.vector_store %arg14[%284, %c36, %c0_182], %283 {strides = array<i32>} : memref<6x96x128xf32, #tpu.memory_space<vmem>>, vector<1x6x128xf32>,
      %c7 = arith.constant 7 : index
      %c0_183 = arith.constant 0 : index
      %c0_184 = arith.constant 0 : index
      %286 = vector.load %arg15[%c7, %c0_183, %c0_184] : memref<16x6x128xf32, #tpu.memory_space<vmem>>, vector<1x6x128xf32>
      %287 = vector.shape_cast %286 : vector<1x6x128xf32> to vector<6x128xf32>
      %288 = vector.shape_cast %287 : vector<6x128xf32> to vector<1x6x128xf32>
      %289 = arith.index_cast %arg17 : i32 to index
      %c42 = arith.constant 42 : index
      %c0_185 = arith.constant 0 : index
      %290 = vector.load %arg14[%289, %c42, %c0_185] : memref<6x96x128xf32, #tpu.memory_space<vmem>>, vector<1x6x128xf32>
      tpu.vector_store %arg14[%289, %c42, %c0_185], %288 {strides = array<i32>} : memref<6x96x128xf32, #tpu.memory_space<vmem>>, vector<1x6x128xf32>,
      %c8 = arith.constant 8 : index
      %c0_186 = arith.constant 0 : index
      %c0_187 = arith.constant 0 : index
      %291 = vector.load %arg15[%c8, %c0_186, %c0_187] : memref<16x6x128xf32, #tpu.memory_space<vmem>>, vector<1x6x128xf32>
      %292 = vector.shape_cast %291 : vector<1x6x128xf32> to vector<6x128xf32>
      %293 = vector.shape_cast %292 : vector<6x128xf32> to vector<1x6x128xf32>
      %294 = arith.index_cast %arg17 : i32 to index
      %c48 = arith.constant 48 : index
      %c0_188 = arith.constant 0 : index
      %295 = vector.load %arg14[%294, %c48, %c0_188] : memref<6x96x128xf32, #tpu.memory_space<vmem>>, vector<1x6x128xf32>
      tpu.vector_store %arg14[%294, %c48, %c0_188], %293 {strides = array<i32>} : memref<6x96x128xf32, #tpu.memory_space<vmem>>, vector<1x6x128xf32>,
      %c9 = arith.constant 9 : index
      %c0_189 = arith.constant 0 : index
      %c0_190 = arith.constant 0 : index
      %296 = vector.load %arg15[%c9, %c0_189, %c0_190] : memref<16x6x128xf32, #tpu.memory_space<vmem>>, vector<1x6x128xf32>
      %297 = vector.shape_cast %296 : vector<1x6x128xf32> to vector<6x128xf32>
      %298 = vector.shape_cast %297 : vector<6x128xf32> to vector<1x6x128xf32>
      %299 = arith.index_cast %arg17 : i32 to index
      %c54 = arith.constant 54 : index
      %c0_191 = arith.constant 0 : index
      %300 = vector.load %arg14[%299, %c54, %c0_191] : memref<6x96x128xf32, #tpu.memory_space<vmem>>, vector<1x6x128xf32>
      tpu.vector_store %arg14[%299, %c54, %c0_191], %298 {strides = array<i32>} : memref<6x96x128xf32, #tpu.memory_space<vmem>>, vector<1x6x128xf32>,
      %c10 = arith.constant 10 : index
      %c0_192 = arith.constant 0 : index
      %c0_193 = arith.constant 0 : index
      %301 = vector.load %arg15[%c10, %c0_192, %c0_193] : memref<16x6x128xf32, #tpu.memory_space<vmem>>, vector<1x6x128xf32>
      %302 = vector.shape_cast %301 : vector<1x6x128xf32> to vector<6x128xf32>
      %303 = vector.shape_cast %302 : vector<6x128xf32> to vector<1x6x128xf32>
      %304 = arith.index_cast %arg17 : i32 to index
      %c60 = arith.constant 60 : index
      %c0_194 = arith.constant 0 : index
      %305 = vector.load %arg14[%304, %c60, %c0_194] : memref<6x96x128xf32, #tpu.memory_space<vmem>>, vector<1x6x128xf32>
      tpu.vector_store %arg14[%304, %c60, %c0_194], %303 {strides = array<i32>} : memref<6x96x128xf32, #tpu.memory_space<vmem>>, vector<1x6x128xf32>,
      %c11 = arith.constant 11 : index
      %c0_195 = arith.constant 0 : index
      %c0_196 = arith.constant 0 : index
      %306 = vector.load %arg15[%c11, %c0_195, %c0_196] : memref<16x6x128xf32, #tpu.memory_space<vmem>>, vector<1x6x128xf32>
      %307 = vector.shape_cast %306 : vector<1x6x128xf32> to vector<6x128xf32>
      %308 = vector.shape_cast %307 : vector<6x128xf32> to vector<1x6x128xf32>
      %309 = arith.index_cast %arg17 : i32 to index
      %c66 = arith.constant 66 : index
      %c0_197 = arith.constant 0 : index
      %310 = vector.load %arg14[%309, %c66, %c0_197] : memref<6x96x128xf32, #tpu.memory_space<vmem>>, vector<1x6x128xf32>
      tpu.vector_store %arg14[%309, %c66, %c0_197], %308 {strides = array<i32>} : memref<6x96x128xf32, #tpu.memory_space<vmem>>, vector<1x6x128xf32>,
      %c12_198 = arith.constant 12 : index
      %c0_199 = arith.constant 0 : index
      %c0_200 = arith.constant 0 : index
      %311 = vector.load %arg15[%c12_198, %c0_199, %c0_200] : memref<16x6x128xf32, #tpu.memory_space<vmem>>, vector<1x6x128xf32>
      %312 = vector.shape_cast %311 : vector<1x6x128xf32> to vector<6x128xf32>
      %313 = vector.shape_cast %312 : vector<6x128xf32> to vector<1x6x128xf32>
      %314 = arith.index_cast %arg17 : i32 to index
      %c72 = arith.constant 72 : index
      %c0_201 = arith.constant 0 : index
      %315 = vector.load %arg14[%314, %c72, %c0_201] : memref<6x96x128xf32, #tpu.memory_space<vmem>>, vector<1x6x128xf32>
      tpu.vector_store %arg14[%314, %c72, %c0_201], %313 {strides = array<i32>} : memref<6x96x128xf32, #tpu.memory_space<vmem>>, vector<1x6x128xf32>,
      %c13 = arith.constant 13 : index
      %c0_202 = arith.constant 0 : index
      %c0_203 = arith.constant 0 : index
      %316 = vector.load %arg15[%c13, %c0_202, %c0_203] : memref<16x6x128xf32, #tpu.memory_space<vmem>>, vector<1x6x128xf32>
      %317 = vector.shape_cast %316 : vector<1x6x128xf32> to vector<6x128xf32>
      %318 = vector.shape_cast %317 : vector<6x128xf32> to vector<1x6x128xf32>
      %319 = arith.index_cast %arg17 : i32 to index
      %c78 = arith.constant 78 : index
      %c0_204 = arith.constant 0 : index
      %320 = vector.load %arg14[%319, %c78, %c0_204] : memref<6x96x128xf32, #tpu.memory_space<vmem>>, vector<1x6x128xf32>
      tpu.vector_store %arg14[%319, %c78, %c0_204], %318 {strides = array<i32>} : memref<6x96x128xf32, #tpu.memory_space<vmem>>, vector<1x6x128xf32>,
      %c14 = arith.constant 14 : index
      %c0_205 = arith.constant 0 : index
      %c0_206 = arith.constant 0 : index
      %321 = vector.load %arg15[%c14, %c0_205, %c0_206] : memref<16x6x128xf32, #tpu.memory_space<vmem>>, vector<1x6x128xf32>
      %322 = vector.shape_cast %321 : vector<1x6x128xf32> to vector<6x128xf32>
      %323 = vector.shape_cast %322 : vector<6x128xf32> to vector<1x6x128xf32>
      %324 = arith.index_cast %arg17 : i32 to index
      %c84 = arith.constant 84 : index
      %c0_207 = arith.constant 0 : index
      %325 = vector.load %arg14[%324, %c84, %c0_207] : memref<6x96x128xf32, #tpu.memory_space<vmem>>, vector<1x6x128xf32>
      tpu.vector_store %arg14[%324, %c84, %c0_207], %323 {strides = array<i32>} : memref<6x96x128xf32, #tpu.memory_space<vmem>>, vector<1x6x128xf32>,
      %c15 = arith.constant 15 : index
      %c0_208 = arith.constant 0 : index
      %c0_209 = arith.constant 0 : index
      %326 = vector.load %arg15[%c15, %c0_208, %c0_209] : memref<16x6x128xf32, #tpu.memory_space<vmem>>, vector<1x6x128xf32>
      %327 = vector.shape_cast %326 : vector<1x6x128xf32> to vector<6x128xf32>
      %328 = vector.shape_cast %327 : vector<6x128xf32> to vector<1x6x128xf32>
      %329 = arith.index_cast %arg17 : i32 to index
      %c90 = arith.constant 90 : index
      %c0_210 = arith.constant 0 : index
      %330 = vector.load %arg14[%329, %c90, %c0_210] : memref<6x96x128xf32, #tpu.memory_space<vmem>>, vector<1x6x128xf32>
      tpu.vector_store %arg14[%329, %c90, %c0_210], %328 {strides = array<i32>} : memref<6x96x128xf32, #tpu.memory_space<vmem>>, vector<1x6x128xf32>,
    }
    %c6_i32_3 = arith.constant 6 : i32
    %cst = arith.constant 0.000000e+00 : f32
    %2 = vector.broadcast %cst : f32 to vector<120x128xf32>
    %c0 = arith.constant 0 : index
    %c0_4 = arith.constant 0 : index
    %c0_5 = arith.constant 0 : index
    %3 = vector.load %arg6[%c0, %c0_4, %c0_5] : memref<6x120x96xf32, #tpu.memory_space<vmem>>, vector<1x120x96xf32>
    %4 = vector.shape_cast %3 : vector<1x120x96xf32> to vector<120x96xf32>
    %c0_6 = arith.constant 0 : index
    %c0_7 = arith.constant 0 : index
    %c0_8 = arith.constant 0 : index
    %5 = vector.load %arg14[%c0_6, %c0_7, %c0_8] : memref<6x96x128xf32, #tpu.memory_space<vmem>>, vector<1x96x128xf32>
    %6 = vector.shape_cast %5 : vector<1x96x128xf32> to vector<96x128xf32>
    %cst_9 = arith.constant dense<0.000000e+00> : vector<120x128xf32>
    %7 = tpu.matmul %4, %6, %cst_9 {dimension_numbers = #tpu.dot_dimension_numbers<[1], [0], [0], [1], [0, 0, 1, 1], [], []>} : vector<120x96xf32>, vector<96x128xf32>, vector<120x128xf32> -> vector<120x128xf32>
    %8 = arith.addf %2, %7 : vector<120x128xf32>
    %c1 = arith.constant 1 : index
    %c0_10 = arith.constant 0 : index
    %c0_11 = arith.constant 0 : index
    %9 = vector.load %arg6[%c1, %c0_10, %c0_11] : memref<6x120x96xf32, #tpu.memory_space<vmem>>, vector<1x120x96xf32>
    %10 = vector.shape_cast %9 : vector<1x120x96xf32> to vector<120x96xf32>
    %c1_12 = arith.constant 1 : index
    %c0_13 = arith.constant 0 : index
    %c0_14 = arith.constant 0 : index
    %11 = vector.load %arg14[%c1_12, %c0_13, %c0_14] : memref<6x96x128xf32, #tpu.memory_space<vmem>>, vector<1x96x128xf32>
    %12 = vector.shape_cast %11 : vector<1x96x128xf32> to vector<96x128xf32>
    %cst_15 = arith.constant dense<0.000000e+00> : vector<120x128xf32>
    %13 = tpu.matmul %10, %12, %cst_15 {dimension_numbers = #tpu.dot_dimension_numbers<[1], [0], [0], [1], [0, 0, 1, 1], [], []>} : vector<120x96xf32>, vector<96x128xf32>, vector<120x128xf32> -> vector<120x128xf32>
    %14 = arith.addf %8, %13 : vector<120x128xf32>
    %c2 = arith.constant 2 : index
    %c0_16 = arith.constant 0 : index
    %c0_17 = arith.constant 0 : index
    %15 = vector.load %arg6[%c2, %c0_16, %c0_17] : memref<6x120x96xf32, #tpu.memory_space<vmem>>, vector<1x120x96xf32>
    %16 = vector.shape_cast %15 : vector<1x120x96xf32> to vector<120x96xf32>
    %c2_18 = arith.constant 2 : index
    %c0_19 = arith.constant 0 : index
    %c0_20 = arith.constant 0 : index
    %17 = vector.load %arg14[%c2_18, %c0_19, %c0_20] : memref<6x96x128xf32, #tpu.memory_space<vmem>>, vector<1x96x128xf32>
    %18 = vector.shape_cast %17 : vector<1x96x128xf32> to vector<96x128xf32>
    %cst_21 = arith.constant dense<0.000000e+00> : vector<120x128xf32>
    %19 = tpu.matmul %16, %18, %cst_21 {dimension_numbers = #tpu.dot_dimension_numbers<[1], [0], [0], [1], [0, 0, 1, 1], [], []>} : vector<120x96xf32>, vector<96x128xf32>, vector<120x128xf32> -> vector<120x128xf32>
    %20 = arith.addf %14, %19 : vector<120x128xf32>
    %c3 = arith.constant 3 : index
    %c0_22 = arith.constant 0 : index
    %c0_23 = arith.constant 0 : index
    %21 = vector.load %arg6[%c3, %c0_22, %c0_23] : memref<6x120x96xf32, #tpu.memory_space<vmem>>, vector<1x120x96xf32>
    %22 = vector.shape_cast %21 : vector<1x120x96xf32> to vector<120x96xf32>
    %c3_24 = arith.constant 3 : index
    %c0_25 = arith.constant 0 : index
    %c0_26 = arith.constant 0 : index
    %23 = vector.load %arg14[%c3_24, %c0_25, %c0_26] : memref<6x96x128xf32, #tpu.memory_space<vmem>>, vector<1x96x128xf32>
    %24 = vector.shape_cast %23 : vector<1x96x128xf32> to vector<96x128xf32>
    %cst_27 = arith.constant dense<0.000000e+00> : vector<120x128xf32>
    %25 = tpu.matmul %22, %24, %cst_27 {dimension_numbers = #tpu.dot_dimension_numbers<[1], [0], [0], [1], [0, 0, 1, 1], [], []>} : vector<120x96xf32>, vector<96x128xf32>, vector<120x128xf32> -> vector<120x128xf32>
    %26 = arith.addf %20, %25 : vector<120x128xf32>
    %c4 = arith.constant 4 : index
    %c0_28 = arith.constant 0 : index
    %c0_29 = arith.constant 0 : index
    %27 = vector.load %arg6[%c4, %c0_28, %c0_29] : memref<6x120x96xf32, #tpu.memory_space<vmem>>, vector<1x120x96xf32>
    %28 = vector.shape_cast %27 : vector<1x120x96xf32> to vector<120x96xf32>
    %c4_30 = arith.constant 4 : index
    %c0_31 = arith.constant 0 : index
    %c0_32 = arith.constant 0 : index
    %29 = vector.load %arg14[%c4_30, %c0_31, %c0_32] : memref<6x96x128xf32, #tpu.memory_space<vmem>>, vector<1x96x128xf32>
    %30 = vector.shape_cast %29 : vector<1x96x128xf32> to vector<96x128xf32>
    %cst_33 = arith.constant dense<0.000000e+00> : vector<120x128xf32>
    %31 = tpu.matmul %28, %30, %cst_33 {dimension_numbers = #tpu.dot_dimension_numbers<[1], [0], [0], [1], [0, 0, 1, 1], [], []>} : vector<120x96xf32>, vector<96x128xf32>, vector<120x128xf32> -> vector<120x128xf32>
    %32 = arith.addf %26, %31 : vector<120x128xf32>
    %c5 = arith.constant 5 : index
    %c0_34 = arith.constant 0 : index
    %c0_35 = arith.constant 0 : index
    %33 = vector.load %arg6[%c5, %c0_34, %c0_35] : memref<6x120x96xf32, #tpu.memory_space<vmem>>, vector<1x120x96xf32>
    %34 = vector.shape_cast %33 : vector<1x120x96xf32> to vector<120x96xf32>
    %c5_36 = arith.constant 5 : index
    %c0_37 = arith.constant 0 : index
    %c0_38 = arith.constant 0 : index
    %35 = vector.load %arg14[%c5_36, %c0_37, %c0_38] : memref<6x96x128xf32, #tpu.memory_space<vmem>>, vector<1x96x128xf32>
    %36 = vector.shape_cast %35 : vector<1x96x128xf32> to vector<96x128xf32>
    %cst_39 = arith.constant dense<0.000000e+00> : vector<120x128xf32>
    %37 = tpu.matmul %34, %36, %cst_39 {dimension_numbers = #tpu.dot_dimension_numbers<[1], [0], [0], [1], [0, 0, 1, 1], [], []>} : vector<120x96xf32>, vector<96x128xf32>, vector<120x128xf32> -> vector<120x128xf32>
    %38 = arith.addf %32, %37 : vector<120x128xf32>
    %c0_40 = arith.constant 0 : index
    %c0_41 = arith.constant 0 : index
    %39 = vector.load %arg7[%c0_40, %c0_41] : memref<120x1xf32, #tpu.memory_space<vmem>>, vector<120x1xf32>
    %40 = vector.broadcast %39 : vector<120x1xf32> to vector<120x128xf32>
    %41 = arith.addf %38, %40 : vector<120x128xf32>
    %cst_42 = arith.constant 0.000000e+00 : f32
    %42 = vector.broadcast %cst_42 : f32 to vector<120x128xf32>
    %43 = arith.maximumf %41, %42 : vector<120x128xf32>
    %c0_43 = arith.constant 0 : index
    %c0_44 = arith.constant 0 : index
    %44 = vector.load %arg8[%c0_43, %c0_44] : memref<84x120xf32, #tpu.memory_space<vmem>>, vector<84x120xf32>
    %cst_45 = arith.constant dense<0.000000e+00> : vector<84x128xf32>
    %45 = tpu.matmul %44, %43, %cst_45 {dimension_numbers = #tpu.dot_dimension_numbers<[1], [0], [0], [1], [0, 0, 1, 1], [], []>} : vector<84x120xf32>, vector<120x128xf32>, vector<84x128xf32> -> vector<84x128xf32>
    %c0_46 = arith.constant 0 : index
    %c0_47 = arith.constant 0 : index
    %46 = vector.load %arg9[%c0_46, %c0_47] : memref<84x1xf32, #tpu.memory_space<vmem>>, vector<84x1xf32>
    %47 = vector.broadcast %46 : vector<84x1xf32> to vector<84x128xf32>
    %48 = arith.addf %45, %47 : vector<84x128xf32>
    %cst_48 = arith.constant 0.000000e+00 : f32
    %49 = vector.broadcast %cst_48 : f32 to vector<84x128xf32>
    %50 = arith.maximumf %48, %49 : vector<84x128xf32>
    %c0_49 = arith.constant 0 : index
    %c0_50 = arith.constant 0 : index
    %51 = vector.load %arg10[%c0_49, %c0_50] : memref<10x84xf32, #tpu.memory_space<vmem>>, vector<10x84xf32>
    %cst_51 = arith.constant dense<0.000000e+00> : vector<10x128xf32>
    %52 = tpu.matmul %51, %50, %cst_51 {dimension_numbers = #tpu.dot_dimension_numbers<[1], [0], [0], [1], [0, 0, 1, 1], [], []>} : vector<10x84xf32>, vector<84x128xf32>, vector<10x128xf32> -> vector<10x128xf32>
    %c0_52 = arith.constant 0 : index
    %c0_53 = arith.constant 0 : index
    %53 = vector.load %arg11[%c0_52, %c0_53] : memref<10x1xf32, #tpu.memory_space<vmem>>, vector<10x1xf32>
    %54 = vector.broadcast %53 : vector<10x1xf32> to vector<10x128xf32>
    %55 = arith.addf %52, %54 : vector<10x128xf32>
    %c0_54 = arith.constant 0 : index
    %c0_55 = arith.constant 0 : index
    %56 = vector.load %arg12[%c0_54, %c0_55] : memref<10x128xf32, #tpu.memory_space<vmem>>, vector<10x128xf32>
    tpu.vector_store %arg12[%c0_54, %c0_55], %55 {strides = array<i32>} : memref<10x128xf32, #tpu.memory_space<vmem>>, vector<10x128xf32>,
    return
  }
  func.func @transform_0(%arg0: i32) -> (i32, i32, i32, i32) {
    %c0_i32 = arith.constant 0 : i32
    %c0_i32_0 = arith.constant 0 : i32
    %c0_i32_1 = arith.constant 0 : i32
    %c0_i32_2 = arith.constant 0 : i32
    return %c0_i32, %c0_i32_0, %c0_i32_1, %arg0 : i32, i32, i32, i32
  }
  func.func @transform_1(%arg0: i32) -> (i32, i32) {
    %c0_i32 = arith.constant 0 : i32
    %c0_i32_0 = arith.constant 0 : i32
    %c0_i32_1 = arith.constant 0 : i32
    return %c0_i32, %c0_i32_0 : i32, i32
  }
  func.func @transform_2(%arg0: i32) -> i32 {
    %c0_i32 = arith.constant 0 : i32
    %c0_i32_0 = arith.constant 0 : i32
    return %c0_i32 : i32
  }
  func.func @transform_3(%arg0: i32) -> (i32, i32) {
    %c0_i32 = arith.constant 0 : i32
    %c0_i32_0 = arith.constant 0 : i32
    %c0_i32_1 = arith.constant 0 : i32
    return %c0_i32, %c0_i32_0 : i32, i32
  }
  func.func @transform_4(%arg0: i32) -> i32 {
    %c0_i32 = arith.constant 0 : i32
    %c0_i32_0 = arith.constant 0 : i32
    return %c0_i32 : i32
  }
  func.func @transform_5(%arg0: i32) -> (i32, i32, i32) {
    %c0_i32 = arith.constant 0 : i32
    %c0_i32_0 = arith.constant 0 : i32
    %c0_i32_1 = arith.constant 0 : i32
    %c0_i32_2 = arith.constant 0 : i32
    return %c0_i32, %c0_i32_0, %c0_i32_1 : i32, i32, i32
  }
  func.func @transform_6(%arg0: i32) -> (i32, i32) {
    %c0_i32 = arith.constant 0 : i32
    %c0_i32_0 = arith.constant 0 : i32
    %c0_i32_1 = arith.constant 0 : i32
    return %c0_i32, %c0_i32_0 : i32, i32
  }
  func.func @transform_7(%arg0: i32) -> (i32, i32) {
    %c0_i32 = arith.constant 0 : i32
    %c0_i32_0 = arith.constant 0 : i32
    %c0_i32_1 = arith.constant 0 : i32
    return %c0_i32, %c0_i32_0 : i32, i32
  }
  func.func @transform_8(%arg0: i32) -> (i32, i32) {
    %c0_i32 = arith.constant 0 : i32
    %c0_i32_0 = arith.constant 0 : i32
    %c0_i32_1 = arith.constant 0 : i32
    return %c0_i32, %c0_i32_0 : i32, i32
  }
  func.func @transform_9(%arg0: i32) -> (i32, i32) {
    %c0_i32 = arith.constant 0 : i32
    %c0_i32_0 = arith.constant 0 : i32
    %c0_i32_1 = arith.constant 0 : i32
    return %c0_i32, %c0_i32_0 : i32, i32
  }
  func.func @transform_10(%arg0: i32) -> (i32, i32) {
    %c0_i32 = arith.constant 0 : i32
    %c0_i32_0 = arith.constant 0 : i32
    %c0_i32_1 = arith.constant 0 : i32
    return %c0_i32, %c0_i32_0 : i32, i32
  }
  func.func @transform_11(%arg0: i32) -> (i32, i32) {
    %c0_i32 = arith.constant 0 : i32
    %c0_i32_0 = arith.constant 0 : i32
    return %c0_i32, %arg0 : i32, i32
  }
}

</mosaic_0001>

<llo_original>
// kernel: image_classification_forward.1
$region0: #{image_classification_forward.1}
  #allocation0 [shape = 'u32[]', space=smem, size = 0x4, offset = 0x4, fixed_abs, tag = 'smem constant byte address 0x4 - core index']
  #allocation1 [shape = 'u32[144,128]{1,0:T(1,128)}', space=vmem, size = 0x12000, scoped, tag = 'internal scratch']
  #allocation2 [shape = 'f32[6,15,15,128]{3,2,1,0:T(8,128)}', space=vmem, size = 0xb4000, scoped, tag = 'scratch operand']
  #allocation3 [shape = 'f32[6,96,128]{2,1,0:T(8,128)}', space=vmem, size = 0x48000, scoped, tag = 'scratch operand']
  #allocation4 [shape = 'f32[16,6,128]{2,1,0:T(8,128)}', space=vmem, size = 0x10000, scoped, tag = 'scratch operand']
  #allocation5 [shape = 'f32[32,128]{1,0:T(8,128)}', space=vmem, size = 0x4000, scoped, tag = 'scratch operand']
  %s0 = inlined_call_operand.vmem [shape: f32[3,32,32,128], index: 0, kind: input, shape index: {}]
  %s1 = inlined_call_operand.vmem [shape: f32[6,27], index: 1, kind: input, shape index: {}]
  %s2 = inlined_call_operand.vmem [shape: f32[6], index: 2, kind: input, shape index: {}]
  %s3 = inlined_call_operand.vmem [shape: f32[16,54], index: 3, kind: input, shape index: {}]
  %s4 = inlined_call_operand.vmem [shape: f32[16], index: 4, kind: input, shape index: {}]
  %s5 = inlined_call_operand.vmem [shape: f32[6,120,96], index: 5, kind: input, shape index: {}]
  %s6 = inlined_call_operand.vmem [shape: f32[120,1], index: 6, kind: input, shape index: {}]
  %s7 = inlined_call_operand.vmem [shape: f32[84,120], index: 7, kind: input, shape index: {}]
  %s8 = inlined_call_operand.vmem [shape: f32[84,1], index: 8, kind: input, shape index: {}]
  %s9 = inlined_call_operand.vmem [shape: f32[10,84], index: 9, kind: input, shape index: {}]
  %s10 = inlined_call_operand.vmem [shape: f32[10,1], index: 10, kind: input, shape index: {}]
  %s11 = inlined_call_operand.vmem [shape: f32[10,128], index: 11, kind: output, shape index: {}]
  %s12 = sld [smem:[#allocation0]]
  $region98: #{image_classification_forward.1} parent=0
    _
  %s14 = ssub.s32 1, %s12
  %s15 = scalar_select 0, %s14, %s12
  $region1: #{image_classification_forward.1} parent=0
    #allocation6 [shape = 'u8[4096]{0}', space=smem, size = 0x1000, scoped, tag = 'input window, operand 1, single buffered']
    #allocation7 [shape = 's32[1]{0}', space=sflag, size = 0x4, scoped, tag = 'scoped memory for image_classification_forward.1']
    #allocation8 [shape = 'u8[512]{0}', space=smem, size = 0x200, scoped, tag = 'input window, operand 2, single buffered']
    #allocation9 [shape = 's32[1]{0}', space=sflag, size = 0x4, scoped, tag = 'scoped memory for image_classification_forward.1']
    #allocation10 [shape = 'u8[8192]{0}', space=smem, size = 0x2000, scoped, tag = 'input window, operand 3, single buffered']
    #allocation11 [shape = 'u8[512]{0}', space=smem, size = 0x200, scoped, tag = 'input window, operand 4, single buffered']
    #allocation12 [shape = 's32[1]{0}', space=sflag, size = 0x4, scoped, tag = 'scoped memory for image_classification_forward.1']
    %16 = vsyncpa [#allocation7], 0
    %17 = vsyncpa [#allocation9], 0
    %18 = vsyncpa [#allocation12], 0
    // Predicated region
    $region2: #{image_classification_forward.1} parent=1 // pred_check
      _
    $region3: #{image_classification_forward.1} parent=1 // pred_check_branch
      %20 = sbr.rel (0) target = $region5
    $region4: #{image_classification_forward.1} parent=1 // pred_region
      _
    $region5: #{image_classification_forward.1} parent=1 // pred_fallthru
      _
    // Predicated region
    $region6: #{image_classification_forward.1} parent=1 // pred_check
      _
    $region7: #{image_classification_forward.1} parent=1 // pred_check_branch
      %22 = sbr.rel (0) target = $region9
    $region8: #{image_classification_forward.1} parent=1 // pred_region
      %s24 = ssub.s32 128, 128
      %25 = vsyncadd [#allocation7], %s24
      %s27 = sshll.u32 %s1, 4
      %s28 = int_to_ptr.vmem [resolvable:$true] %s27
      %30 = dma.vmem_to_smem %s28, 128, [#allocation6], [#allocation7]
    $region9: #{image_classification_forward.1} parent=1 // pred_fallthru
      _
    // Predicated region
    $region10: #{image_classification_forward.1} parent=1 // pred_check
      _
    $region11: #{image_classification_forward.1} parent=1 // pred_check_branch
      %32 = sbr.rel (0) target = $region13
    $region12: #{image_classification_forward.1} parent=1 // pred_region
      %s34 = ssub.s32 16, 16
      %35 = vsyncadd [#allocation9], %s34
      %s37 = sshll.u32 %s2, 4
      %s38 = int_to_ptr.vmem [resolvable:$true] %s37
      %40 = dma.vmem_to_smem %s38, 16, [#allocation8], [#allocation9]
    $region13: #{image_classification_forward.1} parent=1 // pred_fallthru
      _
    // Predicated region
    $region14: #{image_classification_forward.1} parent=1 // pred_check
      _
    $region15: #{image_classification_forward.1} parent=1 // pred_check_branch
      %42 = sbr.rel (0) target = $region17
    $region16: #{image_classification_forward.1} parent=1 // pred_region
      %s44 = ssub.s32 256, 256
      %45 = vsyncadd [#allocation9], %s44
      %s46 = sshll.u32 %s3, 4
      %s47 = int_to_ptr.vmem [resolvable:$true] %s46
      %52 = dma.vmem_to_smem %s47, 256, [#allocation10], [#allocation9], 128, 128, 8
    $region17: #{image_classification_forward.1} parent=1 // pred_fallthru
      _
    // Predicated region
    $region18: #{image_classification_forward.1} parent=1 // pred_check
      _
    $region19: #{image_classification_forward.1} parent=1 // pred_check_branch
      %54 = sbr.rel (0) target = $region21
    $region20: #{image_classification_forward.1} parent=1 // pred_region
      %s56 = ssub.s32 16, 16
      %57 = vsyncadd [#allocation12], %s56
      %s59 = sshll.u32 %s4, 4
      %s60 = int_to_ptr.vmem [resolvable:$true] %s59
      %62 = dma.vmem_to_smem %s60, 16, [#allocation11], [#allocation12]
    $region21: #{image_classification_forward.1} parent=1 // pred_fallthru
      _
    // Predicated region
    $region22: #{image_classification_forward.1} parent=1 // pred_check
      _
    $region23: #{image_classification_forward.1} parent=1 // pred_check_branch
      %64 = sbr.rel (0) target = $region25
    $region24: #{image_classification_forward.1} parent=1 // pred_region
      _
    $region25: #{image_classification_forward.1} parent=1 // pred_fallthru
      _
    // Predicated region
    $region26: #{image_classification_forward.1} parent=1 // pred_check
      _
    $region27: #{image_classification_forward.1} parent=1 // pred_check_branch
      %66 = sbr.rel (0) target = $region29
    $region28: #{image_classification_forward.1} parent=1 // pred_region
      _
    $region29: #{image_classification_forward.1} parent=1 // pred_fallthru
      _
    // Predicated region
    $region30: #{image_classification_forward.1} parent=1 // pred_check
      _
    $region31: #{image_classification_forward.1} parent=1 // pred_check_branch
      %68 = sbr.rel (0) target = $region33
    $region32: #{image_classification_forward.1} parent=1 // pred_region
      _
    $region33: #{image_classification_forward.1} parent=1 // pred_fallthru
      _
    // Predicated region
    $region34: #{image_classification_forward.1} parent=1 // pred_check
      _
    $region35: #{image_classification_forward.1} parent=1 // pred_check_branch
      %70 = sbr.rel (0) target = $region37
    $region36: #{image_classification_forward.1} parent=1 // pred_region
      _
    $region37: #{image_classification_forward.1} parent=1 // pred_fallthru
      _
    // Predicated region
    $region38: #{image_classification_forward.1} parent=1 // pred_check
      _
    $region39: #{image_classification_forward.1} parent=1 // pred_check_branch
      %72 = sbr.rel (0) target = $region41
    $region40: #{image_classification_forward.1} parent=1 // pred_region
      _
    $region41: #{image_classification_forward.1} parent=1 // pred_fallthru
      _
    // Predicated region
    $region42: #{image_classification_forward.1} parent=1 // pred_check
      _
    $region43: #{image_classification_forward.1} parent=1 // pred_check_branch
      %74 = sbr.rel (0) target = $region45
    $region44: #{image_classification_forward.1} parent=1 // pred_region
      _
    $region45: #{image_classification_forward.1} parent=1 // pred_fallthru
      _
    // Predicated region
    $region46: #{image_classification_forward.1} parent=1 // pred_check
      _
    $region47: #{image_classification_forward.1} parent=1 // pred_check_branch
      %76 = sbr.rel (0) target = $region49
    $region48: #{image_classification_forward.1} parent=1 // pred_region
      %77 = dma.done [#allocation7], 128
    $region49: #{image_classification_forward.1} parent=1 // pred_fallthru
      _
    // Predicated region
    $region50: #{image_classification_forward.1} parent=1 // pred_check
      _
    $region51: #{image_classification_forward.1} parent=1 // pred_check_branch
      %79 = sbr.rel (0) target = $region53
    $region52: #{image_classification_forward.1} parent=1 // pred_region
      %80 = dma.done [#allocation9], 16
    $region53: #{image_classification_forward.1} parent=1 // pred_fallthru
      _
    // Predicated region
    $region54: #{image_classification_forward.1} parent=1 // pred_check
      _
    $region55: #{image_classification_forward.1} parent=1 // pred_check_branch
      %82 = sbr.rel (0) target = $region57
    $region56: #{image_classification_forward.1} parent=1 // pred_region
      %83 = dma.done [#allocation9], 256
    $region57: #{image_classification_forward.1} parent=1 // pred_fallthru
      _
    // Predicated region
    $region58: #{image_classification_forward.1} parent=1 // pred_check
      _
    $region59: #{image_classification_forward.1} parent=1 // pred_check_branch
      %85 = sbr.rel (0) target = $region61
    $region60: #{image_classification_forward.1} parent=1 // pred_region
      %86 = dma.done [#allocation12], 16
    $region61: #{image_classification_forward.1} parent=1 // pred_fallthru
      _
    %87 = sfence
    loop: start=0, step=1, limit=15
    $region62: #{image_classification_forward.1} parent=1 // loop_pre_header
      _
    $region63: #{image_classification_forward.1} parent=1 // loop_header
      %s89 = sphi 0, %s93
      %p90 = scmp.ge.s32.totalorder %s89, 15
    $region64: #{image_classification_forward.1} parent=1 // loop_header_branch
      %92 = sbr.rel (%p90) target = $region68
    $region65: #{image_classification_forward.1} parent=1 // loop_body
      %s94 = smul.u32 %s89, 2
      %s95 = smul.u32 %s94, 32
      %s96 = scalar_lea.vmem %s0, %s95
      %v97 = vld [vmem:[%s96] sm:$0xff]
      %v98 = vld [vmem:[%s96 + $0x8] sm:$0xff]
      %v99 = vld [vmem:[%s96 + $0x10] sm:$0xff]
      %v100 = vld [vmem:[%s96 + $0x18] sm:$0xff]
      %s101 = sadd.s32 %s94, 1
      %s102 = smul.u32 %s101, 32
      %s103 = scalar_lea.vmem %s0, %s102
      %v104 = vld [vmem:[%s103] sm:$0xff]
      %v105 = vld [vmem:[%s103 + $0x8] sm:$0xff]
      %v106 = vld [vmem:[%s103 + $0x10] sm:$0xff]
      %v107 = vld [vmem:[%s103 + $0x18] sm:$0xff]
      %s108 = sadd.s32 %s94, 2
      %s109 = smul.u32 %s108, 32
      %s110 = scalar_lea.vmem %s0, %s109
      %v111 = vld [vmem:[%s110] sm:$0xff]
      %v112 = vld [vmem:[%s110 + $0x8] sm:$0xff]
      %v113 = vld [vmem:[%s110 + $0x10] sm:$0xff]
      %v114 = vld [vmem:[%s110 + $0x18] sm:$0xff]
      %s115 = sadd.s32 %s94, 3
      %s116 = smul.u32 %s115, 32
      %s117 = scalar_lea.vmem %s0, %s116
      %v118 = vld [vmem:[%s117] sm:$0xff]
      %v119 = vld [vmem:[%s117 + $0x8] sm:$0xff]
      %v120 = vld [vmem:[%s117 + $0x10] sm:$0xff]
      %v121 = vld [vmem:[%s117 + $0x18] sm:$0xff]
      %s122 = sadd.s32 %s95, 1024
      %s123 = scalar_lea.vmem %s0, %s122
      %v124 = vld [vmem:[%s123] sm:$0xff]
      %v125 = vld [vmem:[%s123 + $0x8] sm:$0xff]
      %v126 = vld [vmem:[%s123 + $0x10] sm:$0xff]
      %v127 = vld [vmem:[%s123 + $0x18] sm:$0xff]
      %s128 = sadd.s32 %s102, 1024
      %s129 = scalar_lea.vmem %s0, %s128
      %v130 = vld [vmem:[%s129] sm:$0xff]
      %v131 = vld [vmem:[%s129 + $0x8] sm:$0xff]
      %v132 = vld [vmem:[%s129 + $0x10] sm:$0xff]
      %v133 = vld [vmem:[%s129 + $0x18] sm:$0xff]
      %s134 = sadd.s32 %s109, 1024
      %s135 = scalar_lea.vmem %s0, %s134
      %v136 = vld [vmem:[%s135] sm:$0xff]
      %v137 = vld [vmem:[%s135 + $0x8] sm:$0xff]
      %v138 = vld [vmem:[%s135 + $0x10] sm:$0xff]
      %v139 = vld [vmem:[%s135 + $0x18] sm:$0xff]
      %s140 = sadd.s32 %s116, 1024
      %s141 = scalar_lea.vmem %s0, %s140
      %v142 = vld [vmem:[%s141] sm:$0xff]
      %v143 = vld [vmem:[%s141 + $0x8] sm:$0xff]
      %v144 = vld [vmem:[%s141 + $0x10] sm:$0xff]
      %v145 = vld [vmem:[%s141 + $0x18] sm:$0xff]
      %s146 = sadd.s32 %s95, 2048
      %s147 = scalar_lea.vmem %s0, %s146
      %v148 = vld [vmem:[%s147] sm:$0xff]
      %v149 = vld [vmem:[%s147 + $0x8] sm:$0xff]
      %v150 = vld [vmem:[%s147 + $0x10] sm:$0xff]
      %v151 = vld [vmem:[%s147 + $0x18] sm:$0xff]
      %s152 = sadd.s32 %s102, 2048
      %s153 = scalar_lea.vmem %s0, %s152
      %v154 = vld [vmem:[%s153] sm:$0xff]
      %v155 = vld [vmem:[%s153 + $0x8] sm:$0xff]
      %v156 = vld [vmem:[%s153 + $0x10] sm:$0xff]
      %v157 = vld [vmem:[%s153 + $0x18] sm:$0xff]
      %s158 = sadd.s32 %s109, 2048
      %s159 = scalar_lea.vmem %s0, %s158
      %v160 = vld [vmem:[%s159] sm:$0xff]
      %v161 = vld [vmem:[%s159 + $0x8] sm:$0xff]
      %v162 = vld [vmem:[%s159 + $0x10] sm:$0xff]
      %v163 = vld [vmem:[%s159 + $0x18] sm:$0xff]
      %s164 = sadd.s32 %s116, 2048
      %s165 = scalar_lea.vmem %s0, %s164
      %v166 = vld [vmem:[%s165] sm:$0xff]
      %v167 = vld [vmem:[%s165 + $0x8] sm:$0xff]
      %v168 = vld [vmem:[%s165 + $0x10] sm:$0xff]
      %v169 = vld [vmem:[%s165 + $0x18] sm:$0xff]
      loop: start=0, step=1, limit=6
      $region69: #{image_classification_forward.1} parent=65 // loop_pre_header
        _
      $region70: #{image_classification_forward.1} parent=65 // loop_header
        %s171 = sphi 0, %s175
        %p172 = scmp.ge.s32.totalorder %s171, 6
      $region71: #{image_classification_forward.1} parent=65 // loop_header_branch
        %174 = sbr.rel (%p172) target = $region75
      $region72: #{image_classification_forward.1} parent=65 // loop_body
        %s176 = smul.u32 %s171, 128
        %s177 = sld [smem:[#allocation6 + %s176]]
        %v178 = vstv %s177
        %v179 = vmul.f32 %v97, %v178
        %v180 = vmul.f32 %v98, %v178
        %v181 = vmul.f32 %v99, %v178
        %v182 = vmul.f32 %v100, %v178
        %v183 = vadd.f32 %v179, 0.0
        %v184 = vadd.f32 %v180, 0.0
        %v185 = vadd.f32 %v181, 0.0
        %v186 = vadd.f32 %v182, 0.0
        %v187 = vmul.f32 %v104, %v178
        %v188 = vmul.f32 %v105, %v178
        %v189 = vmul.f32 %v106, %v178
        %v190 = vmul.f32 %v107, %v178
        %v191 = vadd.f32 %v187, 0.0
        %v192 = vadd.f32 %v188, 0.0
        %v193 = vadd.f32 %v189, 0.0
        %v194 = vadd.f32 %v190, 0.0
        %s195 = sadd.s32 %s176, 1
        %s196 = sld [smem:[#allocation6 + %s195]]
        %v197 = vstv %s196
        %v198 = vmul.f32 %v97, %v197
        %v199 = vmul.f32 %v98, %v197
        %v200 = vmul.f32 %v99, %v197
        %v201 = vmul.f32 %v100, %v197
        %vm206 = vcmask 1046528
        %v207 = vrot.slane %v198, 1
        %v208 = vrot.slane %v199, 1
        %v209 = vsel %vm206, %v207, %v208
        %v210 = vrot.slane %v200, 1
        %v211 = vsel %vm206, %v208, %v210
        %v212 = vrot.slane %v201, 1
        %v213 = vsel %vm206, %v210, %v212
        %v218 = vadd.f32 %v183, %v209
        %v219 = vadd.f32 %v184, %v211
        %v220 = vadd.f32 %v185, %v213
        %v221 = vadd.f32 %v186, %v212
        %v222 = vmul.f32 %v104, %v197
        %v223 = vmul.f32 %v105, %v197
        %v224 = vmul.f32 %v106, %v197
        %v225 = vmul.f32 %v107, %v197
        %v230 = vrot.slane %v222, 1
        %v231 = vrot.slane %v223, 1
        %v232 = vsel %vm206, %v230, %v231
        %v233 = vrot.slane %v224, 1
        %v234 = vsel %vm206, %v231, %v233
        %v235 = vrot.slane %v225, 1
        %v236 = vsel %vm206, %v233, %v235
        %v241 = vadd.f32 %v191, %v232
        %v242 = vadd.f32 %v192, %v234
        %v243 = vadd.f32 %v193, %v236
        %v244 = vadd.f32 %v194, %v235
        %s245 = sadd.s32 %s176, 2
        %s246 = sld [smem:[#allocation6 + %s245]]
        %v247 = vstv %s246
        %v248 = vmul.f32 %v97, %v247
        %v249 = vmul.f32 %v98, %v247
        %v250 = vmul.f32 %v99, %v247
        %v251 = vmul.f32 %v100, %v247
        %vm256 = vcmask 1045504
        %v257 = vrot.slane %v248, 2
        %v258 = vrot.slane %v249, 2
        %v259 = vsel %vm256, %v257, %v258
        %v260 = vrot.slane %v250, 2
        %v261 = vsel %vm256, %v258, %v260
        %v262 = vrot.slane %v251, 2
        %v263 = vsel %vm256, %v260, %v262
        %v268 = vadd.f32 %v218, %v259
        %v269 = vadd.f32 %v219, %v261
        %v270 = vadd.f32 %v220, %v263
        %v271 = vadd.f32 %v221, %v262
        %v272 = vmul.f32 %v104, %v247
        %v273 = vmul.f32 %v105, %v247
        %v274 = vmul.f32 %v106, %v247
        %v275 = vmul.f32 %v107, %v247
        %v280 = vrot.slane %v272, 2
        %v281 = vrot.slane %v273, 2
        %v282 = vsel %vm256, %v280, %v281
        %v283 = vrot.slane %v274, 2
        %v284 = vsel %vm256, %v281, %v283
        %v285 = vrot.slane %v275, 2
        %v286 = vsel %vm256, %v283, %v285
        %v291 = vadd.f32 %v241, %v282
        %v292 = vadd.f32 %v242, %v284
        %v293 = vadd.f32 %v243, %v286
        %v294 = vadd.f32 %v244, %v285
        %s295 = sadd.s32 %s176, 3
        %s296 = sld [smem:[#allocation6 + %s295]]
        %v297 = vstv %s296
        %v298 = vmul.f32 %v104, %v297
        %v299 = vmul.f32 %v105, %v297
        %v300 = vmul.f32 %v106, %v297
        %v301 = vmul.f32 %v107, %v297
        %v302 = vadd.f32 %v268, %v298
        %v303 = vadd.f32 %v269, %v299
        %v304 = vadd.f32 %v270, %v300
        %v305 = vadd.f32 %v271, %v301
        %v306 = vmul.f32 %v111, %v297
        %v307 = vmul.f32 %v112, %v297
        %v308 = vmul.f32 %v113, %v297
        %v309 = vmul.f32 %v114, %v297
        %v310 = vadd.f32 %v291, %v306
        %v311 = vadd.f32 %v292, %v307
        %v312 = vadd.f32 %v293, %v308
        %v313 = vadd.f32 %v294, %v309
        %s314 = sadd.s32 %s176, 4
        %s315 = sld [smem:[#allocation6 + %s314]]
        %v316 = vstv %s315
        %v317 = vmul.f32 %v104, %v316
        %v318 = vmul.f32 %v105, %v316
        %v319 = vmul.f32 %v106, %v316
        %v320 = vmul.f32 %v107, %v316
        %v325 = vrot.slane %v317, 1
        %v326 = vrot.slane %v318, 1
        %v327 = vsel %vm206, %v325, %v326
        %v328 = vrot.slane %v319, 1
        %v329 = vsel %vm206, %v326, %v328
        %v330 = vrot.slane %v320, 1
        %v331 = vsel %vm206, %v328, %v330
        %v336 = vadd.f32 %v302, %v327
        %v337 = vadd.f32 %v303, %v329
        %v338 = vadd.f32 %v304, %v331
        %v339 = vadd.f32 %v305, %v330
        %v340 = vmul.f32 %v111, %v316
        %v341 = vmul.f32 %v112, %v316
        %v342 = vmul.f32 %v113, %v316
        %v343 = vmul.f32 %v114, %v316
        %v348 = vrot.slane %v340, 1
        %v349 = vrot.slane %v341, 1
        %v350 = vsel %vm206, %v348, %v349
        %v351 = vrot.slane %v342, 1
        %v352 = vsel %vm206, %v349, %v351
        %v353 = vrot.slane %v343, 1
        %v354 = vsel %vm206, %v351, %v353
        %v359 = vadd.f32 %v310, %v350
        %v360 = vadd.f32 %v311, %v352
        %v361 = vadd.f32 %v312, %v354
        %v362 = vadd.f32 %v313, %v353
        %s363 = sadd.s32 %s176, 5
        %s364 = sld [smem:[#allocation6 + %s363]]
        %v365 = vstv %s364
        %v366 = vmul.f32 %v104, %v365
        %v367 = vmul.f32 %v105, %v365
        %v368 = vmul.f32 %v106, %v365
        %v369 = vmul.f32 %v107, %v365
        %v374 = vrot.slane %v366, 2
        %v375 = vrot.slane %v367, 2
        %v376 = vsel %vm256, %v374, %v375
        %v377 = vrot.slane %v368, 2
        %v378 = vsel %vm256, %v375, %v377
        %v379 = vrot.slane %v369, 2
        %v380 = vsel %vm256, %v377, %v379
        %v385 = vadd.f32 %v336, %v376
        %v386 = vadd.f32 %v337, %v378
        %v387 = vadd.f32 %v338, %v380
        %v388 = vadd.f32 %v339, %v379
        %v389 = vmul.f32 %v111, %v365
        %v390 = vmul.f32 %v112, %v365
        %v391 = vmul.f32 %v113, %v365
        %v392 = vmul.f32 %v114, %v365
        %v397 = vrot.slane %v389, 2
        %v398 = vrot.slane %v390, 2
        %v399 = vsel %vm256, %v397, %v398
        %v400 = vrot.slane %v391, 2
        %v401 = vsel %vm256, %v398, %v400
        %v402 = vrot.slane %v392, 2
        %v403 = vsel %vm256, %v400, %v402
        %v408 = vadd.f32 %v359, %v399
        %v409 = vadd.f32 %v360, %v401
        %v410 = vadd.f32 %v361, %v403
        %v411 = vadd.f32 %v362, %v402
        %s412 = sadd.s32 %s176, 6
        %s413 = sld [smem:[#allocation6 + %s412]]
        %v414 = vstv %s413
        %v415 = vmul.f32 %v111, %v414
        %v416 = vmul.f32 %v112, %v414
        %v417 = vmul.f32 %v113, %v414
        %v418 = vmul.f32 %v114, %v414
        %v419 = vadd.f32 %v385, %v415
        %v420 = vadd.f32 %v386, %v416
        %v421 = vadd.f32 %v387, %v417
        %v422 = vadd.f32 %v388, %v418
        %v423 = vmul.f32 %v118, %v414
        %v424 = vmul.f32 %v119, %v414
        %v425 = vmul.f32 %v120, %v414
        %v426 = vmul.f32 %v121, %v414
        %v427 = vadd.f32 %v408, %v423
        %v428 = vadd.f32 %v409, %v424
        %v429 = vadd.f32 %v410, %v425
        %v430 = vadd.f32 %v411, %v426
        %s431 = sadd.s32 %s176, 7
        %s432 = sld [smem:[#allocation6 + %s431]]
        %v433 = vstv %s432
        %v434 = vmul.f32 %v111, %v433
        %v435 = vmul.f32 %v112, %v433
        %v436 = vmul.f32 %v113, %v433
        %v437 = vmul.f32 %v114, %v433
        %v442 = vrot.slane %v434, 1
        %v443 = vrot.slane %v435, 1
        %v444 = vsel %vm206, %v442, %v443
        %v445 = vrot.slane %v436, 1
        %v446 = vsel %vm206, %v443, %v445
        %v447 = vrot.slane %v437, 1
        %v448 = vsel %vm206, %v445, %v447
        %v453 = vadd.f32 %v419, %v444
        %v454 = vadd.f32 %v420, %v446
        %v455 = vadd.f32 %v421, %v448
        %v456 = vadd.f32 %v422, %v447
        %v457 = vmul.f32 %v118, %v433
        %v458 = vmul.f32 %v119, %v433
        %v459 = vmul.f32 %v120, %v433
        %v460 = vmul.f32 %v121, %v433
        %v465 = vrot.slane %v457, 1
        %v466 = vrot.slane %v458, 1
        %v467 = vsel %vm206, %v465, %v466
        %v468 = vrot.slane %v459, 1
        %v469 = vsel %vm206, %v466, %v468
        %v470 = vrot.slane %v460, 1
        %v471 = vsel %vm206, %v468, %v470
        %v476 = vadd.f32 %v427, %v467
        %v477 = vadd.f32 %v428, %v469
        %v478 = vadd.f32 %v429, %v471
        %v479 = vadd.f32 %v430, %v470
        %s480 = sadd.s32 %s176, 8
        %s481 = sld [smem:[#allocation6 + %s480]]
        %v482 = vstv %s481
        %v483 = vmul.f32 %v111, %v482
        %v484 = vmul.f32 %v112, %v482
        %v485 = vmul.f32 %v113, %v482
        %v486 = vmul.f32 %v114, %v482
        %v491 = vrot.slane %v483, 2
        %v492 = vrot.slane %v484, 2
        %v493 = vsel %vm256, %v491, %v492
        %v494 = vrot.slane %v485, 2
        %v495 = vsel %vm256, %v492, %v494
        %v496 = vrot.slane %v486, 2
        %v497 = vsel %vm256, %v494, %v496
        %v502 = vadd.f32 %v453, %v493
        %v503 = vadd.f32 %v454, %v495
        %v504 = vadd.f32 %v455, %v497
        %v505 = vadd.f32 %v456, %v496
        %v506 = vmul.f32 %v118, %v482
        %v507 = vmul.f32 %v119, %v482
        %v508 = vmul.f32 %v120, %v482
        %v509 = vmul.f32 %v121, %v482
        %v514 = vrot.slane %v506, 2
        %v515 = vrot.slane %v507, 2
        %v516 = vsel %vm256, %v514, %v515
        %v517 = vrot.slane %v508, 2
        %v518 = vsel %vm256, %v515, %v517
        %v519 = vrot.slane %v509, 2
        %v520 = vsel %vm256, %v517, %v519
        %v525 = vadd.f32 %v476, %v516
        %v526 = vadd.f32 %v477, %v518
        %v527 = vadd.f32 %v478, %v520
        %v528 = vadd.f32 %v479, %v519
        %s529 = sadd.s32 %s176, 9
        %s530 = sld [smem:[#allocation6 + %s529]]
        %v531 = vstv %s530
        %v532 = vmul.f32 %v124, %v531
        %v533 = vmul.f32 %v125, %v531
        %v534 = vmul.f32 %v126, %v531
        %v535 = vmul.f32 %v127, %v531
        %v536 = vadd.f32 %v502, %v532
        %v537 = vadd.f32 %v503, %v533
        %v538 = vadd.f32 %v504, %v534
        %v539 = vadd.f32 %v505, %v535
        %v540 = vmul.f32 %v130, %v531
        %v541 = vmul.f32 %v131, %v531
        %v542 = vmul.f32 %v132, %v531
        %v543 = vmul.f32 %v133, %v531
        %v544 = vadd.f32 %v525, %v540
        %v545 = vadd.f32 %v526, %v541
        %v546 = vadd.f32 %v527, %v542
        %v547 = vadd.f32 %v528, %v543
        %s548 = sadd.s32 %s176, 10
        %s549 = sld [smem:[#allocation6 + %s548]]
        %v550 = vstv %s549
        %v551 = vmul.f32 %v124, %v550
        %v552 = vmul.f32 %v125, %v550
        %v553 = vmul.f32 %v126, %v550
        %v554 = vmul.f32 %v127, %v550
        %v559 = vrot.slane %v551, 1
        %v560 = vrot.slane %v552, 1
        %v561 = vsel %vm206, %v559, %v560
        %v562 = vrot.slane %v553, 1
        %v563 = vsel %vm206, %v560, %v562
        %v564 = vrot.slane %v554, 1
        %v565 = vsel %vm206, %v562, %v564
        %v570 = vadd.f32 %v536, %v561
        %v571 = vadd.f32 %v537, %v563
        %v572 = vadd.f32 %v538, %v565
        %v573 = vadd.f32 %v539, %v564
        %v574 = vmul.f32 %v130, %v550
        %v575 = vmul.f32 %v131, %v550
        %v576 = vmul.f32 %v132, %v550
        %v577 = vmul.f32 %v133, %v550
        %v582 = vrot.slane %v574, 1
        %v583 = vrot.slane %v575, 1
        %v584 = vsel %vm206, %v582, %v583
        %v585 = vrot.slane %v576, 1
        %v586 = vsel %vm206, %v583, %v585
        %v587 = vrot.slane %v577, 1
        %v588 = vsel %vm206, %v585, %v587
        %v593 = vadd.f32 %v544, %v584
        %v594 = vadd.f32 %v545, %v586
        %v595 = vadd.f32 %v546, %v588
        %v596 = vadd.f32 %v547, %v587
        %s597 = sadd.s32 %s176, 11
        %s598 = sld [smem:[#allocation6 + %s597]]
        %v599 = vstv %s598
        %v600 = vmul.f32 %v124, %v599
        %v601 = vmul.f32 %v125, %v599
        %v602 = vmul.f32 %v126, %v599
        %v603 = vmul.f32 %v127, %v599
        %v608 = vrot.slane %v600, 2
        %v609 = vrot.slane %v601, 2
        %v610 = vsel %vm256, %v608, %v609
        %v611 = vrot.slane %v602, 2
        %v612 = vsel %vm256, %v609, %v611
        %v613 = vrot.slane %v603, 2
        %v614 = vsel %vm256, %v611, %v613
        %v619 = vadd.f32 %v570, %v610
        %v620 = vadd.f32 %v571, %v612
        %v621 = vadd.f32 %v572, %v614
        %v622 = vadd.f32 %v573, %v613
        %v623 = vmul.f32 %v130, %v599
        %v624 = vmul.f32 %v131, %v599
        %v625 = vmul.f32 %v132, %v599
        %v626 = vmul.f32 %v133, %v599
        %v631 = vrot.slane %v623, 2
        %v632 = vrot.slane %v624, 2
        %v633 = vsel %vm256, %v631, %v632
        %v634 = vrot.slane %v625, 2
        %v635 = vsel %vm256, %v632, %v634
        %v636 = vrot.slane %v626, 2
        %v637 = vsel %vm256, %v634, %v636
        %v642 = vadd.f32 %v593, %v633
        %v643 = vadd.f32 %v594, %v635
        %v644 = vadd.f32 %v595, %v637
        %v645 = vadd.f32 %v596, %v636
        %s646 = sadd.s32 %s176, 12
        %s647 = sld [smem:[#allocation6 + %s646]]
        %v648 = vstv %s647
        %v649 = vmul.f32 %v130, %v648
        %v650 = vmul.f32 %v131, %v648
        %v651 = vmul.f32 %v132, %v648
        %v652 = vmul.f32 %v133, %v648
        %v653 = vadd.f32 %v619, %v649
        %v654 = vadd.f32 %v620, %v650
        %v655 = vadd.f32 %v621, %v651
        %v656 = vadd.f32 %v622, %v652
        %v657 = vmul.f32 %v136, %v648
        %v658 = vmul.f32 %v137, %v648
        %v659 = vmul.f32 %v138, %v648
        %v660 = vmul.f32 %v139, %v648
        %v661 = vadd.f32 %v642, %v657
        %v662 = vadd.f32 %v643, %v658
        %v663 = vadd.f32 %v644, %v659
        %v664 = vadd.f32 %v645, %v660
        %s665 = sadd.s32 %s176, 13
        %s666 = sld [smem:[#allocation6 + %s665]]
        %v667 = vstv %s666
        %v668 = vmul.f32 %v130, %v667
        %v669 = vmul.f32 %v131, %v667
        %v670 = vmul.f32 %v132, %v667
        %v671 = vmul.f32 %v133, %v667
        %v676 = vrot.slane %v668, 1
        %v677 = vrot.slane %v669, 1
        %v678 = vsel %vm206, %v676, %v677
        %v679 = vrot.slane %v670, 1
        %v680 = vsel %vm206, %v677, %v679
        %v681 = vrot.slane %v671, 1
        %v682 = vsel %vm206, %v679, %v681
        %v687 = vadd.f32 %v653, %v678
        %v688 = vadd.f32 %v654, %v680
        %v689 = vadd.f32 %v655, %v682
        %v690 = vadd.f32 %v656, %v681
        %v691 = vmul.f32 %v136, %v667
        %v692 = vmul.f32 %v137, %v667
        %v693 = vmul.f32 %v138, %v667
        %v694 = vmul.f32 %v139, %v667
        %v699 = vrot.slane %v691, 1
        %v700 = vrot.slane %v692, 1
        %v701 = vsel %vm206, %v699, %v700
        %v702 = vrot.slane %v693, 1
        %v703 = vsel %vm206, %v700, %v702
        %v704 = vrot.slane %v694, 1
        %v705 = vsel %vm206, %v702, %v704
        %v710 = vadd.f32 %v661, %v701
        %v711 = vadd.f32 %v662, %v703
        %v712 = vadd.f32 %v663, %v705
        %v713 = vadd.f32 %v664, %v704
        %s714 = sadd.s32 %s176, 14
        %s715 = sld [smem:[#allocation6 + %s714]]
        %v716 = vstv %s715
        %v717 = vmul.f32 %v130, %v716
        %v718 = vmul.f32 %v131, %v716
        %v719 = vmul.f32 %v132, %v716
        %v720 = vmul.f32 %v133, %v716
        %v725 = vrot.slane %v717, 2
        %v726 = vrot.slane %v718, 2
        %v727 = vsel %vm256, %v725, %v726
        %v728 = vrot.slane %v719, 2
        %v729 = vsel %vm256, %v726, %v728
        %v730 = vrot.slane %v720, 2
        %v731 = vsel %vm256, %v728, %v730
        %v736 = vadd.f32 %v687, %v727
        %v737 = vadd.f32 %v688, %v729
        %v738 = vadd.f32 %v689, %v731
        %v739 = vadd.f32 %v690, %v730
        %v740 = vmul.f32 %v136, %v716
        %v741 = vmul.f32 %v137, %v716
        %v742 = vmul.f32 %v138, %v716
        %v743 = vmul.f32 %v139, %v716
        %v748 = vrot.slane %v740, 2
        %v749 = vrot.slane %v741, 2
        %v750 = vsel %vm256, %v748, %v749
        %v751 = vrot.slane %v742, 2
        %v752 = vsel %vm256, %v749, %v751
        %v753 = vrot.slane %v743, 2
        %v754 = vsel %vm256, %v751, %v753
        %v759 = vadd.f32 %v710, %v750
        %v760 = vadd.f32 %v711, %v752
        %v761 = vadd.f32 %v712, %v754
        %v762 = vadd.f32 %v713, %v753
        %s763 = sadd.s32 %s176, 15
        %s764 = sld [smem:[#allocation6 + %s763]]
        %v765 = vstv %s764
        %v766 = vmul.f32 %v136, %v765
        %v767 = vmul.f32 %v137, %v765
        %v768 = vmul.f32 %v138, %v765
        %v769 = vmul.f32 %v139, %v765
        %v770 = vadd.f32 %v736, %v766
        %v771 = vadd.f32 %v737, %v767
        %v772 = vadd.f32 %v738, %v768
        %v773 = vadd.f32 %v739, %v769
        %v774 = vmul.f32 %v142, %v765
        %v775 = vmul.f32 %v143, %v765
        %v776 = vmul.f32 %v144, %v765
        %v777 = vmul.f32 %v145, %v765
        %v778 = vadd.f32 %v759, %v774
        %v779 = vadd.f32 %v760, %v775
        %v780 = vadd.f32 %v761, %v776
        %v781 = vadd.f32 %v762, %v777
        %s782 = sadd.s32 %s176, 16
        %s783 = sld [smem:[#allocation6 + %s782]]
        %v784 = vstv %s783
        %v785 = vmul.f32 %v136, %v784
        %v786 = vmul.f32 %v137, %v784
        %v787 = vmul.f32 %v138, %v784
        %v788 = vmul.f32 %v139, %v784
        %v793 = vrot.slane %v785, 1
        %v794 = vrot.slane %v786, 1
        %v795 = vsel %vm206, %v793, %v794
        %v796 = vrot.slane %v787, 1
        %v797 = vsel %vm206, %v794, %v796
        %v798 = vrot.slane %v788, 1
        %v799 = vsel %vm206, %v796, %v798
        %v804 = vadd.f32 %v770, %v795
        %v805 = vadd.f32 %v771, %v797
        %v806 = vadd.f32 %v772, %v799
        %v807 = vadd.f32 %v773, %v798
        %v808 = vmul.f32 %v142, %v784
        %v809 = vmul.f32 %v143, %v784
        %v810 = vmul.f32 %v144, %v784
        %v811 = vmul.f32 %v145, %v784
        %v816 = vrot.slane %v808, 1
        %v817 = vrot.slane %v809, 1
        %v818 = vsel %vm206, %v816, %v817
        %v819 = vrot.slane %v810, 1
        %v820 = vsel %vm206, %v817, %v819
        %v821 = vrot.slane %v811, 1
        %v822 = vsel %vm206, %v819, %v821
        %v827 = vadd.f32 %v778, %v818
        %v828 = vadd.f32 %v779, %v820
        %v829 = vadd.f32 %v780, %v822
        %v830 = vadd.f32 %v781, %v821
        %s831 = sadd.s32 %s176, 17
        %s832 = sld [smem:[#allocation6 + %s831]]
        %v833 = vstv %s832
        %v834 = vmul.f32 %v136, %v833
        %v835 = vmul.f32 %v137, %v833
        %v836 = vmul.f32 %v138, %v833
        %v837 = vmul.f32 %v139, %v833
        %v842 = vrot.slane %v834, 2
        %v843 = vrot.slane %v835, 2
        %v844 = vsel %vm256, %v842, %v843
        %v845 = vrot.slane %v836, 2
        %v846 = vsel %vm256, %v843, %v845
        %v847 = vrot.slane %v837, 2
        %v848 = vsel %vm256, %v845, %v847
        %v853 = vadd.f32 %v804, %v844
        %v854 = vadd.f32 %v805, %v846
        %v855 = vadd.f32 %v806, %v848
        %v856 = vadd.f32 %v807, %v847
        %v857 = vmul.f32 %v142, %v833
        %v858 = vmul.f32 %v143, %v833
        %v859 = vmul.f32 %v144, %v833
        %v860 = vmul.f32 %v145, %v833
        %v865 = vrot.slane %v857, 2
        %v866 = vrot.slane %v858, 2
        %v867 = vsel %vm256, %v865, %v866
        %v868 = vrot.slane %v859, 2
        %v869 = vsel %vm256, %v866, %v868
        %v870 = vrot.slane %v860, 2
        %v871 = vsel %vm256, %v868, %v870
        %v876 = vadd.f32 %v827, %v867
        %v877 = vadd.f32 %v828, %v869
        %v878 = vadd.f32 %v829, %v871
        %v879 = vadd.f32 %v830, %v870
        %s880 = sadd.s32 %s176, 18
        %s881 = sld [smem:[#allocation6 + %s880]]
        %v882 = vstv %s881
        %v883 = vmul.f32 %v148, %v882
        %v884 = vmul.f32 %v149, %v882
        %v885 = vmul.f32 %v150, %v882
        %v886 = vmul.f32 %v151, %v882
        %v887 = vadd.f32 %v853, %v883
        %v888 = vadd.f32 %v854, %v884
        %v889 = vadd.f32 %v855, %v885
        %v890 = vadd.f32 %v856, %v886
        %v891 = vmul.f32 %v154, %v882
        %v892 = vmul.f32 %v155, %v882
        %v893 = vmul.f32 %v156, %v882
        %v894 = vmul.f32 %v157, %v882
        %v895 = vadd.f32 %v876, %v891
        %v896 = vadd.f32 %v877, %v892
        %v897 = vadd.f32 %v878, %v893
        %v898 = vadd.f32 %v879, %v894
        %s899 = sadd.s32 %s176, 19
        %s900 = sld [smem:[#allocation6 + %s899]]
        %v901 = vstv %s900
        %v902 = vmul.f32 %v148, %v901
        %v903 = vmul.f32 %v149, %v901
        %v904 = vmul.f32 %v150, %v901
        %v905 = vmul.f32 %v151, %v901
        %v910 = vrot.slane %v902, 1
        %v911 = vrot.slane %v903, 1
        %v912 = vsel %vm206, %v910, %v911
        %v913 = vrot.slane %v904, 1
        %v914 = vsel %vm206, %v911, %v913
        %v915 = vrot.slane %v905, 1
        %v916 = vsel %vm206, %v913, %v915
        %v921 = vadd.f32 %v887, %v912
        %v922 = vadd.f32 %v888, %v914
        %v923 = vadd.f32 %v889, %v916
        %v924 = vadd.f32 %v890, %v915
        %v925 = vmul.f32 %v154, %v901
        %v926 = vmul.f32 %v155, %v901
        %v927 = vmul.f32 %v156, %v901
        %v928 = vmul.f32 %v157, %v901
        %v933 = vrot.slane %v925, 1
        %v934 = vrot.slane %v926, 1
        %v935 = vsel %vm206, %v933, %v934
        %v936 = vrot.slane %v927, 1
        %v937 = vsel %vm206, %v934, %v936
        %v938 = vrot.slane %v928, 1
        %v939 = vsel %vm206, %v936, %v938
        %v944 = vadd.f32 %v895, %v935
        %v945 = vadd.f32 %v896, %v937
        %v946 = vadd.f32 %v897, %v939
        %v947 = vadd.f32 %v898, %v938
        %s948 = sadd.s32 %s176, 20
        %s949 = sld [smem:[#allocation6 + %s948]]
        %v950 = vstv %s949
        %v951 = vmul.f32 %v148, %v950
        %v952 = vmul.f32 %v149, %v950
        %v953 = vmul.f32 %v150, %v950
        %v954 = vmul.f32 %v151, %v950
        %v959 = vrot.slane %v951, 2
        %v960 = vrot.slane %v952, 2
        %v961 = vsel %vm256, %v959, %v960
        %v962 = vrot.slane %v953, 2
        %v963 = vsel %vm256, %v960, %v962
        %v964 = vrot.slane %v954, 2
        %v965 = vsel %vm256, %v962, %v964
        %v970 = vadd.f32 %v921, %v961
        %v971 = vadd.f32 %v922, %v963
        %v972 = vadd.f32 %v923, %v965
        %v973 = vadd.f32 %v924, %v964
        %v974 = vmul.f32 %v154, %v950
        %v975 = vmul.f32 %v155, %v950
        %v976 = vmul.f32 %v156, %v950
        %v977 = vmul.f32 %v157, %v950
        %v982 = vrot.slane %v974, 2
        %v983 = vrot.slane %v975, 2
        %v984 = vsel %vm256, %v982, %v983
        %v985 = vrot.slane %v976, 2
        %v986 = vsel %vm256, %v983, %v985
        %v987 = vrot.slane %v977, 2
        %v988 = vsel %vm256, %v985, %v987
        %v993 = vadd.f32 %v944, %v984
        %v994 = vadd.f32 %v945, %v986
        %v995 = vadd.f32 %v946, %v988
        %v996 = vadd.f32 %v947, %v987
        %s997 = sadd.s32 %s176, 21
        %s998 = sld [smem:[#allocation6 + %s997]]
        %v999 = vstv %s998
        %v1000 = vmul.f32 %v154, %v999
        %v1001 = vmul.f32 %v155, %v999
        %v1002 = vmul.f32 %v156, %v999
        %v1003 = vmul.f32 %v157, %v999
        %v1004 = vadd.f32 %v970, %v1000
        %v1005 = vadd.f32 %v971, %v1001
        %v1006 = vadd.f32 %v972, %v1002
        %v1007 = vadd.f32 %v973, %v1003
        %v1008 = vmul.f32 %v160, %v999
        %v1009 = vmul.f32 %v161, %v999
        %v1010 = vmul.f32 %v162, %v999
        %v1011 = vmul.f32 %v163, %v999
        %v1012 = vadd.f32 %v993, %v1008
        %v1013 = vadd.f32 %v994, %v1009
        %v1014 = vadd.f32 %v995, %v1010
        %v1015 = vadd.f32 %v996, %v1011
        %s1016 = sadd.s32 %s176, 22
        %s1017 = sld [smem:[#allocation6 + %s1016]]
        %v1018 = vstv %s1017
        %v1019 = vmul.f32 %v154, %v1018
        %v1020 = vmul.f32 %v155, %v1018
        %v1021 = vmul.f32 %v156, %v1018
        %v1022 = vmul.f32 %v157, %v1018
        %v1027 = vrot.slane %v1019, 1
        %v1028 = vrot.slane %v1020, 1
        %v1029 = vsel %vm206, %v1027, %v1028
        %v1030 = vrot.slane %v1021, 1
        %v1031 = vsel %vm206, %v1028, %v1030
        %v1032 = vrot.slane %v1022, 1
        %v1033 = vsel %vm206, %v1030, %v1032
        %v1038 = vadd.f32 %v1004, %v1029
        %v1039 = vadd.f32 %v1005, %v1031
        %v1040 = vadd.f32 %v1006, %v1033
        %v1041 = vadd.f32 %v1007, %v1032
        %v1042 = vmul.f32 %v160, %v1018
        %v1043 = vmul.f32 %v161, %v1018
        %v1044 = vmul.f32 %v162, %v1018
        %v1045 = vmul.f32 %v163, %v1018
        %v1050 = vrot.slane %v1042, 1
        %v1051 = vrot.slane %v1043, 1
        %v1052 = vsel %vm206, %v1050, %v1051
        %v1053 = vrot.slane %v1044, 1
        %v1054 = vsel %vm206, %v1051, %v1053
        %v1055 = vrot.slane %v1045, 1
        %v1056 = vsel %vm206, %v1053, %v1055
        %v1061 = vadd.f32 %v1012, %v1052
        %v1062 = vadd.f32 %v1013, %v1054
        %v1063 = vadd.f32 %v1014, %v1056
        %v1064 = vadd.f32 %v1015, %v1055
        %s1065 = sadd.s32 %s176, 23
        %s1066 = sld [smem:[#allocation6 + %s1065]]
        %v1067 = vstv %s1066
        %v1068 = vmul.f32 %v154, %v1067
        %v1069 = vmul.f32 %v155, %v1067
        %v1070 = vmul.f32 %v156, %v1067
        %v1071 = vmul.f32 %v157, %v1067
        %v1076 = vrot.slane %v1068, 2
        %v1077 = vrot.slane %v1069, 2
        %v1078 = vsel %vm256, %v1076, %v1077
        %v1079 = vrot.slane %v1070, 2
        %v1080 = vsel %vm256, %v1077, %v1079
        %v1081 = vrot.slane %v1071, 2
        %v1082 = vsel %vm256, %v1079, %v1081
        %v1087 = vadd.f32 %v1038, %v1078
        %v1088 = vadd.f32 %v1039, %v1080
        %v1089 = vadd.f32 %v1040, %v1082
        %v1090 = vadd.f32 %v1041, %v1081
        %v1091 = vmul.f32 %v160, %v1067
        %v1092 = vmul.f32 %v161, %v1067
        %v1093 = vmul.f32 %v162, %v1067
        %v1094 = vmul.f32 %v163, %v1067
        %v1099 = vrot.slane %v1091, 2
        %v1100 = vrot.slane %v1092, 2
        %v1101 = vsel %vm256, %v1099, %v1100
        %v1102 = vrot.slane %v1093, 2
        %v1103 = vsel %vm256, %v1100, %v1102
        %v1104 = vrot.slane %v1094, 2
        %v1105 = vsel %vm256, %v1102, %v1104
        %v1110 = vadd.f32 %v1061, %v1101
        %v1111 = vadd.f32 %v1062, %v1103
        %v1112 = vadd.f32 %v1063, %v1105
        %v1113 = vadd.f32 %v1064, %v1104
        %s1114 = sadd.s32 %s176, 24
        %s1115 = sld [smem:[#allocation6 + %s1114]]
        %v1116 = vstv %s1115
        %v1117 = vmul.f32 %v160, %v1116
        %v1118 = vmul.f32 %v161, %v1116
        %v1119 = vmul.f32 %v162, %v1116
        %v1120 = vmul.f32 %v163, %v1116
        %v1121 = vadd.f32 %v1087, %v1117
        %v1122 = vadd.f32 %v1088, %v1118
        %v1123 = vadd.f32 %v1089, %v1119
        %v1124 = vadd.f32 %v1090, %v1120
        %v1125 = vmul.f32 %v166, %v1116
        %v1126 = vmul.f32 %v167, %v1116
        %v1127 = vmul.f32 %v168, %v1116
        %v1128 = vmul.f32 %v169, %v1116
        %v1129 = vadd.f32 %v1110, %v1125
        %v1130 = vadd.f32 %v1111, %v1126
        %v1131 = vadd.f32 %v1112, %v1127
        %v1132 = vadd.f32 %v1113, %v1128
        %s1133 = sadd.s32 %s176, 25
        %s1134 = sld [smem:[#allocation6 + %s1133]]
        %v1135 = vstv %s1134
        %v1136 = vmul.f32 %v160, %v1135
        %v1137 = vmul.f32 %v161, %v1135
        %v1138 = vmul.f32 %v162, %v1135
        %v1139 = vmul.f32 %v163, %v1135
        %v1144 = vrot.slane %v1136, 1
        %v1145 = vrot.slane %v1137, 1
        %v1146 = vsel %vm206, %v1144, %v1145
        %v1147 = vrot.slane %v1138, 1
        %v1148 = vsel %vm206, %v1145, %v1147
        %v1149 = vrot.slane %v1139, 1
        %v1150 = vsel %vm206, %v1147, %v1149
        %v1155 = vadd.f32 %v1121, %v1146
        %v1156 = vadd.f32 %v1122, %v1148
        %v1157 = vadd.f32 %v1123, %v1150
        %v1158 = vadd.f32 %v1124, %v1149
        %v1159 = vmul.f32 %v166, %v1135
        %v1160 = vmul.f32 %v167, %v1135
        %v1161 = vmul.f32 %v168, %v1135
        %v1162 = vmul.f32 %v169, %v1135
        %v1167 = vrot.slane %v1159, 1
        %v1168 = vrot.slane %v1160, 1
        %v1169 = vsel %vm206, %v1167, %v1168
        %v1170 = vrot.slane %v1161, 1
        %v1171 = vsel %vm206, %v1168, %v1170
        %v1172 = vrot.slane %v1162, 1
        %v1173 = vsel %vm206, %v1170, %v1172
        %v1178 = vadd.f32 %v1129, %v1169
        %v1179 = vadd.f32 %v1130, %v1171
        %v1180 = vadd.f32 %v1131, %v1173
        %v1181 = vadd.f32 %v1132, %v1172
        %s1182 = sadd.s32 %s176, 26
        %s1183 = sld [smem:[#allocation6 + %s1182]]
        %v1184 = vstv %s1183
        %v1185 = vmul.f32 %v160, %v1184
        %v1186 = vmul.f32 %v161, %v1184
        %v1187 = vmul.f32 %v162, %v1184
        %v1188 = vmul.f32 %v163, %v1184
        %v1193 = vrot.slane %v1185, 2
        %v1194 = vrot.slane %v1186, 2
        %v1195 = vsel %vm256, %v1193, %v1194
        %v1196 = vrot.slane %v1187, 2
        %v1197 = vsel %vm256, %v1194, %v1196
        %v1198 = vrot.slane %v1188, 2
        %v1199 = vsel %vm256, %v1196, %v1198
        %v1204 = vadd.f32 %v1155, %v1195
        %v1205 = vadd.f32 %v1156, %v1197
        %v1206 = vadd.f32 %v1157, %v1199
        %v1207 = vadd.f32 %v1158, %v1198
        %v1208 = vmul.f32 %v166, %v1184
        %v1209 = vmul.f32 %v167, %v1184
        %v1210 = vmul.f32 %v168, %v1184
        %v1211 = vmul.f32 %v169, %v1184
        %v1216 = vrot.slane %v1208, 2
        %v1217 = vrot.slane %v1209, 2
        %v1218 = vsel %vm256, %v1216, %v1217
        %v1219 = vrot.slane %v1210, 2
        %v1220 = vsel %vm256, %v1217, %v1219
        %v1221 = vrot.slane %v1211, 2
        %v1222 = vsel %vm256, %v1219, %v1221
        %v1227 = vadd.f32 %v1178, %v1218
        %v1228 = vadd.f32 %v1179, %v1220
        %v1229 = vadd.f32 %v1180, %v1222
        %v1230 = vadd.f32 %v1181, %v1221
        %v1231 = vmax.f32 %v1204, %v1227
        %v1232 = vmax.f32 %v1205, %v1228
        %v1233 = vmax.f32 %v1206, %v1229
        %v1234 = vmax.f32 %v1207, %v1230
        %1235 = vst [vmem:[#allocation5] sm:$0xff] %v1231
        %1236 = vst [vmem:[#allocation5 + $0x8] sm:$0xff] %v1232
        %1237 = vst [vmem:[#allocation5 + $0x10] sm:$0xff] %v1233
        %1238 = vst [vmem:[#allocation5 + $0x18] sm:$0x3f] %v1234
        %v1239 = vld [vmem:[#allocation5] ss:$2 sm:$0xff]
        %s1240 = scalar_lea.vmem [#allocation5], 16
        %v1241 = vld [vmem:[%s1240] ss:$2 sm:$0x7f]
        %s1242 = scalar_lea.vmem [#allocation5], 1
        %v1243 = vld [vmem:[%s1242] ss:$2 sm:$0xff]
        %s1244 = scalar_lea.vmem [#allocation5], 17
        %v1245 = vld [vmem:[%s1244] ss:$2 sm:$0x7f]
        %v1246 = vmax.f32 %v1239, %v1243
        %v1247 = vmax.f32 %v1241, %v1245
        %s1248 = sld [smem:[#allocation8 + %s171]]
        %v1249 = vstv %s1248
        %v1250 = vadd.f32 %v1246, %v1249
        %v1251 = vadd.f32 %v1247, %v1249
        %v1252 = vmax.f32 %v1250, 0.0
        %v1253 = vmax.f32 %v1251, 0.0
        %s1254 = smul.u32 %s89, 16
        %s1255 = smul.u32 %s171, 240
        %s1256 = sadd.s32 %s1254, %s1255
        %s1257 = scalar_lea.vmem [#allocation2], %s1256
        %1258 = vst [vmem:[%s1257] sm:$0xff] %v1252
        %1259 = vst [vmem:[%s1257 + $0x8] sm:$0x7f] %v1253
      $region73: #{image_classification_forward.1} parent=65 // loop_footer
        %s175 = sadd.s32 1, %s171
      $region74: #{image_classification_forward.1} parent=65 // loop_footer_branch
        %170 = sbr.rel target = $region70
      $region75: #{image_classification_forward.1} parent=65 // loop_exit
        _
    $region66: #{image_classification_forward.1} parent=1 // loop_footer
      %s93 = sadd.s32 1, %s89
    $region67: #{image_classification_forward.1} parent=1 // loop_footer_branch
      %88 = sbr.rel target = $region63
    $region68: #{image_classification_forward.1} parent=1 // loop_exit
      _
    loop: start=0, step=1, limit=6
    $region76: #{image_classification_forward.1} parent=1 // loop_pre_header
      _
    $region77: #{image_classification_forward.1} parent=1 // loop_header
      %s1261 = sphi 0, %s1265
      %p1262 = scmp.ge.s32.totalorder %s1261, 6
    $region78: #{image_classification_forward.1} parent=1 // loop_header_branch
      %1264 = sbr.rel (%p1262) target = $region82
    $region79: #{image_classification_forward.1} parent=1 // loop_body
      %s1266 = smul.u32 %s1261, 2
      %s1267 = smul.u32 %s1266, 16
      %s1268 = scalar_lea.vmem [#allocation2], %s1267
      %v1269 = vld [vmem:[%s1268] sm:$0xff]
      %v1270 = vld [vmem:[%s1268 + $0x8] sm:$0x7f]
      %s1271 = sadd.s32 %s1266, 1
      %s1272 = smul.u32 %s1271, 16
      %s1273 = scalar_lea.vmem [#allocation2], %s1272
      %v1274 = vld [vmem:[%s1273] sm:$0xff]
      %v1275 = vld [vmem:[%s1273 + $0x8] sm:$0x7f]
      %s1276 = sadd.s32 %s1266, 2
      %s1277 = smul.u32 %s1276, 16
      %s1278 = scalar_lea.vmem [#allocation2], %s1277
      %v1279 = vld [vmem:[%s1278] sm:$0xff]
      %v1280 = vld [vmem:[%s1278 + $0x8] sm:$0x7f]
      %s1281 = sadd.s32 %s1266, 3
      %s1282 = smul.u32 %s1281, 16
      %s1283 = scalar_lea.vmem [#allocation2], %s1282
      %v1284 = vld [vmem:[%s1283] sm:$0xff]
      %v1285 = vld [vmem:[%s1283 + $0x8] sm:$0x7f]
      %s1286 = sadd.s32 %s1267, 240
      %s1287 = scalar_lea.vmem [#allocation2], %s1286
      %v1288 = vld [vmem:[%s1287] sm:$0xff]
      %v1289 = vld [vmem:[%s1287 + $0x8] sm:$0x7f]
      %s1290 = sadd.s32 %s1272, 240
      %s1291 = scalar_lea.vmem [#allocation2], %s1290
      %v1292 = vld [vmem:[%s1291] sm:$0xff]
      %v1293 = vld [vmem:[%s1291 + $0x8] sm:$0x7f]
      %s1294 = sadd.s32 %s1277, 240
      %s1295 = scalar_lea.vmem [#allocation2], %s1294
      %v1296 = vld [vmem:[%s1295] sm:$0xff]
      %v1297 = vld [vmem:[%s1295 + $0x8] sm:$0x7f]
      %s1298 = sadd.s32 %s1282, 240
      %s1299 = scalar_lea.vmem [#allocation2], %s1298
      %v1300 = vld [vmem:[%s1299] sm:$0xff]
      %v1301 = vld [vmem:[%s1299 + $0x8] sm:$0x7f]
      %s1302 = sadd.s32 %s1267, 480
      %s1303 = scalar_lea.vmem [#allocation2], %s1302
      %v1304 = vld [vmem:[%s1303] sm:$0xff]
      %v1305 = vld [vmem:[%s1303 + $0x8] sm:$0x7f]
      %s1306 = sadd.s32 %s1272, 480
      %s1307 = scalar_lea.vmem [#allocation2], %s1306
      %v1308 = vld [vmem:[%s1307] sm:$0xff]
      %v1309 = vld [vmem:[%s1307 + $0x8] sm:$0x7f]
      %s1310 = sadd.s32 %s1277, 480
      %s1311 = scalar_lea.vmem [#allocation2], %s1310
      %v1312 = vld [vmem:[%s1311] sm:$0xff]
      %v1313 = vld [vmem:[%s1311 + $0x8] sm:$0x7f]
      %s1314 = sadd.s32 %s1282, 480
      %s1315 = scalar_lea.vmem [#allocation2], %s1314
      %v1316 = vld [vmem:[%s1315] sm:$0xff]
      %v1317 = vld [vmem:[%s1315 + $0x8] sm:$0x7f]
      %s1318 = sadd.s32 %s1267, 720
      %s1319 = scalar_lea.vmem [#allocation2], %s1318
      %v1320 = vld [vmem:[%s1319] sm:$0xff]
      %v1321 = vld [vmem:[%s1319 + $0x8] sm:$0x7f]
      %s1322 = sadd.s32 %s1272, 720
      %s1323 = scalar_lea.vmem [#allocation2], %s1322
      %v1324 = vld [vmem:[%s1323] sm:$0xff]
      %v1325 = vld [vmem:[%s1323 + $0x8] sm:$0x7f]
      %s1326 = sadd.s32 %s1277, 720
      %s1327 = scalar_lea.vmem [#allocation2], %s1326
      %v1328 = vld [vmem:[%s1327] sm:$0xff]
      %v1329 = vld [vmem:[%s1327 + $0x8] sm:$0x7f]
      %s1330 = sadd.s32 %s1282, 720
      %s1331 = scalar_lea.vmem [#allocation2], %s1330
      %v1332 = vld [vmem:[%s1331] sm:$0xff]
      %v1333 = vld [vmem:[%s1331 + $0x8] sm:$0x7f]
      %s1334 = sadd.s32 %s1267, 960
      %s1335 = scalar_lea.vmem [#allocation2], %s1334
      %v1336 = vld [vmem:[%s1335] sm:$0xff]
      %v1337 = vld [vmem:[%s1335 + $0x8] sm:$0x7f]
      %s1338 = sadd.s32 %s1272, 960
      %s1339 = scalar_lea.vmem [#allocation2], %s1338
      %v1340 = vld [vmem:[%s1339] sm:$0xff]
      %v1341 = vld [vmem:[%s1339 + $0x8] sm:$0x7f]
      %s1342 = sadd.s32 %s1277, 960
      %s1343 = scalar_lea.vmem [#allocation2], %s1342
      %v1344 = vld [vmem:[%s1343] sm:$0xff]
      %v1345 = vld [vmem:[%s1343 + $0x8] sm:$0x7f]
      %s1346 = sadd.s32 %s1282, 960
      %s1347 = scalar_lea.vmem [#allocation2], %s1346
      %v1348 = vld [vmem:[%s1347] sm:$0xff]
      %v1349 = vld [vmem:[%s1347 + $0x8] sm:$0x7f]
      %s1350 = sadd.s32 %s1267, 1200
      %s1351 = scalar_lea.vmem [#allocation2], %s1350
      %v1352 = vld [vmem:[%s1351] sm:$0xff]
      %v1353 = vld [vmem:[%s1351 + $0x8] sm:$0x7f]
      %s1354 = sadd.s32 %s1272, 1200
      %s1355 = scalar_lea.vmem [#allocation2], %s1354
      %v1356 = vld [vmem:[%s1355] sm:$0xff]
      %v1357 = vld [vmem:[%s1355 + $0x8] sm:$0x7f]
      %s1358 = sadd.s32 %s1277, 1200
      %s1359 = scalar_lea.vmem [#allocation2], %s1358
      %v1360 = vld [vmem:[%s1359] sm:$0xff]
      %v1361 = vld [vmem:[%s1359 + $0x8] sm:$0x7f]
      %s1362 = sadd.s32 %s1282, 1200
      %s1363 = scalar_lea.vmem [#allocation2], %s1362
      %v1364 = vld [vmem:[%s1363] sm:$0xff]
      %v1365 = vld [vmem:[%s1363 + $0x8] sm:$0x7f]
      loop: start=0, step=1, limit=16
      $region83: #{image_classification_forward.1} parent=79 // loop_pre_header
        _
      $region84: #{image_classification_forward.1} parent=79 // loop_header
        %s1367 = sphi 0, %s1371
        %p1368 = scmp.ge.s32.totalorder %s1367, 16
      $region85: #{image_classification_forward.1} parent=79 // loop_header_branch
        %1370 = sbr.rel (%p1368) target = $region89
      $region86: #{image_classification_forward.1} parent=79 // loop_body
        %s1372 = smul.u32 %s1367, 128
        %s1373 = sld [smem:[#allocation10 + %s1372]]
        %v1374 = vstv %s1373
        %v1375 = vmul.f32 %v1269, %v1374
        %v1376 = vmul.f32 %v1270, %v1374
        %v1377 = vadd.f32 %v1375, 0.0
        %v1378 = vadd.f32 %v1376, 0.0
        %v1379 = vmul.f32 %v1274, %v1374
        %v1380 = vmul.f32 %v1275, %v1374
        %v1381 = vadd.f32 %v1379, 0.0
        %v1382 = vadd.f32 %v1380, 0.0
        %s1383 = sadd.s32 %s1372, 1
        %s1384 = sld [smem:[#allocation10 + %s1383]]
        %v1385 = vstv %s1384
        %v1386 = vmul.f32 %v1269, %v1385
        %v1387 = vmul.f32 %v1270, %v1385
        %vm1390 = vcmask 1046528
        %v1391 = vrot.slane %v1386, 1
        %v1392 = vrot.slane %v1387, 1
        %v1393 = vsel %vm1390, %v1391, %v1392
        %v1396 = vadd.f32 %v1377, %v1393
        %v1397 = vadd.f32 %v1378, %v1392
        %v1398 = vmul.f32 %v1274, %v1385
        %v1399 = vmul.f32 %v1275, %v1385
        %v1402 = vrot.slane %v1398, 1
        %v1403 = vrot.slane %v1399, 1
        %v1404 = vsel %vm1390, %v1402, %v1403
        %v1407 = vadd.f32 %v1381, %v1404
        %v1408 = vadd.f32 %v1382, %v1403
        %s1409 = sadd.s32 %s1372, 2
        %s1410 = sld [smem:[#allocation10 + %s1409]]
        %v1411 = vstv %s1410
        %v1412 = vmul.f32 %v1269, %v1411
        %v1413 = vmul.f32 %v1270, %v1411
        %vm1416 = vcmask 1045504
        %v1417 = vrot.slane %v1412, 2
        %v1418 = vrot.slane %v1413, 2
        %v1419 = vsel %vm1416, %v1417, %v1418
        %v1422 = vadd.f32 %v1396, %v1419
        %v1423 = vadd.f32 %v1397, %v1418
        %v1424 = vmul.f32 %v1274, %v1411
        %v1425 = vmul.f32 %v1275, %v1411
        %v1428 = vrot.slane %v1424, 2
        %v1429 = vrot.slane %v1425, 2
        %v1430 = vsel %vm1416, %v1428, %v1429
        %v1433 = vadd.f32 %v1407, %v1430
        %v1434 = vadd.f32 %v1408, %v1429
        %s1435 = sadd.s32 %s1372, 3
        %s1436 = sld [smem:[#allocation10 + %s1435]]
        %v1437 = vstv %s1436
        %v1438 = vmul.f32 %v1274, %v1437
        %v1439 = vmul.f32 %v1275, %v1437
        %v1440 = vadd.f32 %v1422, %v1438
        %v1441 = vadd.f32 %v1423, %v1439
        %v1442 = vmul.f32 %v1279, %v1437
        %v1443 = vmul.f32 %v1280, %v1437
        %v1444 = vadd.f32 %v1433, %v1442
        %v1445 = vadd.f32 %v1434, %v1443
        %s1446 = sadd.s32 %s1372, 4
        %s1447 = sld [smem:[#allocation10 + %s1446]]
        %v1448 = vstv %s1447
        %v1449 = vmul.f32 %v1274, %v1448
        %v1450 = vmul.f32 %v1275, %v1448
        %v1453 = vrot.slane %v1449, 1
        %v1454 = vrot.slane %v1450, 1
        %v1455 = vsel %vm1390, %v1453, %v1454
        %v1458 = vadd.f32 %v1440, %v1455
        %v1459 = vadd.f32 %v1441, %v1454
        %v1460 = vmul.f32 %v1279, %v1448
        %v1461 = vmul.f32 %v1280, %v1448
        %v1464 = vrot.slane %v1460, 1
        %v1465 = vrot.slane %v1461, 1
        %v1466 = vsel %vm1390, %v1464, %v1465
        %v1469 = vadd.f32 %v1444, %v1466
        %v1470 = vadd.f32 %v1445, %v1465
        %s1471 = sadd.s32 %s1372, 5
        %s1472 = sld [smem:[#allocation10 + %s1471]]
        %v1473 = vstv %s1472
        %v1474 = vmul.f32 %v1274, %v1473
        %v1475 = vmul.f32 %v1275, %v1473
        %v1478 = vrot.slane %v1474, 2
        %v1479 = vrot.slane %v1475, 2
        %v1480 = vsel %vm1416, %v1478, %v1479
        %v1483 = vadd.f32 %v1458, %v1480
        %v1484 = vadd.f32 %v1459, %v1479
        %v1485 = vmul.f32 %v1279, %v1473
        %v1486 = vmul.f32 %v1280, %v1473
        %v1489 = vrot.slane %v1485, 2
        %v1490 = vrot.slane %v1486, 2
        %v1491 = vsel %vm1416, %v1489, %v1490
        %v1494 = vadd.f32 %v1469, %v1491
        %v1495 = vadd.f32 %v1470, %v1490
        %s1496 = sadd.s32 %s1372, 6
        %s1497 = sld [smem:[#allocation10 + %s1496]]
        %v1498 = vstv %s1497
        %v1499 = vmul.f32 %v1279, %v1498
        %v1500 = vmul.f32 %v1280, %v1498
        %v1501 = vadd.f32 %v1483, %v1499
        %v1502 = vadd.f32 %v1484, %v1500
        %v1503 = vmul.f32 %v1284, %v1498
        %v1504 = vmul.f32 %v1285, %v1498
        %v1505 = vadd.f32 %v1494, %v1503
        %v1506 = vadd.f32 %v1495, %v1504
        %s1507 = sadd.s32 %s1372, 7
        %s1508 = sld [smem:[#allocation10 + %s1507]]
        %v1509 = vstv %s1508
        %v1510 = vmul.f32 %v1279, %v1509
        %v1511 = vmul.f32 %v1280, %v1509
        %v1514 = vrot.slane %v1510, 1
        %v1515 = vrot.slane %v1511, 1
        %v1516 = vsel %vm1390, %v1514, %v1515
        %v1519 = vadd.f32 %v1501, %v1516
        %v1520 = vadd.f32 %v1502, %v1515
        %v1521 = vmul.f32 %v1284, %v1509
        %v1522 = vmul.f32 %v1285, %v1509
        %v1525 = vrot.slane %v1521, 1
        %v1526 = vrot.slane %v1522, 1
        %v1527 = vsel %vm1390, %v1525, %v1526
        %v1530 = vadd.f32 %v1505, %v1527
        %v1531 = vadd.f32 %v1506, %v1526
        %s1532 = sadd.s32 %s1372, 8
        %s1533 = sld [smem:[#allocation10 + %s1532]]
        %v1534 = vstv %s1533
        %v1535 = vmul.f32 %v1279, %v1534
        %v1536 = vmul.f32 %v1280, %v1534
        %v1539 = vrot.slane %v1535, 2
        %v1540 = vrot.slane %v1536, 2
        %v1541 = vsel %vm1416, %v1539, %v1540
        %v1544 = vadd.f32 %v1519, %v1541
        %v1545 = vadd.f32 %v1520, %v1540
        %v1546 = vmul.f32 %v1284, %v1534
        %v1547 = vmul.f32 %v1285, %v1534
        %v1550 = vrot.slane %v1546, 2
        %v1551 = vrot.slane %v1547, 2
        %v1552 = vsel %vm1416, %v1550, %v1551
        %v1555 = vadd.f32 %v1530, %v1552
        %v1556 = vadd.f32 %v1531, %v1551
        %s1557 = sadd.s32 %s1372, 9
        %s1558 = sld [smem:[#allocation10 + %s1557]]
        %v1559 = vstv %s1558
        %v1560 = vmul.f32 %v1288, %v1559
        %v1561 = vmul.f32 %v1289, %v1559
        %v1562 = vadd.f32 %v1544, %v1560
        %v1563 = vadd.f32 %v1545, %v1561
        %v1564 = vmul.f32 %v1292, %v1559
        %v1565 = vmul.f32 %v1293, %v1559
        %v1566 = vadd.f32 %v1555, %v1564
        %v1567 = vadd.f32 %v1556, %v1565
        %s1568 = sadd.s32 %s1372, 10
        %s1569 = sld [smem:[#allocation10 + %s1568]]
        %v1570 = vstv %s1569
        %v1571 = vmul.f32 %v1288, %v1570
        %v1572 = vmul.f32 %v1289, %v1570
        %v1575 = vrot.slane %v1571, 1
        %v1576 = vrot.slane %v1572, 1
        %v1577 = vsel %vm1390, %v1575, %v1576
        %v1580 = vadd.f32 %v1562, %v1577
        %v1581 = vadd.f32 %v1563, %v1576
        %v1582 = vmul.f32 %v1292, %v1570
        %v1583 = vmul.f32 %v1293, %v1570
        %v1586 = vrot.slane %v1582, 1
        %v1587 = vrot.slane %v1583, 1
        %v1588 = vsel %vm1390, %v1586, %v1587
        %v1591 = vadd.f32 %v1566, %v1588
        %v1592 = vadd.f32 %v1567, %v1587
        %s1593 = sadd.s32 %s1372, 11
        %s1594 = sld [smem:[#allocation10 + %s1593]]
        %v1595 = vstv %s1594
        %v1596 = vmul.f32 %v1288, %v1595
        %v1597 = vmul.f32 %v1289, %v1595
        %v1600 = vrot.slane %v1596, 2
        %v1601 = vrot.slane %v1597, 2
        %v1602 = vsel %vm1416, %v1600, %v1601
        %v1605 = vadd.f32 %v1580, %v1602
        %v1606 = vadd.f32 %v1581, %v1601
        %v1607 = vmul.f32 %v1292, %v1595
        %v1608 = vmul.f32 %v1293, %v1595
        %v1611 = vrot.slane %v1607, 2
        %v1612 = vrot.slane %v1608, 2
        %v1613 = vsel %vm1416, %v1611, %v1612
        %v1616 = vadd.f32 %v1591, %v1613
        %v1617 = vadd.f32 %v1592, %v1612
        %s1618 = sadd.s32 %s1372, 12
        %s1619 = sld [smem:[#allocation10 + %s1618]]
        %v1620 = vstv %s1619
        %v1621 = vmul.f32 %v1292, %v1620
        %v1622 = vmul.f32 %v1293, %v1620
        %v1623 = vadd.f32 %v1605, %v1621
        %v1624 = vadd.f32 %v1606, %v1622
        %v1625 = vmul.f32 %v1296, %v1620
        %v1626 = vmul.f32 %v1297, %v1620
        %v1627 = vadd.f32 %v1616, %v1625
        %v1628 = vadd.f32 %v1617, %v1626
        %s1629 = sadd.s32 %s1372, 13
        %s1630 = sld [smem:[#allocation10 + %s1629]]
        %v1631 = vstv %s1630
        %v1632 = vmul.f32 %v1292, %v1631
        %v1633 = vmul.f32 %v1293, %v1631
        %v1636 = vrot.slane %v1632, 1
        %v1637 = vrot.slane %v1633, 1
        %v1638 = vsel %vm1390, %v1636, %v1637
        %v1641 = vadd.f32 %v1623, %v1638
        %v1642 = vadd.f32 %v1624, %v1637
        %v1643 = vmul.f32 %v1296, %v1631
        %v1644 = vmul.f32 %v1297, %v1631
        %v1647 = vrot.slane %v1643, 1
        %v1648 = vrot.slane %v1644, 1
        %v1649 = vsel %vm1390, %v1647, %v1648
        %v1652 = vadd.f32 %v1627, %v1649
        %v1653 = vadd.f32 %v1628, %v1648
        %s1654 = sadd.s32 %s1372, 14
        %s1655 = sld [smem:[#allocation10 + %s1654]]
        %v1656 = vstv %s1655
        %v1657 = vmul.f32 %v1292, %v1656
        %v1658 = vmul.f32 %v1293, %v1656
        %v1661 = vrot.slane %v1657, 2
        %v1662 = vrot.slane %v1658, 2
        %v1663 = vsel %vm1416, %v1661, %v1662
        %v1666 = vadd.f32 %v1641, %v1663
        %v1667 = vadd.f32 %v1642, %v1662
        %v1668 = vmul.f32 %v1296, %v1656
        %v1669 = vmul.f32 %v1297, %v1656
        %v1672 = vrot.slane %v1668, 2
        %v1673 = vrot.slane %v1669, 2
        %v1674 = vsel %vm1416, %v1672, %v1673
        %v1677 = vadd.f32 %v1652, %v1674
        %v1678 = vadd.f32 %v1653, %v1673
        %s1679 = sadd.s32 %s1372, 15
        %s1680 = sld [smem:[#allocation10 + %s1679]]
        %v1681 = vstv %s1680
        %v1682 = vmul.f32 %v1296, %v1681
        %v1683 = vmul.f32 %v1297, %v1681
        %v1684 = vadd.f32 %v1666, %v1682
        %v1685 = vadd.f32 %v1667, %v1683
        %v1686 = vmul.f32 %v1300, %v1681
        %v1687 = vmul.f32 %v1301, %v1681
        %v1688 = vadd.f32 %v1677, %v1686
        %v1689 = vadd.f32 %v1678, %v1687
        %s1690 = sadd.s32 %s1372, 16
        %s1691 = sld [smem:[#allocation10 + %s1690]]
        %v1692 = vstv %s1691
        %v1693 = vmul.f32 %v1296, %v1692
        %v1694 = vmul.f32 %v1297, %v1692
        %v1697 = vrot.slane %v1693, 1
        %v1698 = vrot.slane %v1694, 1
        %v1699 = vsel %vm1390, %v1697, %v1698
        %v1702 = vadd.f32 %v1684, %v1699
        %v1703 = vadd.f32 %v1685, %v1698
        %v1704 = vmul.f32 %v1300, %v1692
        %v1705 = vmul.f32 %v1301, %v1692
        %v1708 = vrot.slane %v1704, 1
        %v1709 = vrot.slane %v1705, 1
        %v1710 = vsel %vm1390, %v1708, %v1709
        %v1713 = vadd.f32 %v1688, %v1710
        %v1714 = vadd.f32 %v1689, %v1709
        %s1715 = sadd.s32 %s1372, 17
        %s1716 = sld [smem:[#allocation10 + %s1715]]
        %v1717 = vstv %s1716
        %v1718 = vmul.f32 %v1296, %v1717
        %v1719 = vmul.f32 %v1297, %v1717
        %v1722 = vrot.slane %v1718, 2
        %v1723 = vrot.slane %v1719, 2
        %v1724 = vsel %vm1416, %v1722, %v1723
        %v1727 = vadd.f32 %v1702, %v1724
        %v1728 = vadd.f32 %v1703, %v1723
        %v1729 = vmul.f32 %v1300, %v1717
        %v1730 = vmul.f32 %v1301, %v1717
        %v1733 = vrot.slane %v1729, 2
        %v1734 = vrot.slane %v1730, 2
        %v1735 = vsel %vm1416, %v1733, %v1734
        %v1738 = vadd.f32 %v1713, %v1735
        %v1739 = vadd.f32 %v1714, %v1734
        %s1740 = sadd.s32 %s1372, 18
        %s1741 = sld [smem:[#allocation10 + %s1740]]
        %v1742 = vstv %s1741
        %v1743 = vmul.f32 %v1304, %v1742
        %v1744 = vmul.f32 %v1305, %v1742
        %v1745 = vadd.f32 %v1727, %v1743
        %v1746 = vadd.f32 %v1728, %v1744
        %v1747 = vmul.f32 %v1308, %v1742
        %v1748 = vmul.f32 %v1309, %v1742
        %v1749 = vadd.f32 %v1738, %v1747
        %v1750 = vadd.f32 %v1739, %v1748
        %s1751 = sadd.s32 %s1372, 19
        %s1752 = sld [smem:[#allocation10 + %s1751]]
        %v1753 = vstv %s1752
        %v1754 = vmul.f32 %v1304, %v1753
        %v1755 = vmul.f32 %v1305, %v1753
        %v1758 = vrot.slane %v1754, 1
        %v1759 = vrot.slane %v1755, 1
        %v1760 = vsel %vm1390, %v1758, %v1759
        %v1763 = vadd.f32 %v1745, %v1760
        %v1764 = vadd.f32 %v1746, %v1759
        %v1765 = vmul.f32 %v1308, %v1753
        %v1766 = vmul.f32 %v1309, %v1753
        %v1769 = vrot.slane %v1765, 1
        %v1770 = vrot.slane %v1766, 1
        %v1771 = vsel %vm1390, %v1769, %v1770
        %v1774 = vadd.f32 %v1749, %v1771
        %v1775 = vadd.f32 %v1750, %v1770
        %s1776 = sadd.s32 %s1372, 20
        %s1777 = sld [smem:[#allocation10 + %s1776]]
        %v1778 = vstv %s1777
        %v1779 = vmul.f32 %v1304, %v1778
        %v1780 = vmul.f32 %v1305, %v1778
        %v1783 = vrot.slane %v1779, 2
        %v1784 = vrot.slane %v1780, 2
        %v1785 = vsel %vm1416, %v1783, %v1784
        %v1788 = vadd.f32 %v1763, %v1785
        %v1789 = vadd.f32 %v1764, %v1784
        %v1790 = vmul.f32 %v1308, %v1778
        %v1791 = vmul.f32 %v1309, %v1778
        %v1794 = vrot.slane %v1790, 2
        %v1795 = vrot.slane %v1791, 2
        %v1796 = vsel %vm1416, %v1794, %v1795
        %v1799 = vadd.f32 %v1774, %v1796
        %v1800 = vadd.f32 %v1775, %v1795
        %s1801 = sadd.s32 %s1372, 21
        %s1802 = sld [smem:[#allocation10 + %s1801]]
        %v1803 = vstv %s1802
        %v1804 = vmul.f32 %v1308, %v1803
        %v1805 = vmul.f32 %v1309, %v1803
        %v1806 = vadd.f32 %v1788, %v1804
        %v1807 = vadd.f32 %v1789, %v1805
        %v1808 = vmul.f32 %v1312, %v1803
        %v1809 = vmul.f32 %v1313, %v1803
        %v1810 = vadd.f32 %v1799, %v1808
        %v1811 = vadd.f32 %v1800, %v1809
        %s1812 = sadd.s32 %s1372, 22
        %s1813 = sld [smem:[#allocation10 + %s1812]]
        %v1814 = vstv %s1813
        %v1815 = vmul.f32 %v1308, %v1814
        %v1816 = vmul.f32 %v1309, %v1814
        %v1819 = vrot.slane %v1815, 1
        %v1820 = vrot.slane %v1816, 1
        %v1821 = vsel %vm1390, %v1819, %v1820
        %v1824 = vadd.f32 %v1806, %v1821
        %v1825 = vadd.f32 %v1807, %v1820
        %v1826 = vmul.f32 %v1312, %v1814
        %v1827 = vmul.f32 %v1313, %v1814
        %v1830 = vrot.slane %v1826, 1
        %v1831 = vrot.slane %v1827, 1
        %v1832 = vsel %vm1390, %v1830, %v1831
        %v1835 = vadd.f32 %v1810, %v1832
        %v1836 = vadd.f32 %v1811, %v1831
        %s1837 = sadd.s32 %s1372, 23
        %s1838 = sld [smem:[#allocation10 + %s1837]]
        %v1839 = vstv %s1838
        %v1840 = vmul.f32 %v1308, %v1839
        %v1841 = vmul.f32 %v1309, %v1839
        %v1844 = vrot.slane %v1840, 2
        %v1845 = vrot.slane %v1841, 2
        %v1846 = vsel %vm1416, %v1844, %v1845
        %v1849 = vadd.f32 %v1824, %v1846
        %v1850 = vadd.f32 %v1825, %v1845
        %v1851 = vmul.f32 %v1312, %v1839
        %v1852 = vmul.f32 %v1313, %v1839
        %v1855 = vrot.slane %v1851, 2
        %v1856 = vrot.slane %v1852, 2
        %v1857 = vsel %vm1416, %v1855, %v1856
        %v1860 = vadd.f32 %v1835, %v1857
        %v1861 = vadd.f32 %v1836, %v1856
        %s1862 = sadd.s32 %s1372, 24
        %s1863 = sld [smem:[#allocation10 + %s1862]]
        %v1864 = vstv %s1863
        %v1865 = vmul.f32 %v1312, %v1864
        %v1866 = vmul.f32 %v1313, %v1864
        %v1867 = vadd.f32 %v1849, %v1865
        %v1868 = vadd.f32 %v1850, %v1866
        %v1869 = vmul.f32 %v1316, %v1864
        %v1870 = vmul.f32 %v1317, %v1864
        %v1871 = vadd.f32 %v1860, %v1869
        %v1872 = vadd.f32 %v1861, %v1870
        %s1873 = sadd.s32 %s1372, 25
        %s1874 = sld [smem:[#allocation10 + %s1873]]
        %v1875 = vstv %s1874
        %v1876 = vmul.f32 %v1312, %v1875
        %v1877 = vmul.f32 %v1313, %v1875
        %v1880 = vrot.slane %v1876, 1
        %v1881 = vrot.slane %v1877, 1
        %v1882 = vsel %vm1390, %v1880, %v1881
        %v1885 = vadd.f32 %v1867, %v1882
        %v1886 = vadd.f32 %v1868, %v1881
        %v1887 = vmul.f32 %v1316, %v1875
        %v1888 = vmul.f32 %v1317, %v1875
        %v1891 = vrot.slane %v1887, 1
        %v1892 = vrot.slane %v1888, 1
        %v1893 = vsel %vm1390, %v1891, %v1892
        %v1896 = vadd.f32 %v1871, %v1893
        %v1897 = vadd.f32 %v1872, %v1892
        %s1898 = sadd.s32 %s1372, 26
        %s1899 = sld [smem:[#allocation10 + %s1898]]
        %v1900 = vstv %s1899
        %v1901 = vmul.f32 %v1312, %v1900
        %v1902 = vmul.f32 %v1313, %v1900
        %v1905 = vrot.slane %v1901, 2
        %v1906 = vrot.slane %v1902, 2
        %v1907 = vsel %vm1416, %v1905, %v1906
        %v1910 = vadd.f32 %v1885, %v1907
        %v1911 = vadd.f32 %v1886, %v1906
        %v1912 = vmul.f32 %v1316, %v1900
        %v1913 = vmul.f32 %v1317, %v1900
        %v1916 = vrot.slane %v1912, 2
        %v1917 = vrot.slane %v1913, 2
        %v1918 = vsel %vm1416, %v1916, %v1917
        %v1921 = vadd.f32 %v1896, %v1918
        %v1922 = vadd.f32 %v1897, %v1917
        %s1923 = sadd.s32 %s1372, 27
        %s1924 = sld [smem:[#allocation10 + %s1923]]
        %v1925 = vstv %s1924
        %v1926 = vmul.f32 %v1320, %v1925
        %v1927 = vmul.f32 %v1321, %v1925
        %v1928 = vadd.f32 %v1910, %v1926
        %v1929 = vadd.f32 %v1911, %v1927
        %v1930 = vmul.f32 %v1324, %v1925
        %v1931 = vmul.f32 %v1325, %v1925
        %v1932 = vadd.f32 %v1921, %v1930
        %v1933 = vadd.f32 %v1922, %v1931
        %s1934 = sadd.s32 %s1372, 28
        %s1935 = sld [smem:[#allocation10 + %s1934]]
        %v1936 = vstv %s1935
        %v1937 = vmul.f32 %v1320, %v1936
        %v1938 = vmul.f32 %v1321, %v1936
        %v1941 = vrot.slane %v1937, 1
        %v1942 = vrot.slane %v1938, 1
        %v1943 = vsel %vm1390, %v1941, %v1942
        %v1946 = vadd.f32 %v1928, %v1943
        %v1947 = vadd.f32 %v1929, %v1942
        %v1948 = vmul.f32 %v1324, %v1936
        %v1949 = vmul.f32 %v1325, %v1936
        %v1952 = vrot.slane %v1948, 1
        %v1953 = vrot.slane %v1949, 1
        %v1954 = vsel %vm1390, %v1952, %v1953
        %v1957 = vadd.f32 %v1932, %v1954
        %v1958 = vadd.f32 %v1933, %v1953
        %s1959 = sadd.s32 %s1372, 29
        %s1960 = sld [smem:[#allocation10 + %s1959]]
        %v1961 = vstv %s1960
        %v1962 = vmul.f32 %v1320, %v1961
        %v1963 = vmul.f32 %v1321, %v1961
        %v1966 = vrot.slane %v1962, 2
        %v1967 = vrot.slane %v1963, 2
        %v1968 = vsel %vm1416, %v1966, %v1967
        %v1971 = vadd.f32 %v1946, %v1968
        %v1972 = vadd.f32 %v1947, %v1967
        %v1973 = vmul.f32 %v1324, %v1961
        %v1974 = vmul.f32 %v1325, %v1961
        %v1977 = vrot.slane %v1973, 2
        %v1978 = vrot.slane %v1974, 2
        %v1979 = vsel %vm1416, %v1977, %v1978
        %v1982 = vadd.f32 %v1957, %v1979
        %v1983 = vadd.f32 %v1958, %v1978
        %s1984 = sadd.s32 %s1372, 30
        %s1985 = sld [smem:[#allocation10 + %s1984]]
        %v1986 = vstv %s1985
        %v1987 = vmul.f32 %v1324, %v1986
        %v1988 = vmul.f32 %v1325, %v1986
        %v1989 = vadd.f32 %v1971, %v1987
        %v1990 = vadd.f32 %v1972, %v1988
        %v1991 = vmul.f32 %v1328, %v1986
        %v1992 = vmul.f32 %v1329, %v1986
        %v1993 = vadd.f32 %v1982, %v1991
        %v1994 = vadd.f32 %v1983, %v1992
        %s1995 = sadd.s32 %s1372, 31
        %s1996 = sld [smem:[#allocation10 + %s1995]]
        %v1997 = vstv %s1996
        %v1998 = vmul.f32 %v1324, %v1997
        %v1999 = vmul.f32 %v1325, %v1997
        %v2002 = vrot.slane %v1998, 1
        %v2003 = vrot.slane %v1999, 1
        %v2004 = vsel %vm1390, %v2002, %v2003
        %v2007 = vadd.f32 %v1989, %v2004
        %v2008 = vadd.f32 %v1990, %v2003
        %v2009 = vmul.f32 %v1328, %v1997
        %v2010 = vmul.f32 %v1329, %v1997
        %v2013 = vrot.slane %v2009, 1
        %v2014 = vrot.slane %v2010, 1
        %v2015 = vsel %vm1390, %v2013, %v2014
        %v2018 = vadd.f32 %v1993, %v2015
        %v2019 = vadd.f32 %v1994, %v2014
        %s2020 = sadd.s32 %s1372, 32
        %s2021 = sld [smem:[#allocation10 + %s2020]]
        %v2022 = vstv %s2021
        %v2023 = vmul.f32 %v1324, %v2022
        %v2024 = vmul.f32 %v1325, %v2022
        %v2027 = vrot.slane %v2023, 2
        %v2028 = vrot.slane %v2024, 2
        %v2029 = vsel %vm1416, %v2027, %v2028
        %v2032 = vadd.f32 %v2007, %v2029
        %v2033 = vadd.f32 %v2008, %v2028
        %v2034 = vmul.f32 %v1328, %v2022
        %v2035 = vmul.f32 %v1329, %v2022
        %v2038 = vrot.slane %v2034, 2
        %v2039 = vrot.slane %v2035, 2
        %v2040 = vsel %vm1416, %v2038, %v2039
        %v2043 = vadd.f32 %v2018, %v2040
        %v2044 = vadd.f32 %v2019, %v2039
        %s2045 = sadd.s32 %s1372, 33
        %s2046 = sld [smem:[#allocation10 + %s2045]]
        %v2047 = vstv %s2046
        %v2048 = vmul.f32 %v1328, %v2047
        %v2049 = vmul.f32 %v1329, %v2047
        %v2050 = vadd.f32 %v2032, %v2048
        %v2051 = vadd.f32 %v2033, %v2049
        %v2052 = vmul.f32 %v1332, %v2047
        %v2053 = vmul.f32 %v1333, %v2047
        %v2054 = vadd.f32 %v2043, %v2052
        %v2055 = vadd.f32 %v2044, %v2053
        %s2056 = sadd.s32 %s1372, 34
        %s2057 = sld [smem:[#allocation10 + %s2056]]
        %v2058 = vstv %s2057
        %v2059 = vmul.f32 %v1328, %v2058
        %v2060 = vmul.f32 %v1329, %v2058
        %v2063 = vrot.slane %v2059, 1
        %v2064 = vrot.slane %v2060, 1
        %v2065 = vsel %vm1390, %v2063, %v2064
        %v2068 = vadd.f32 %v2050, %v2065
        %v2069 = vadd.f32 %v2051, %v2064
        %v2070 = vmul.f32 %v1332, %v2058
        %v2071 = vmul.f32 %v1333, %v2058
        %v2074 = vrot.slane %v2070, 1
        %v2075 = vrot.slane %v2071, 1
        %v2076 = vsel %vm1390, %v2074, %v2075
        %v2079 = vadd.f32 %v2054, %v2076
        %v2080 = vadd.f32 %v2055, %v2075
        %s2081 = sadd.s32 %s1372, 35
        %s2082 = sld [smem:[#allocation10 + %s2081]]
        %v2083 = vstv %s2082
        %v2084 = vmul.f32 %v1328, %v2083
        %v2085 = vmul.f32 %v1329, %v2083
        %v2088 = vrot.slane %v2084, 2
        %v2089 = vrot.slane %v2085, 2
        %v2090 = vsel %vm1416, %v2088, %v2089
        %v2093 = vadd.f32 %v2068, %v2090
        %v2094 = vadd.f32 %v2069, %v2089
        %v2095 = vmul.f32 %v1332, %v2083
        %v2096 = vmul.f32 %v1333, %v2083
        %v2099 = vrot.slane %v2095, 2
        %v2100 = vrot.slane %v2096, 2
        %v2101 = vsel %vm1416, %v2099, %v2100
        %v2104 = vadd.f32 %v2079, %v2101
        %v2105 = vadd.f32 %v2080, %v2100
        %s2106 = sadd.s32 %s1372, 36
        %s2107 = sld [smem:[#allocation10 + %s2106]]
        %v2108 = vstv %s2107
        %v2109 = vmul.f32 %v1336, %v2108
        %v2110 = vmul.f32 %v1337, %v2108
        %v2111 = vadd.f32 %v2093, %v2109
        %v2112 = vadd.f32 %v2094, %v2110
        %v2113 = vmul.f32 %v1340, %v2108
        %v2114 = vmul.f32 %v1341, %v2108
        %v2115 = vadd.f32 %v2104, %v2113
        %v2116 = vadd.f32 %v2105, %v2114
        %s2117 = sadd.s32 %s1372, 37
        %s2118 = sld [smem:[#allocation10 + %s2117]]
        %v2119 = vstv %s2118
        %v2120 = vmul.f32 %v1336, %v2119
        %v2121 = vmul.f32 %v1337, %v2119
        %v2124 = vrot.slane %v2120, 1
        %v2125 = vrot.slane %v2121, 1
        %v2126 = vsel %vm1390, %v2124, %v2125
        %v2129 = vadd.f32 %v2111, %v2126
        %v2130 = vadd.f32 %v2112, %v2125
        %v2131 = vmul.f32 %v1340, %v2119
        %v2132 = vmul.f32 %v1341, %v2119
        %v2135 = vrot.slane %v2131, 1
        %v2136 = vrot.slane %v2132, 1
        %v2137 = vsel %vm1390, %v2135, %v2136
        %v2140 = vadd.f32 %v2115, %v2137
        %v2141 = vadd.f32 %v2116, %v2136
        %s2142 = sadd.s32 %s1372, 38
        %s2143 = sld [smem:[#allocation10 + %s2142]]
        %v2144 = vstv %s2143
        %v2145 = vmul.f32 %v1336, %v2144
        %v2146 = vmul.f32 %v1337, %v2144
        %v2149 = vrot.slane %v2145, 2
        %v2150 = vrot.slane %v2146, 2
        %v2151 = vsel %vm1416, %v2149, %v2150
        %v2154 = vadd.f32 %v2129, %v2151
        %v2155 = vadd.f32 %v2130, %v2150
        %v2156 = vmul.f32 %v1340, %v2144
        %v2157 = vmul.f32 %v1341, %v2144
        %v2160 = vrot.slane %v2156, 2
        %v2161 = vrot.slane %v2157, 2
        %v2162 = vsel %vm1416, %v2160, %v2161
        %v2165 = vadd.f32 %v2140, %v2162
        %v2166 = vadd.f32 %v2141, %v2161
        %s2167 = sadd.s32 %s1372, 39
        %s2168 = sld [smem:[#allocation10 + %s2167]]
        %v2169 = vstv %s2168
        %v2170 = vmul.f32 %v1340, %v2169
        %v2171 = vmul.f32 %v1341, %v2169
        %v2172 = vadd.f32 %v2154, %v2170
        %v2173 = vadd.f32 %v2155, %v2171
        %v2174 = vmul.f32 %v1344, %v2169
        %v2175 = vmul.f32 %v1345, %v2169
        %v2176 = vadd.f32 %v2165, %v2174
        %v2177 = vadd.f32 %v2166, %v2175
        %s2178 = sadd.s32 %s1372, 40
        %s2179 = sld [smem:[#allocation10 + %s2178]]
        %v2180 = vstv %s2179
        %v2181 = vmul.f32 %v1340, %v2180
        %v2182 = vmul.f32 %v1341, %v2180
        %v2185 = vrot.slane %v2181, 1
        %v2186 = vrot.slane %v2182, 1
        %v2187 = vsel %vm1390, %v2185, %v2186
        %v2190 = vadd.f32 %v2172, %v2187
        %v2191 = vadd.f32 %v2173, %v2186
        %v2192 = vmul.f32 %v1344, %v2180
        %v2193 = vmul.f32 %v1345, %v2180
        %v2196 = vrot.slane %v2192, 1
        %v2197 = vrot.slane %v2193, 1
        %v2198 = vsel %vm1390, %v2196, %v2197
        %v2201 = vadd.f32 %v2176, %v2198
        %v2202 = vadd.f32 %v2177, %v2197
        %s2203 = sadd.s32 %s1372, 41
        %s2204 = sld [smem:[#allocation10 + %s2203]]
        %v2205 = vstv %s2204
        %v2206 = vmul.f32 %v1340, %v2205
        %v2207 = vmul.f32 %v1341, %v2205
        %v2210 = vrot.slane %v2206, 2
        %v2211 = vrot.slane %v2207, 2
        %v2212 = vsel %vm1416, %v2210, %v2211
        %v2215 = vadd.f32 %v2190, %v2212
        %v2216 = vadd.f32 %v2191, %v2211
        %v2217 = vmul.f32 %v1344, %v2205
        %v2218 = vmul.f32 %v1345, %v2205
        %v2221 = vrot.slane %v2217, 2
        %v2222 = vrot.slane %v2218, 2
        %v2223 = vsel %vm1416, %v2221, %v2222
        %v2226 = vadd.f32 %v2201, %v2223
        %v2227 = vadd.f32 %v2202, %v2222
        %s2228 = sadd.s32 %s1372, 42
        %s2229 = sld [smem:[#allocation10 + %s2228]]
        %v2230 = vstv %s2229
        %v2231 = vmul.f32 %v1344, %v2230
        %v2232 = vmul.f32 %v1345, %v2230
        %v2233 = vadd.f32 %v2215, %v2231
        %v2234 = vadd.f32 %v2216, %v2232
        %v2235 = vmul.f32 %v1348, %v2230
        %v2236 = vmul.f32 %v1349, %v2230
        %v2237 = vadd.f32 %v2226, %v2235
        %v2238 = vadd.f32 %v2227, %v2236
        %s2239 = sadd.s32 %s1372, 43
        %s2240 = sld [smem:[#allocation10 + %s2239]]
        %v2241 = vstv %s2240
        %v2242 = vmul.f32 %v1344, %v2241
        %v2243 = vmul.f32 %v1345, %v2241
        %v2246 = vrot.slane %v2242, 1
        %v2247 = vrot.slane %v2243, 1
        %v2248 = vsel %vm1390, %v2246, %v2247
        %v2251 = vadd.f32 %v2233, %v2248
        %v2252 = vadd.f32 %v2234, %v2247
        %v2253 = vmul.f32 %v1348, %v2241
        %v2254 = vmul.f32 %v1349, %v2241
        %v2257 = vrot.slane %v2253, 1
        %v2258 = vrot.slane %v2254, 1
        %v2259 = vsel %vm1390, %v2257, %v2258
        %v2262 = vadd.f32 %v2237, %v2259
        %v2263 = vadd.f32 %v2238, %v2258
        %s2264 = sadd.s32 %s1372, 44
        %s2265 = sld [smem:[#allocation10 + %s2264]]
        %v2266 = vstv %s2265
        %v2267 = vmul.f32 %v1344, %v2266
        %v2268 = vmul.f32 %v1345, %v2266
        %v2271 = vrot.slane %v2267, 2
        %v2272 = vrot.slane %v2268, 2
        %v2273 = vsel %vm1416, %v2271, %v2272
        %v2276 = vadd.f32 %v2251, %v2273
        %v2277 = vadd.f32 %v2252, %v2272
        %v2278 = vmul.f32 %v1348, %v2266
        %v2279 = vmul.f32 %v1349, %v2266
        %v2282 = vrot.slane %v2278, 2
        %v2283 = vrot.slane %v2279, 2
        %v2284 = vsel %vm1416, %v2282, %v2283
        %v2287 = vadd.f32 %v2262, %v2284
        %v2288 = vadd.f32 %v2263, %v2283
        %s2289 = sadd.s32 %s1372, 45
        %s2290 = sld [smem:[#allocation10 + %s2289]]
        %v2291 = vstv %s2290
        %v2292 = vmul.f32 %v1352, %v2291
        %v2293 = vmul.f32 %v1353, %v2291
        %v2294 = vadd.f32 %v2276, %v2292
        %v2295 = vadd.f32 %v2277, %v2293
        %v2296 = vmul.f32 %v1356, %v2291
        %v2297 = vmul.f32 %v1357, %v2291
        %v2298 = vadd.f32 %v2287, %v2296
        %v2299 = vadd.f32 %v2288, %v2297
        %s2300 = sadd.s32 %s1372, 46
        %s2301 = sld [smem:[#allocation10 + %s2300]]
        %v2302 = vstv %s2301
        %v2303 = vmul.f32 %v1352, %v2302
        %v2304 = vmul.f32 %v1353, %v2302
        %v2307 = vrot.slane %v2303, 1
        %v2308 = vrot.slane %v2304, 1
        %v2309 = vsel %vm1390, %v2307, %v2308
        %v2312 = vadd.f32 %v2294, %v2309
        %v2313 = vadd.f32 %v2295, %v2308
        %v2314 = vmul.f32 %v1356, %v2302
        %v2315 = vmul.f32 %v1357, %v2302
        %v2318 = vrot.slane %v2314, 1
        %v2319 = vrot.slane %v2315, 1
        %v2320 = vsel %vm1390, %v2318, %v2319
        %v2323 = vadd.f32 %v2298, %v2320
        %v2324 = vadd.f32 %v2299, %v2319
        %s2325 = sadd.s32 %s1372, 47
        %s2326 = sld [smem:[#allocation10 + %s2325]]
        %v2327 = vstv %s2326
        %v2328 = vmul.f32 %v1352, %v2327
        %v2329 = vmul.f32 %v1353, %v2327
        %v2332 = vrot.slane %v2328, 2
        %v2333 = vrot.slane %v2329, 2
        %v2334 = vsel %vm1416, %v2332, %v2333
        %v2337 = vadd.f32 %v2312, %v2334
        %v2338 = vadd.f32 %v2313, %v2333
        %v2339 = vmul.f32 %v1356, %v2327
        %v2340 = vmul.f32 %v1357, %v2327
        %v2343 = vrot.slane %v2339, 2
        %v2344 = vrot.slane %v2340, 2
        %v2345 = vsel %vm1416, %v2343, %v2344
        %v2348 = vadd.f32 %v2323, %v2345
        %v2349 = vadd.f32 %v2324, %v2344
        %s2350 = sadd.s32 %s1372, 48
        %s2351 = sld [smem:[#allocation10 + %s2350]]
        %v2352 = vstv %s2351
        %v2353 = vmul.f32 %v1356, %v2352
        %v2354 = vmul.f32 %v1357, %v2352
        %v2355 = vadd.f32 %v2337, %v2353
        %v2356 = vadd.f32 %v2338, %v2354
        %v2357 = vmul.f32 %v1360, %v2352
        %v2358 = vmul.f32 %v1361, %v2352
        %v2359 = vadd.f32 %v2348, %v2357
        %v2360 = vadd.f32 %v2349, %v2358
        %s2361 = sadd.s32 %s1372, 49
        %s2362 = sld [smem:[#allocation10 + %s2361]]
        %v2363 = vstv %s2362
        %v2364 = vmul.f32 %v1356, %v2363
        %v2365 = vmul.f32 %v1357, %v2363
        %v2368 = vrot.slane %v2364, 1
        %v2369 = vrot.slane %v2365, 1
        %v2370 = vsel %vm1390, %v2368, %v2369
        %v2373 = vadd.f32 %v2355, %v2370
        %v2374 = vadd.f32 %v2356, %v2369
        %v2375 = vmul.f32 %v1360, %v2363
        %v2376 = vmul.f32 %v1361, %v2363
        %v2379 = vrot.slane %v2375, 1
        %v2380 = vrot.slane %v2376, 1
        %v2381 = vsel %vm1390, %v2379, %v2380
        %v2384 = vadd.f32 %v2359, %v2381
        %v2385 = vadd.f32 %v2360, %v2380
        %s2386 = sadd.s32 %s1372, 50
        %s2387 = sld [smem:[#allocation10 + %s2386]]
        %v2388 = vstv %s2387
        %v2389 = vmul.f32 %v1356, %v2388
        %v2390 = vmul.f32 %v1357, %v2388
        %v2393 = vrot.slane %v2389, 2
        %v2394 = vrot.slane %v2390, 2
        %v2395 = vsel %vm1416, %v2393, %v2394
        %v2398 = vadd.f32 %v2373, %v2395
        %v2399 = vadd.f32 %v2374, %v2394
        %v2400 = vmul.f32 %v1360, %v2388
        %v2401 = vmul.f32 %v1361, %v2388
        %v2404 = vrot.slane %v2400, 2
        %v2405 = vrot.slane %v2401, 2
        %v2406 = vsel %vm1416, %v2404, %v2405
        %v2409 = vadd.f32 %v2384, %v2406
        %v2410 = vadd.f32 %v2385, %v2405
        %s2411 = sadd.s32 %s1372, 51
        %s2412 = sld [smem:[#allocation10 + %s2411]]
        %v2413 = vstv %s2412
        %v2414 = vmul.f32 %v1360, %v2413
        %v2415 = vmul.f32 %v1361, %v2413
        %v2416 = vadd.f32 %v2398, %v2414
        %v2417 = vadd.f32 %v2399, %v2415
        %v2418 = vmul.f32 %v1364, %v2413
        %v2419 = vmul.f32 %v1365, %v2413
        %v2420 = vadd.f32 %v2409, %v2418
        %v2421 = vadd.f32 %v2410, %v2419
        %s2422 = sadd.s32 %s1372, 52
        %s2423 = sld [smem:[#allocation10 + %s2422]]
        %v2424 = vstv %s2423
        %v2425 = vmul.f32 %v1360, %v2424
        %v2426 = vmul.f32 %v1361, %v2424
        %v2429 = vrot.slane %v2425, 1
        %v2430 = vrot.slane %v2426, 1
        %v2431 = vsel %vm1390, %v2429, %v2430
        %v2434 = vadd.f32 %v2416, %v2431
        %v2435 = vadd.f32 %v2417, %v2430
        %v2436 = vmul.f32 %v1364, %v2424
        %v2437 = vmul.f32 %v1365, %v2424
        %v2440 = vrot.slane %v2436, 1
        %v2441 = vrot.slane %v2437, 1
        %v2442 = vsel %vm1390, %v2440, %v2441
        %v2445 = vadd.f32 %v2420, %v2442
        %v2446 = vadd.f32 %v2421, %v2441
        %s2447 = sadd.s32 %s1372, 53
        %s2448 = sld [smem:[#allocation10 + %s2447]]
        %v2449 = vstv %s2448
        %v2450 = vmul.f32 %v1360, %v2449
        %v2451 = vmul.f32 %v1361, %v2449
        %v2454 = vrot.slane %v2450, 2
        %v2455 = vrot.slane %v2451, 2
        %v2456 = vsel %vm1416, %v2454, %v2455
        %v2459 = vadd.f32 %v2434, %v2456
        %v2460 = vadd.f32 %v2435, %v2455
        %v2461 = vmul.f32 %v1364, %v2449
        %v2462 = vmul.f32 %v1365, %v2449
        %v2465 = vrot.slane %v2461, 2
        %v2466 = vrot.slane %v2462, 2
        %v2467 = vsel %vm1416, %v2465, %v2466
        %v2470 = vadd.f32 %v2445, %v2467
        %v2471 = vadd.f32 %v2446, %v2466
        %v2472 = vmax.f32 %v2459, %v2470
        %v2473 = vmax.f32 %v2460, %v2471
        %2474 = vst [vmem:[#allocation5] sm:$0xff] %v2472
        %2475 = vst [vmem:[#allocation5 + $0x8] sm:$0x1f] %v2473
        %v2476 = vld [vmem:[#allocation5] ss:$2 sm:$0x3f]
        %s2477 = scalar_lea.vmem [#allocation5], 1
        %v2478 = vld [vmem:[%s2477] ss:$2 sm:$0x3f]
        %v2479 = vmax.f32 %v2476, %v2478
        %s2480 = sld [smem:[#allocation11 + %s1367]]
        %v2481 = vstv %s2480
        %v2482 = vadd.f32 %v2479, %v2481
        %v2483 = vmax.f32 %v2482, 0.0
        %s2484 = smul.u32 %s1367, 8
        %s2485 = scalar_lea.vmem [#allocation4], %s2484
        %2486 = vst [vmem:[%s2485] sm:$0x3f] %v2483
      $region87: #{image_classification_forward.1} parent=79 // loop_footer
        %s1371 = sadd.s32 1, %s1367
      $region88: #{image_classification_forward.1} parent=79 // loop_footer_branch
        %1366 = sbr.rel target = $region84
      $region89: #{image_classification_forward.1} parent=79 // loop_exit
        _
      %v2487 = vld [vmem:[#allocation4] sm:$0x3f]
      %s2488 = smul.u32 %s1261, 96
      %s2489 = scalar_lea.vmem [#allocation3], %s2488
      %2490 = vst [vmem:[%s2489] sm:$0x3f] %v2487
      %s2491 = scalar_lea.vmem [#allocation4], 8
      %v2492 = vld [vmem:[%s2491] sm:$0x3f]
      %2493 = vst [vmem:[%s2489 + $0x6] sm:$0x3f] %v2492
      %s2494 = scalar_lea.vmem [#allocation4], 16
      %v2495 = vld [vmem:[%s2494] sm:$0x3f]
      %2496 = vst [vmem:[%s2489 + $0xc] sm:$0x3f] %v2495
      %s2497 = scalar_lea.vmem [#allocation4], 24
      %v2498 = vld [vmem:[%s2497] sm:$0x3f]
      %2499 = vst [vmem:[%s2489 + $0x12] sm:$0x3f] %v2498
      %s2500 = scalar_lea.vmem [#allocation4], 32
      %v2501 = vld [vmem:[%s2500] sm:$0x3f]
      %2502 = vst [vmem:[%s2489 + $0x18] sm:$0x3f] %v2501
      %s2503 = scalar_lea.vmem [#allocation4], 40
      %v2504 = vld [vmem:[%s2503] sm:$0x3f]
      %2505 = vst [vmem:[%s2489 + $0x1e] sm:$0x3f] %v2504
      %s2506 = scalar_lea.vmem [#allocation4], 48
      %v2507 = vld [vmem:[%s2506] sm:$0x3f]
      %2508 = vst [vmem:[%s2489 + $0x24] sm:$0x3f] %v2507
      %s2509 = scalar_lea.vmem [#allocation4], 56
      %v2510 = vld [vmem:[%s2509] sm:$0x3f]
      %2511 = vst [vmem:[%s2489 + $0x2a] sm:$0x3f] %v2510
      %s2512 = scalar_lea.vmem [#allocation4], 64
      %v2513 = vld [vmem:[%s2512] sm:$0x3f]
      %2514 = vst [vmem:[%s2489 + $0x30] sm:$0x3f] %v2513
      %s2515 = scalar_lea.vmem [#allocation4], 72
      %v2516 = vld [vmem:[%s2515] sm:$0x3f]
      %2517 = vst [vmem:[%s2489 + $0x36] sm:$0x3f] %v2516
      %s2518 = scalar_lea.vmem [#allocation4], 80
      %v2519 = vld [vmem:[%s2518] sm:$0x3f]
      %2520 = vst [vmem:[%s2489 + $0x3c] sm:$0x3f] %v2519
      %s2521 = scalar_lea.vmem [#allocation4], 88
      %v2522 = vld [vmem:[%s2521] sm:$0x3f]
      %2523 = vst [vmem:[%s2489 + $0x42] sm:$0x3f] %v2522
      %s2524 = scalar_lea.vmem [#allocation4], 96
      %v2525 = vld [vmem:[%s2524] sm:$0x3f]
      %2526 = vst [vmem:[%s2489 + $0x48] sm:$0x3f] %v2525
      %s2527 = scalar_lea.vmem [#allocation4], 104
      %v2528 = vld [vmem:[%s2527] sm:$0x3f]
      %2529 = vst [vmem:[%s2489 + $0x4e] sm:$0x3f] %v2528
      %s2530 = scalar_lea.vmem [#allocation4], 112
      %v2531 = vld [vmem:[%s2530] sm:$0x3f]
      %2532 = vst [vmem:[%s2489 + $0x54] sm:$0x3f] %v2531
      %s2533 = scalar_lea.vmem [#allocation4], 120
      %v2534 = vld [vmem:[%s2533] sm:$0x3f]
      %2535 = vst [vmem:[%s2489 + $0x5a] sm:$0x3f] %v2534
    $region80: #{image_classification_forward.1} parent=1 // loop_footer
      %s1265 = sadd.s32 1, %s1261
    $region81: #{image_classification_forward.1} parent=1 // loop_footer_branch
      %1260 = sbr.rel target = $region77
    $region82: #{image_classification_forward.1} parent=1 // loop_exit
      _
    %v2536 = vld [vmem:[%s5] sm:$0xff]
    %v2537 = vld [vmem:[%s5 + $0x8] sm:$0xff]
    %v2538 = vld [vmem:[%s5 + $0x10] sm:$0xff]
    %v2539 = vld [vmem:[%s5 + $0x18] sm:$0xff]
    %v2540 = vld [vmem:[%s5 + $0x20] sm:$0xff]
    %v2541 = vld [vmem:[%s5 + $0x28] sm:$0xff]
    %v2542 = vld [vmem:[%s5 + $0x30] sm:$0xff]
    %v2543 = vld [vmem:[%s5 + $0x38] sm:$0xff]
    %v2544 = vld [vmem:[%s5 + $0x40] sm:$0xff]
    %v2545 = vld [vmem:[%s5 + $0x48] sm:$0xff]
    %v2546 = vld [vmem:[%s5 + $0x50] sm:$0xff]
    %v2547 = vld [vmem:[%s5 + $0x58] sm:$0xff]
    %v2548 = vld [vmem:[%s5 + $0x60] sm:$0xff]
    %v2549 = vld [vmem:[%s5 + $0x68] sm:$0xff]
    %v2550 = vld [vmem:[%s5 + $0x70] sm:$0xff]
    %v2551 = vld [vmem:[#allocation3] sm:$0xff]
    %v2552 = vld [vmem:[#allocation3 + $0x8] sm:$0xff]
    %v2553 = vld [vmem:[#allocation3 + $0x10] sm:$0xff]
    %v2554 = vld [vmem:[#allocation3 + $0x18] sm:$0xff]
    %v2555 = vld [vmem:[#allocation3 + $0x20] sm:$0xff]
    %v2556 = vld [vmem:[#allocation3 + $0x28] sm:$0xff]
    %v2557 = vld [vmem:[#allocation3 + $0x30] sm:$0xff]
    %v2558 = vld [vmem:[#allocation3 + $0x38] sm:$0xff]
    %v2559 = vld [vmem:[#allocation3 + $0x40] sm:$0xff]
    %v2560 = vld [vmem:[#allocation3 + $0x48] sm:$0xff]
    %v2561 = vld [vmem:[#allocation3 + $0x50] sm:$0xff]
    %v2562 = vld [vmem:[#allocation3 + $0x58] sm:$0xff]
    %s2563 = scalar_lea.vmem %s5, 120
    %v2564 = vld [vmem:[%s2563] sm:$0xff]
    %v2565 = vld [vmem:[%s2563 + $0x8] sm:$0xff]
    %v2566 = vld [vmem:[%s2563 + $0x10] sm:$0xff]
    %v2567 = vld [vmem:[%s2563 + $0x18] sm:$0xff]
    %v2568 = vld [vmem:[%s2563 + $0x20] sm:$0xff]
    %v2569 = vld [vmem:[%s2563 + $0x28] sm:$0xff]
    %v2570 = vld [vmem:[%s2563 + $0x30] sm:$0xff]
    %v2571 = vld [vmem:[%s2563 + $0x38] sm:$0xff]
    %v2572 = vld [vmem:[%s2563 + $0x40] sm:$0xff]
    %v2573 = vld [vmem:[%s2563 + $0x48] sm:$0xff]
    %v2574 = vld [vmem:[%s2563 + $0x50] sm:$0xff]
    %v2575 = vld [vmem:[%s2563 + $0x58] sm:$0xff]
    %v2576 = vld [vmem:[%s2563 + $0x60] sm:$0xff]
    %v2577 = vld [vmem:[%s2563 + $0x68] sm:$0xff]
    %v2578 = vld [vmem:[%s2563 + $0x70] sm:$0xff]
    %s2579 = scalar_lea.vmem [#allocation3], 96
    %v2580 = vld [vmem:[%s2579] sm:$0xff]
    %v2581 = vld [vmem:[%s2579 + $0x8] sm:$0xff]
    %v2582 = vld [vmem:[%s2579 + $0x10] sm:$0xff]
    %v2583 = vld [vmem:[%s2579 + $0x18] sm:$0xff]
    %v2584 = vld [vmem:[%s2579 + $0x20] sm:$0xff]
    %v2585 = vld [vmem:[%s2579 + $0x28] sm:$0xff]
    %v2586 = vld [vmem:[%s2579 + $0x30] sm:$0xff]
    %v2587 = vld [vmem:[%s2579 + $0x38] sm:$0xff]
    %v2588 = vld [vmem:[%s2579 + $0x40] sm:$0xff]
    %v2589 = vld [vmem:[%s2579 + $0x48] sm:$0xff]
    %v2590 = vld [vmem:[%s2579 + $0x50] sm:$0xff]
    %v2591 = vld [vmem:[%s2579 + $0x58] sm:$0xff]
    %vm2592 = vcmask 785408
    %v2594 = vsel %vm2592, %v2564, 0
    %v2597 = vsel %vm2592, %v2565, 0
    %v2600 = vsel %vm2592, %v2566, 0
    %v2603 = vsel %vm2592, %v2567, 0
    %v2606 = vsel %vm2592, %v2568, 0
    %v2609 = vsel %vm2592, %v2569, 0
    %v2612 = vsel %vm2592, %v2570, 0
    %v2615 = vsel %vm2592, %v2571, 0
    %v2618 = vsel %vm2592, %v2572, 0
    %v2621 = vsel %vm2592, %v2573, 0
    %v2624 = vsel %vm2592, %v2574, 0
    %v2627 = vsel %vm2592, %v2575, 0
    %v2630 = vsel %vm2592, %v2576, 0
    %v2633 = vsel %vm2592, %v2577, 0
    %v2636 = vsel %vm2592, %v2578, 0
    %2638 = vmatprep.subr.mxu0 0.0
    %2639 = vmatpush1.msra.mxu0 0.0
    %2640 = vmatprep.subr.mxu0 0.0
    %2641 = vmatpush1.msra.mxu0 0.0
    %2642 = vmatprep.subr.mxu0 0.0
    %2643 = vmatpush1.msra.mxu0 0.0
    %2644 = vmatprep.subr.mxu0 0.0
    %2645 = vmatpush1.msra.mxu0 0.0
    %2646 = vmatprep.subr.mxu0 0.0
    %2647 = vmatpush1.msra.mxu0 %v2591
    %2648 = vmatprep.subr.mxu0 0.0
    %2649 = vmatpush1.msra.mxu0 %v2590
    %2650 = vmatprep.subr.mxu0 0.0
    %2651 = vmatpush1.msra.mxu0 %v2589
    %2652 = vmatprep.subr.mxu0 0.0
    %2653 = vmatpush1.msra.mxu0 %v2588
    %2654 = vmatprep.subr.mxu0 0.0
    %2655 = vmatpush1.msra.mxu0 %v2587
    %2656 = vmatprep.subr.mxu0 0.0
    %2657 = vmatpush1.msra.mxu0 %v2586
    %2658 = vmatprep.subr.mxu0 0.0
    %2659 = vmatpush1.msra.mxu0 %v2585
    %2660 = vmatprep.subr.mxu0 0.0
    %2661 = vmatpush1.msra.mxu0 %v2584
    %2662 = vmatprep.subr.mxu0 0.0
    %2663 = vmatpush1.msra.mxu0 %v2583
    %2664 = vmatprep.subr.mxu0 0.0
    %2665 = vmatpush1.msra.mxu0 %v2582
    %2666 = vmatprep.subr.mxu0 0.0
    %2667 = vmatpush1.msra.mxu0 %v2581
    %2668 = vmatprep.subr.mxu0 0.0
    %2669 = vmatpush1.msra.mxu0 %v2580
    %2670 = vmatprep.subr.mxu0 0.0
    %2671 = vmatpush2.msra.mxu0 0.0
    %2672 = vmatprep.subr.mxu0 0.0
    %2673 = vmatpush2.msra.mxu0 0.0
    %2674 = vmatprep.subr.mxu0 0.0
    %2675 = vmatpush2.msra.mxu0 0.0
    %2676 = vmatprep.subr.mxu0 0.0
    %2677 = vmatpush2.msra.mxu0 0.0
    %2678 = vmatprep.subr.mxu0 0.0
    %2679 = vmatpush2.msra.mxu0 0.0
    %2680 = vmatprep.subr.mxu0 0.0
    %2681 = vmatpush2.msra.mxu0 0.0
    %2682 = vmatprep.subr.mxu0 0.0
    %2683 = vmatpush2.msra.mxu0 0.0
    %2684 = vmatprep.subr.mxu0 0.0
    %2685 = vmatpush2.msra.mxu0 0.0
    %2686 = vmatprep.subr.mxu0 0.0
    %2687 = vmatpush2.msra.mxu0 0.0
    %2688 = vmatprep.subr.mxu0 0.0
    %2689 = vmatpush2.msra.mxu0 0.0
    %2690 = vmatprep.subr.mxu0 0.0
    %2691 = vmatpush2.msra.mxu0 0.0
    %2692 = vmatprep.subr.mxu0 0.0
    %2693 = vmatpush2.msra.mxu0 0.0
    %2694 = vmatprep.subr.mxu0 0.0
    %2695 = vmatpush2.msra.mxu0 0.0
    %2696 = vmatprep.subr.mxu0 0.0
    %2697 = vmatpush2.msra.mxu0 0.0
    %2698 = vmatprep.subr.mxu0 0.0
    %2699 = vmatpush2.msra.mxu0 0.0
    %2700 = vmatprep.subr.mxu0 0.0
    %2701 = vmatpush2.msra.mxu0 0.0
    %2702 = vmatprep.mubr.f32.mxu0 0.0
    %2703 = vmatmul.mubr.f32.gmra.mxu0 %v2594
    %v2704 = vpop.f32.mrf.mxu0
    %v2705 = vadd.f32 0.0, %v2704
    %v2706 = vpop.f32.mrf.mxu0
    %2707 = vmatprep.mubr.f32.mxu0 0.0
    %2708 = vmatmul.mubr.f32.gmra.mxu0 %v2597
    %v2709 = vpop.f32.mrf.mxu0
    %v2710 = vadd.f32 0.0, %v2709
    %v2711 = vpop.f32.mrf.mxu0
    %2712 = vmatprep.mubr.f32.mxu0 0.0
    %2713 = vmatmul.mubr.f32.gmra.mxu0 %v2600
    %v2714 = vpop.f32.mrf.mxu0
    %v2715 = vadd.f32 0.0, %v2714
    %v2716 = vpop.f32.mrf.mxu0
    %2717 = vmatprep.mubr.f32.mxu0 0.0
    %2718 = vmatmul.mubr.f32.gmra.mxu0 %v2603
    %v2719 = vpop.f32.mrf.mxu0
    %v2720 = vadd.f32 0.0, %v2719
    %v2721 = vpop.f32.mrf.mxu0
    %2722 = vmatprep.mubr.f32.mxu0 0.0
    %2723 = vmatmul.mubr.f32.gmra.mxu0 %v2606
    %v2724 = vpop.f32.mrf.mxu0
    %v2725 = vadd.f32 0.0, %v2724
    %v2726 = vpop.f32.mrf.mxu0
    %2727 = vmatprep.mubr.f32.mxu0 0.0
    %2728 = vmatmul.mubr.f32.gmra.mxu0 %v2609
    %v2729 = vpop.f32.mrf.mxu0
    %v2730 = vadd.f32 0.0, %v2729
    %v2731 = vpop.f32.mrf.mxu0
    %2732 = vmatprep.mubr.f32.mxu0 0.0
    %2733 = vmatmul.mubr.f32.gmra.mxu0 %v2612
    %v2734 = vpop.f32.mrf.mxu0
    %v2735 = vadd.f32 0.0, %v2734
    %v2736 = vpop.f32.mrf.mxu0
    %2737 = vmatprep.mubr.f32.mxu0 0.0
    %2738 = vmatmul.mubr.f32.gmra.mxu0 %v2615
    %v2739 = vpop.f32.mrf.mxu0
    %v2740 = vadd.f32 0.0, %v2739
    %v2741 = vpop.f32.mrf.mxu0
    %2742 = vmatprep.mubr.f32.mxu0 0.0
    %2743 = vmatmul.mubr.f32.gmra.mxu0 %v2618
    %v2744 = vpop.f32.mrf.mxu0
    %v2745 = vadd.f32 0.0, %v2744
    %v2746 = vpop.f32.mrf.mxu0
    %2747 = vmatprep.mubr.f32.mxu0 0.0
    %2748 = vmatmul.mubr.f32.gmra.mxu0 %v2621
    %v2749 = vpop.f32.mrf.mxu0
    %v2750 = vadd.f32 0.0, %v2749
    %v2751 = vpop.f32.mrf.mxu0
    %2752 = vmatprep.mubr.f32.mxu0 0.0
    %2753 = vmatmul.mubr.f32.gmra.mxu0 %v2624
    %v2754 = vpop.f32.mrf.mxu0
    %v2755 = vadd.f32 0.0, %v2754
    %v2756 = vpop.f32.mrf.mxu0
    %2757 = vmatprep.mubr.f32.mxu0 0.0
    %2758 = vmatmul.mubr.f32.gmra.mxu0 %v2627
    %v2759 = vpop.f32.mrf.mxu0
    %v2760 = vadd.f32 0.0, %v2759
    %v2761 = vpop.f32.mrf.mxu0
    %2762 = vmatprep.mubr.f32.mxu0 0.0
    %2763 = vmatmul.mubr.f32.gmra.mxu0 %v2630
    %v2764 = vpop.f32.mrf.mxu0
    %v2765 = vadd.f32 0.0, %v2764
    %v2766 = vpop.f32.mrf.mxu0
    %2767 = vmatprep.mubr.f32.mxu0 0.0
    %2768 = vmatmul.mubr.f32.gmra.mxu0 %v2633
    %v2769 = vpop.f32.mrf.mxu0
    %v2770 = vadd.f32 0.0, %v2769
    %v2771 = vpop.f32.mrf.mxu0
    %2772 = vmatprep.mubr.f32.mxu0 0.0
    %2773 = vmatmul.mubr.f32.gmra.mxu0 %v2636
    %v2774 = vpop.f32.mrf.mxu0
    %v2775 = vadd.f32 0.0, %v2774
    %v2776 = vpop.f32.mrf.mxu0
    %2777 = vdwg.mxu0
    %v2779 = vsel %vm2592, %v2536, 0
    %v2782 = vsel %vm2592, %v2537, 0
    %v2785 = vsel %vm2592, %v2538, 0
    %v2788 = vsel %vm2592, %v2539, 0
    %v2791 = vsel %vm2592, %v2540, 0
    %v2794 = vsel %vm2592, %v2541, 0
    %v2797 = vsel %vm2592, %v2542, 0
    %v2800 = vsel %vm2592, %v2543, 0
    %v2803 = vsel %vm2592, %v2544, 0
    %v2806 = vsel %vm2592, %v2545, 0
    %v2809 = vsel %vm2592, %v2546, 0
    %v2812 = vsel %vm2592, %v2547, 0
    %v2815 = vsel %vm2592, %v2548, 0
    %v2818 = vsel %vm2592, %v2549, 0
    %v2821 = vsel %vm2592, %v2550, 0
    %2823 = vmatprep.subr.mxu0 0.0
    %2824 = vmatpush1.msra.mxu0 0.0
    %2825 = vmatprep.subr.mxu0 0.0
    %2826 = vmatpush1.msra.mxu0 0.0
    %2827 = vmatprep.subr.mxu0 0.0
    %2828 = vmatpush1.msra.mxu0 0.0
    %2829 = vmatprep.subr.mxu0 0.0
    %2830 = vmatpush1.msra.mxu0 0.0
    %2831 = vmatprep.subr.mxu0 0.0
    %2832 = vmatpush1.msra.mxu0 %v2562
    %2833 = vmatprep.subr.mxu0 0.0
    %2834 = vmatpush1.msra.mxu0 %v2561
    %2835 = vmatprep.subr.mxu0 0.0
    %2836 = vmatpush1.msra.mxu0 %v2560
    %2837 = vmatprep.subr.mxu0 0.0
    %2838 = vmatpush1.msra.mxu0 %v2559
    %2839 = vmatprep.subr.mxu0 0.0
    %2840 = vmatpush1.msra.mxu0 %v2558
    %2841 = vmatprep.subr.mxu0 0.0
    %2842 = vmatpush1.msra.mxu0 %v2557
    %2843 = vmatprep.subr.mxu0 0.0
    %2844 = vmatpush1.msra.mxu0 %v2556
    %2845 = vmatprep.subr.mxu0 0.0
    %2846 = vmatpush1.msra.mxu0 %v2555
    %2847 = vmatprep.subr.mxu0 0.0
    %2848 = vmatpush1.msra.mxu0 %v2554
    %2849 = vmatprep.subr.mxu0 0.0
    %2850 = vmatpush1.msra.mxu0 %v2553
    %2851 = vmatprep.subr.mxu0 0.0
    %2852 = vmatpush1.msra.mxu0 %v2552
    %2853 = vmatprep.subr.mxu0 0.0
    %2854 = vmatpush1.msra.mxu0 %v2551
    %2855 = vmatprep.subr.mxu0 0.0
    %2856 = vmatpush2.msra.mxu0 0.0
    %2857 = vmatprep.subr.mxu0 0.0
    %2858 = vmatpush2.msra.mxu0 0.0
    %2859 = vmatprep.subr.mxu0 0.0
    %2860 = vmatpush2.msra.mxu0 0.0
    %2861 = vmatprep.subr.mxu0 0.0
    %2862 = vmatpush2.msra.mxu0 0.0
    %2863 = vmatprep.subr.mxu0 0.0
    %2864 = vmatpush2.msra.mxu0 0.0
    %2865 = vmatprep.subr.mxu0 0.0
    %2866 = vmatpush2.msra.mxu0 0.0
    %2867 = vmatprep.subr.mxu0 0.0
    %2868 = vmatpush2.msra.mxu0 0.0
    %2869 = vmatprep.subr.mxu0 0.0
    %2870 = vmatpush2.msra.mxu0 0.0
    %2871 = vmatprep.subr.mxu0 0.0
    %2872 = vmatpush2.msra.mxu0 0.0
    %2873 = vmatprep.subr.mxu0 0.0
    %2874 = vmatpush2.msra.mxu0 0.0
    %2875 = vmatprep.subr.mxu0 0.0
    %2876 = vmatpush2.msra.mxu0 0.0
    %2877 = vmatprep.subr.mxu0 0.0
    %2878 = vmatpush2.msra.mxu0 0.0
    %2879 = vmatprep.subr.mxu0 0.0
    %2880 = vmatpush2.msra.mxu0 0.0
    %2881 = vmatprep.subr.mxu0 0.0
    %2882 = vmatpush2.msra.mxu0 0.0
    %2883 = vmatprep.subr.mxu0 0.0
    %2884 = vmatpush2.msra.mxu0 0.0
    %2885 = vmatprep.subr.mxu0 0.0
    %2886 = vmatpush2.msra.mxu0 0.0
    %2887 = vmatprep.mubr.f32.mxu0 0.0
    %2888 = vmatmul.mubr.f32.gmra.mxu0 %v2779
    %v2889 = vpop.f32.mrf.mxu0
    %v2890 = vadd.f32 %v2705, %v2889
    %v2891 = vpop.f32.mrf.mxu0
    %2892 = vmatprep.mubr.f32.mxu0 0.0
    %2893 = vmatmul.mubr.f32.gmra.mxu0 %v2782
    %v2894 = vpop.f32.mrf.mxu0
    %v2895 = vadd.f32 %v2710, %v2894
    %v2896 = vpop.f32.mrf.mxu0
    %2897 = vmatprep.mubr.f32.mxu0 0.0
    %2898 = vmatmul.mubr.f32.gmra.mxu0 %v2785
    %v2899 = vpop.f32.mrf.mxu0
    %v2900 = vadd.f32 %v2715, %v2899
    %v2901 = vpop.f32.mrf.mxu0
    %2902 = vmatprep.mubr.f32.mxu0 0.0
    %2903 = vmatmul.mubr.f32.gmra.mxu0 %v2788
    %v2904 = vpop.f32.mrf.mxu0
    %v2905 = vadd.f32 %v2720, %v2904
    %v2906 = vpop.f32.mrf.mxu0
    %2907 = vmatprep.mubr.f32.mxu0 0.0
    %2908 = vmatmul.mubr.f32.gmra.mxu0 %v2791
    %v2909 = vpop.f32.mrf.mxu0
    %v2910 = vadd.f32 %v2725, %v2909
    %v2911 = vpop.f32.mrf.mxu0
    %2912 = vmatprep.mubr.f32.mxu0 0.0
    %2913 = vmatmul.mubr.f32.gmra.mxu0 %v2794
    %v2914 = vpop.f32.mrf.mxu0
    %v2915 = vadd.f32 %v2730, %v2914
    %v2916 = vpop.f32.mrf.mxu0
    %2917 = vmatprep.mubr.f32.mxu0 0.0
    %2918 = vmatmul.mubr.f32.gmra.mxu0 %v2797
    %v2919 = vpop.f32.mrf.mxu0
    %v2920 = vadd.f32 %v2735, %v2919
    %v2921 = vpop.f32.mrf.mxu0
    %2922 = vmatprep.mubr.f32.mxu0 0.0
    %2923 = vmatmul.mubr.f32.gmra.mxu0 %v2800
    %v2924 = vpop.f32.mrf.mxu0
    %v2925 = vadd.f32 %v2740, %v2924
    %v2926 = vpop.f32.mrf.mxu0
    %2927 = vmatprep.mubr.f32.mxu0 0.0
    %2928 = vmatmul.mubr.f32.gmra.mxu0 %v2803
    %v2929 = vpop.f32.mrf.mxu0
    %v2930 = vadd.f32 %v2745, %v2929
    %v2931 = vpop.f32.mrf.mxu0
    %2932 = vmatprep.mubr.f32.mxu0 0.0
    %2933 = vmatmul.mubr.f32.gmra.mxu0 %v2806
    %v2934 = vpop.f32.mrf.mxu0
    %v2935 = vadd.f32 %v2750, %v2934
    %v2936 = vpop.f32.mrf.mxu0
    %2937 = vmatprep.mubr.f32.mxu0 0.0
    %2938 = vmatmul.mubr.f32.gmra.mxu0 %v2809
    %v2939 = vpop.f32.mrf.mxu0
    %v2940 = vadd.f32 %v2755, %v2939
    %v2941 = vpop.f32.mrf.mxu0
    %2942 = vmatprep.mubr.f32.mxu0 0.0
    %2943 = vmatmul.mubr.f32.gmra.mxu0 %v2812
    %v2944 = vpop.f32.mrf.mxu0
    %v2945 = vadd.f32 %v2760, %v2944
    %v2946 = vpop.f32.mrf.mxu0
    %2947 = vmatprep.mubr.f32.mxu0 0.0
    %2948 = vmatmul.mubr.f32.gmra.mxu0 %v2815
    %v2949 = vpop.f32.mrf.mxu0
    %v2950 = vadd.f32 %v2765, %v2949
    %v2951 = vpop.f32.mrf.mxu0
    %2952 = vmatprep.mubr.f32.mxu0 0.0
    %2953 = vmatmul.mubr.f32.gmra.mxu0 %v2818
    %v2954 = vpop.f32.mrf.mxu0
    %v2955 = vadd.f32 %v2770, %v2954
    %v2956 = vpop.f32.mrf.mxu0
    %2957 = vmatprep.mubr.f32.mxu0 0.0
    %2958 = vmatmul.mubr.f32.gmra.mxu0 %v2821
    %v2959 = vpop.f32.mrf.mxu0
    %v2960 = vadd.f32 %v2775, %v2959
    %v2961 = vpop.f32.mrf.mxu0
    %2962 = vdwg.mxu0
    %s2963 = scalar_lea.vmem %s5, 240
    %v2964 = vld [vmem:[%s2963] sm:$0xff]
    %v2965 = vld [vmem:[%s2963 + $0x8] sm:$0xff]
    %v2966 = vld [vmem:[%s2963 + $0x10] sm:$0xff]
    %v2967 = vld [vmem:[%s2963 + $0x18] sm:$0xff]
    %v2968 = vld [vmem:[%s2963 + $0x20] sm:$0xff]
    %v2969 = vld [vmem:[%s2963 + $0x28] sm:$0xff]
    %v2970 = vld [vmem:[%s2963 + $0x30] sm:$0xff]
    %v2971 = vld [vmem:[%s2963 + $0x38] sm:$0xff]
    %v2972 = vld [vmem:[%s2963 + $0x40] sm:$0xff]
    %v2973 = vld [vmem:[%s2963 + $0x48] sm:$0xff]
    %v2974 = vld [vmem:[%s2963 + $0x50] sm:$0xff]
    %v2975 = vld [vmem:[%s2963 + $0x58] sm:$0xff]
    %v2976 = vld [vmem:[%s2963 + $0x60] sm:$0xff]
    %v2977 = vld [vmem:[%s2963 + $0x68] sm:$0xff]
    %v2978 = vld [vmem:[%s2963 + $0x70] sm:$0xff]
    %s2979 = scalar_lea.vmem [#allocation3], 192
    %v2980 = vld [vmem:[%s2979] sm:$0xff]
    %v2981 = vld [vmem:[%s2979 + $0x8] sm:$0xff]
    %v2982 = vld [vmem:[%s2979 + $0x10] sm:$0xff]
    %v2983 = vld [vmem:[%s2979 + $0x18] sm:$0xff]
    %v2984 = vld [vmem:[%s2979 + $0x20] sm:$0xff]
    %v2985 = vld [vmem:[%s2979 + $0x28] sm:$0xff]
    %v2986 = vld [vmem:[%s2979 + $0x30] sm:$0xff]
    %v2987 = vld [vmem:[%s2979 + $0x38] sm:$0xff]
    %v2988 = vld [vmem:[%s2979 + $0x40] sm:$0xff]
    %v2989 = vld [vmem:[%s2979 + $0x48] sm:$0xff]
    %v2990 = vld [vmem:[%s2979 + $0x50] sm:$0xff]
    %v2991 = vld [vmem:[%s2979 + $0x58] sm:$0xff]
    %v2993 = vsel %vm2592, %v2964, 0
    %v2996 = vsel %vm2592, %v2965, 0
    %v2999 = vsel %vm2592, %v2966, 0
    %v3002 = vsel %vm2592, %v2967, 0
    %v3005 = vsel %vm2592, %v2968, 0
    %v3008 = vsel %vm2592, %v2969, 0
    %v3011 = vsel %vm2592, %v2970, 0
    %v3014 = vsel %vm2592, %v2971, 0
    %v3017 = vsel %vm2592, %v2972, 0
    %v3020 = vsel %vm2592, %v2973, 0
    %v3023 = vsel %vm2592, %v2974, 0
    %v3026 = vsel %vm2592, %v2975, 0
    %v3029 = vsel %vm2592, %v2976, 0
    %v3032 = vsel %vm2592, %v2977, 0
    %v3035 = vsel %vm2592, %v2978, 0
    %3037 = vmatprep.subr.mxu0 0.0
    %3038 = vmatpush1.msra.mxu0 0.0
    %3039 = vmatprep.subr.mxu0 0.0
    %3040 = vmatpush1.msra.mxu0 0.0
    %3041 = vmatprep.subr.mxu0 0.0
    %3042 = vmatpush1.msra.mxu0 0.0
    %3043 = vmatprep.subr.mxu0 0.0
    %3044 = vmatpush1.msra.mxu0 0.0
    %3045 = vmatprep.subr.mxu0 0.0
    %3046 = vmatpush1.msra.mxu0 %v2991
    %3047 = vmatprep.subr.mxu0 0.0
    %3048 = vmatpush1.msra.mxu0 %v2990
    %3049 = vmatprep.subr.mxu0 0.0
    %3050 = vmatpush1.msra.mxu0 %v2989
    %3051 = vmatprep.subr.mxu0 0.0
    %3052 = vmatpush1.msra.mxu0 %v2988
    %3053 = vmatprep.subr.mxu0 0.0
    %3054 = vmatpush1.msra.mxu0 %v2987
    %3055 = vmatprep.subr.mxu0 0.0
    %3056 = vmatpush1.msra.mxu0 %v2986
    %3057 = vmatprep.subr.mxu0 0.0
    %3058 = vmatpush1.msra.mxu0 %v2985
    %3059 = vmatprep.subr.mxu0 0.0
    %3060 = vmatpush1.msra.mxu0 %v2984
    %3061 = vmatprep.subr.mxu0 0.0
    %3062 = vmatpush1.msra.mxu0 %v2983
    %3063 = vmatprep.subr.mxu0 0.0
    %3064 = vmatpush1.msra.mxu0 %v2982
    %3065 = vmatprep.subr.mxu0 0.0
    %3066 = vmatpush1.msra.mxu0 %v2981
    %3067 = vmatprep.subr.mxu0 0.0
    %3068 = vmatpush1.msra.mxu0 %v2980
    %3069 = vmatprep.subr.mxu0 0.0
    %3070 = vmatpush2.msra.mxu0 0.0
    %3071 = vmatprep.subr.mxu0 0.0
    %3072 = vmatpush2.msra.mxu0 0.0
    %3073 = vmatprep.subr.mxu0 0.0
    %3074 = vmatpush2.msra.mxu0 0.0
    %3075 = vmatprep.subr.mxu0 0.0
    %3076 = vmatpush2.msra.mxu0 0.0
    %3077 = vmatprep.subr.mxu0 0.0
    %3078 = vmatpush2.msra.mxu0 0.0
    %3079 = vmatprep.subr.mxu0 0.0
    %3080 = vmatpush2.msra.mxu0 0.0
    %3081 = vmatprep.subr.mxu0 0.0
    %3082 = vmatpush2.msra.mxu0 0.0
    %3083 = vmatprep.subr.mxu0 0.0
    %3084 = vmatpush2.msra.mxu0 0.0
    %3085 = vmatprep.subr.mxu0 0.0
    %3086 = vmatpush2.msra.mxu0 0.0
    %3087 = vmatprep.subr.mxu0 0.0
    %3088 = vmatpush2.msra.mxu0 0.0
    %3089 = vmatprep.subr.mxu0 0.0
    %3090 = vmatpush2.msra.mxu0 0.0
    %3091 = vmatprep.subr.mxu0 0.0
    %3092 = vmatpush2.msra.mxu0 0.0
    %3093 = vmatprep.subr.mxu0 0.0
    %3094 = vmatpush2.msra.mxu0 0.0
    %3095 = vmatprep.subr.mxu0 0.0
    %3096 = vmatpush2.msra.mxu0 0.0
    %3097 = vmatprep.subr.mxu0 0.0
    %3098 = vmatpush2.msra.mxu0 0.0
    %3099 = vmatprep.subr.mxu0 0.0
    %3100 = vmatpush2.msra.mxu0 0.0
    %3101 = vmatprep.mubr.f32.mxu0 0.0
    %3102 = vmatmul.mubr.f32.gmra.mxu0 %v2993
    %v3103 = vpop.f32.mrf.mxu0
    %v3104 = vadd.f32 0.0, %v3103
    %v3105 = vpop.f32.mrf.mxu0
    %3106 = vmatprep.mubr.f32.mxu0 0.0
    %3107 = vmatmul.mubr.f32.gmra.mxu0 %v2996
    %v3108 = vpop.f32.mrf.mxu0
    %v3109 = vadd.f32 0.0, %v3108
    %v3110 = vpop.f32.mrf.mxu0
    %3111 = vmatprep.mubr.f32.mxu0 0.0
    %3112 = vmatmul.mubr.f32.gmra.mxu0 %v2999
    %v3113 = vpop.f32.mrf.mxu0
    %v3114 = vadd.f32 0.0, %v3113
    %v3115 = vpop.f32.mrf.mxu0
    %3116 = vmatprep.mubr.f32.mxu0 0.0
    %3117 = vmatmul.mubr.f32.gmra.mxu0 %v3002
    %v3118 = vpop.f32.mrf.mxu0
    %v3119 = vadd.f32 0.0, %v3118
    %v3120 = vpop.f32.mrf.mxu0
    %3121 = vmatprep.mubr.f32.mxu0 0.0
    %3122 = vmatmul.mubr.f32.gmra.mxu0 %v3005
    %v3123 = vpop.f32.mrf.mxu0
    %v3124 = vadd.f32 0.0, %v3123
    %v3125 = vpop.f32.mrf.mxu0
    %3126 = vmatprep.mubr.f32.mxu0 0.0
    %3127 = vmatmul.mubr.f32.gmra.mxu0 %v3008
    %v3128 = vpop.f32.mrf.mxu0
    %v3129 = vadd.f32 0.0, %v3128
    %v3130 = vpop.f32.mrf.mxu0
    %3131 = vmatprep.mubr.f32.mxu0 0.0
    %3132 = vmatmul.mubr.f32.gmra.mxu0 %v3011
    %v3133 = vpop.f32.mrf.mxu0
    %v3134 = vadd.f32 0.0, %v3133
    %v3135 = vpop.f32.mrf.mxu0
    %3136 = vmatprep.mubr.f32.mxu0 0.0
    %3137 = vmatmul.mubr.f32.gmra.mxu0 %v3014
    %v3138 = vpop.f32.mrf.mxu0
    %v3139 = vadd.f32 0.0, %v3138
    %v3140 = vpop.f32.mrf.mxu0
    %3141 = vmatprep.mubr.f32.mxu0 0.0
    %3142 = vmatmul.mubr.f32.gmra.mxu0 %v3017
    %v3143 = vpop.f32.mrf.mxu0
    %v3144 = vadd.f32 0.0, %v3143
    %v3145 = vpop.f32.mrf.mxu0
    %3146 = vmatprep.mubr.f32.mxu0 0.0
    %3147 = vmatmul.mubr.f32.gmra.mxu0 %v3020
    %v3148 = vpop.f32.mrf.mxu0
    %v3149 = vadd.f32 0.0, %v3148
    %v3150 = vpop.f32.mrf.mxu0
    %3151 = vmatprep.mubr.f32.mxu0 0.0
    %3152 = vmatmul.mubr.f32.gmra.mxu0 %v3023
    %v3153 = vpop.f32.mrf.mxu0
    %v3154 = vadd.f32 0.0, %v3153
    %v3155 = vpop.f32.mrf.mxu0
    %3156 = vmatprep.mubr.f32.mxu0 0.0
    %3157 = vmatmul.mubr.f32.gmra.mxu0 %v3026
    %v3158 = vpop.f32.mrf.mxu0
    %v3159 = vadd.f32 0.0, %v3158
    %v3160 = vpop.f32.mrf.mxu0
    %3161 = vmatprep.mubr.f32.mxu0 0.0
    %3162 = vmatmul.mubr.f32.gmra.mxu0 %v3029
    %v3163 = vpop.f32.mrf.mxu0
    %v3164 = vadd.f32 0.0, %v3163
    %v3165 = vpop.f32.mrf.mxu0
    %3166 = vmatprep.mubr.f32.mxu0 0.0
    %3167 = vmatmul.mubr.f32.gmra.mxu0 %v3032
    %v3168 = vpop.f32.mrf.mxu0
    %v3169 = vadd.f32 0.0, %v3168
    %v3170 = vpop.f32.mrf.mxu0
    %3171 = vmatprep.mubr.f32.mxu0 0.0
    %3172 = vmatmul.mubr.f32.gmra.mxu0 %v3035
    %v3173 = vpop.f32.mrf.mxu0
    %v3174 = vadd.f32 0.0, %v3173
    %v3175 = vpop.f32.mrf.mxu0
    %3176 = vdwg.mxu0
    %v3177 = vadd.f32 %v2890, %v3104
    %v3178 = vadd.f32 %v2895, %v3109
    %v3179 = vadd.f32 %v2900, %v3114
    %v3180 = vadd.f32 %v2905, %v3119
    %v3181 = vadd.f32 %v2910, %v3124
    %v3182 = vadd.f32 %v2915, %v3129
    %v3183 = vadd.f32 %v2920, %v3134
    %v3184 = vadd.f32 %v2925, %v3139
    %v3185 = vadd.f32 %v2930, %v3144
    %v3186 = vadd.f32 %v2935, %v3149
    %v3187 = vadd.f32 %v2940, %v3154
    %v3188 = vadd.f32 %v2945, %v3159
    %v3189 = vadd.f32 %v2950, %v3164
    %v3190 = vadd.f32 %v2955, %v3169
    %v3191 = vadd.f32 %v2960, %v3174
    %s3192 = scalar_lea.vmem %s5, 360
    %v3193 = vld [vmem:[%s3192] sm:$0xff]
    %v3194 = vld [vmem:[%s3192 + $0x8] sm:$0xff]
    %v3195 = vld [vmem:[%s3192 + $0x10] sm:$0xff]
    %v3196 = vld [vmem:[%s3192 + $0x18] sm:$0xff]
    %v3197 = vld [vmem:[%s3192 + $0x20] sm:$0xff]
    %v3198 = vld [vmem:[%s3192 + $0x28] sm:$0xff]
    %v3199 = vld [vmem:[%s3192 + $0x30] sm:$0xff]
    %v3200 = vld [vmem:[%s3192 + $0x38] sm:$0xff]
    %v3201 = vld [vmem:[%s3192 + $0x40] sm:$0xff]
    %v3202 = vld [vmem:[%s3192 + $0x48] sm:$0xff]
    %v3203 = vld [vmem:[%s3192 + $0x50] sm:$0xff]
    %v3204 = vld [vmem:[%s3192 + $0x58] sm:$0xff]
    %v3205 = vld [vmem:[%s3192 + $0x60] sm:$0xff]
    %v3206 = vld [vmem:[%s3192 + $0x68] sm:$0xff]
    %v3207 = vld [vmem:[%s3192 + $0x70] sm:$0xff]
    %s3208 = scalar_lea.vmem [#allocation3], 288
    %v3209 = vld [vmem:[%s3208] sm:$0xff]
    %v3210 = vld [vmem:[%s3208 + $0x8] sm:$0xff]
    %v3211 = vld [vmem:[%s3208 + $0x10] sm:$0xff]
    %v3212 = vld [vmem:[%s3208 + $0x18] sm:$0xff]
    %v3213 = vld [vmem:[%s3208 + $0x20] sm:$0xff]
    %v3214 = vld [vmem:[%s3208 + $0x28] sm:$0xff]
    %v3215 = vld [vmem:[%s3208 + $0x30] sm:$0xff]
    %v3216 = vld [vmem:[%s3208 + $0x38] sm:$0xff]
    %v3217 = vld [vmem:[%s3208 + $0x40] sm:$0xff]
    %v3218 = vld [vmem:[%s3208 + $0x48] sm:$0xff]
    %v3219 = vld [vmem:[%s3208 + $0x50] sm:$0xff]
    %v3220 = vld [vmem:[%s3208 + $0x58] sm:$0xff]
    %v3222 = vsel %vm2592, %v3193, 0
    %v3225 = vsel %vm2592, %v3194, 0
    %v3228 = vsel %vm2592, %v3195, 0
    %v3231 = vsel %vm2592, %v3196, 0
    %v3234 = vsel %vm2592, %v3197, 0
    %v3237 = vsel %vm2592, %v3198, 0
    %v3240 = vsel %vm2592, %v3199, 0
    %v3243 = vsel %vm2592, %v3200, 0
    %v3246 = vsel %vm2592, %v3201, 0
    %v3249 = vsel %vm2592, %v3202, 0
    %v3252 = vsel %vm2592, %v3203, 0
    %v3255 = vsel %vm2592, %v3204, 0
    %v3258 = vsel %vm2592, %v3205, 0
    %v3261 = vsel %vm2592, %v3206, 0
    %v3264 = vsel %vm2592, %v3207, 0
    %3266 = vmatprep.subr.mxu0 0.0
    %3267 = vmatpush1.msra.mxu0 0.0
    %3268 = vmatprep.subr.mxu0 0.0
    %3269 = vmatpush1.msra.mxu0 0.0
    %3270 = vmatprep.subr.mxu0 0.0
    %3271 = vmatpush1.msra.mxu0 0.0
    %3272 = vmatprep.subr.mxu0 0.0
    %3273 = vmatpush1.msra.mxu0 0.0
    %3274 = vmatprep.subr.mxu0 0.0
    %3275 = vmatpush1.msra.mxu0 %v3220
    %3276 = vmatprep.subr.mxu0 0.0
    %3277 = vmatpush1.msra.mxu0 %v3219
    %3278 = vmatprep.subr.mxu0 0.0
    %3279 = vmatpush1.msra.mxu0 %v3218
    %3280 = vmatprep.subr.mxu0 0.0
    %3281 = vmatpush1.msra.mxu0 %v3217
    %3282 = vmatprep.subr.mxu0 0.0
    %3283 = vmatpush1.msra.mxu0 %v3216
    %3284 = vmatprep.subr.mxu0 0.0
    %3285 = vmatpush1.msra.mxu0 %v3215
    %3286 = vmatprep.subr.mxu0 0.0
    %3287 = vmatpush1.msra.mxu0 %v3214
    %3288 = vmatprep.subr.mxu0 0.0
    %3289 = vmatpush1.msra.mxu0 %v3213
    %3290 = vmatprep.subr.mxu0 0.0
    %3291 = vmatpush1.msra.mxu0 %v3212
    %3292 = vmatprep.subr.mxu0 0.0
    %3293 = vmatpush1.msra.mxu0 %v3211
    %3294 = vmatprep.subr.mxu0 0.0
    %3295 = vmatpush1.msra.mxu0 %v3210
    %3296 = vmatprep.subr.mxu0 0.0
    %3297 = vmatpush1.msra.mxu0 %v3209
    %3298 = vmatprep.subr.mxu0 0.0
    %3299 = vmatpush2.msra.mxu0 0.0
    %3300 = vmatprep.subr.mxu0 0.0
    %3301 = vmatpush2.msra.mxu0 0.0
    %3302 = vmatprep.subr.mxu0 0.0
    %3303 = vmatpush2.msra.mxu0 0.0
    %3304 = vmatprep.subr.mxu0 0.0
    %3305 = vmatpush2.msra.mxu0 0.0
    %3306 = vmatprep.subr.mxu0 0.0
    %3307 = vmatpush2.msra.mxu0 0.0
    %3308 = vmatprep.subr.mxu0 0.0
    %3309 = vmatpush2.msra.mxu0 0.0
    %3310 = vmatprep.subr.mxu0 0.0
    %3311 = vmatpush2.msra.mxu0 0.0
    %3312 = vmatprep.subr.mxu0 0.0
    %3313 = vmatpush2.msra.mxu0 0.0
    %3314 = vmatprep.subr.mxu0 0.0
    %3315 = vmatpush2.msra.mxu0 0.0
    %3316 = vmatprep.subr.mxu0 0.0
    %3317 = vmatpush2.msra.mxu0 0.0
    %3318 = vmatprep.subr.mxu0 0.0
    %3319 = vmatpush2.msra.mxu0 0.0
    %3320 = vmatprep.subr.mxu0 0.0
    %3321 = vmatpush2.msra.mxu0 0.0
    %3322 = vmatprep.subr.mxu0 0.0
    %3323 = vmatpush2.msra.mxu0 0.0
    %3324 = vmatprep.subr.mxu0 0.0
    %3325 = vmatpush2.msra.mxu0 0.0
    %3326 = vmatprep.subr.mxu0 0.0
    %3327 = vmatpush2.msra.mxu0 0.0
    %3328 = vmatprep.subr.mxu0 0.0
    %3329 = vmatpush2.msra.mxu0 0.0
    %3330 = vmatprep.mubr.f32.mxu0 0.0
    %3331 = vmatmul.mubr.f32.gmra.mxu0 %v3222
    %v3332 = vpop.f32.mrf.mxu0
    %v3333 = vadd.f32 0.0, %v3332
    %v3334 = vpop.f32.mrf.mxu0
    %3335 = vmatprep.mubr.f32.mxu0 0.0
    %3336 = vmatmul.mubr.f32.gmra.mxu0 %v3225
    %v3337 = vpop.f32.mrf.mxu0
    %v3338 = vadd.f32 0.0, %v3337
    %v3339 = vpop.f32.mrf.mxu0
    %3340 = vmatprep.mubr.f32.mxu0 0.0
    %3341 = vmatmul.mubr.f32.gmra.mxu0 %v3228
    %v3342 = vpop.f32.mrf.mxu0
    %v3343 = vadd.f32 0.0, %v3342
    %v3344 = vpop.f32.mrf.mxu0
    %3345 = vmatprep.mubr.f32.mxu0 0.0
    %3346 = vmatmul.mubr.f32.gmra.mxu0 %v3231
    %v3347 = vpop.f32.mrf.mxu0
    %v3348 = vadd.f32 0.0, %v3347
    %v3349 = vpop.f32.mrf.mxu0
    %3350 = vmatprep.mubr.f32.mxu0 0.0
    %3351 = vmatmul.mubr.f32.gmra.mxu0 %v3234
    %v3352 = vpop.f32.mrf.mxu0
    %v3353 = vadd.f32 0.0, %v3352
    %v3354 = vpop.f32.mrf.mxu0
    %3355 = vmatprep.mubr.f32.mxu0 0.0
    %3356 = vmatmul.mubr.f32.gmra.mxu0 %v3237
    %v3357 = vpop.f32.mrf.mxu0
    %v3358 = vadd.f32 0.0, %v3357
    %v3359 = vpop.f32.mrf.mxu0
    %3360 = vmatprep.mubr.f32.mxu0 0.0
    %3361 = vmatmul.mubr.f32.gmra.mxu0 %v3240
    %v3362 = vpop.f32.mrf.mxu0
    %v3363 = vadd.f32 0.0, %v3362
    %v3364 = vpop.f32.mrf.mxu0
    %3365 = vmatprep.mubr.f32.mxu0 0.0
    %3366 = vmatmul.mubr.f32.gmra.mxu0 %v3243
    %v3367 = vpop.f32.mrf.mxu0
    %v3368 = vadd.f32 0.0, %v3367
    %v3369 = vpop.f32.mrf.mxu0
    %3370 = vmatprep.mubr.f32.mxu0 0.0
    %3371 = vmatmul.mubr.f32.gmra.mxu0 %v3246
    %v3372 = vpop.f32.mrf.mxu0
    %v3373 = vadd.f32 0.0, %v3372
    %v3374 = vpop.f32.mrf.mxu0
    %3375 = vmatprep.mubr.f32.mxu0 0.0
    %3376 = vmatmul.mubr.f32.gmra.mxu0 %v3249
    %v3377 = vpop.f32.mrf.mxu0
    %v3378 = vadd.f32 0.0, %v3377
    %v3379 = vpop.f32.mrf.mxu0
    %3380 = vmatprep.mubr.f32.mxu0 0.0
    %3381 = vmatmul.mubr.f32.gmra.mxu0 %v3252
    %v3382 = vpop.f32.mrf.mxu0
    %v3383 = vadd.f32 0.0, %v3382
    %v3384 = vpop.f32.mrf.mxu0
    %3385 = vmatprep.mubr.f32.mxu0 0.0
    %3386 = vmatmul.mubr.f32.gmra.mxu0 %v3255
    %v3387 = vpop.f32.mrf.mxu0
    %v3388 = vadd.f32 0.0, %v3387
    %v3389 = vpop.f32.mrf.mxu0
    %3390 = vmatprep.mubr.f32.mxu0 0.0
    %3391 = vmatmul.mubr.f32.gmra.mxu0 %v3258
    %v3392 = vpop.f32.mrf.mxu0
    %v3393 = vadd.f32 0.0, %v3392
    %v3394 = vpop.f32.mrf.mxu0
    %3395 = vmatprep.mubr.f32.mxu0 0.0
    %3396 = vmatmul.mubr.f32.gmra.mxu0 %v3261
    %v3397 = vpop.f32.mrf.mxu0
    %v3398 = vadd.f32 0.0, %v3397
    %v3399 = vpop.f32.mrf.mxu0
    %3400 = vmatprep.mubr.f32.mxu0 0.0
    %3401 = vmatmul.mubr.f32.gmra.mxu0 %v3264
    %v3402 = vpop.f32.mrf.mxu0
    %v3403 = vadd.f32 0.0, %v3402
    %v3404 = vpop.f32.mrf.mxu0
    %3405 = vdwg.mxu0
    %v3406 = vadd.f32 %v3177, %v3333
    %v3407 = vadd.f32 %v3178, %v3338
    %v3408 = vadd.f32 %v3179, %v3343
    %v3409 = vadd.f32 %v3180, %v3348
    %v3410 = vadd.f32 %v3181, %v3353
    %v3411 = vadd.f32 %v3182, %v3358
    %v3412 = vadd.f32 %v3183, %v3363
    %v3413 = vadd.f32 %v3184, %v3368
    %v3414 = vadd.f32 %v3185, %v3373
    %v3415 = vadd.f32 %v3186, %v3378
    %v3416 = vadd.f32 %v3187, %v3383
    %v3417 = vadd.f32 %v3188, %v3388
    %v3418 = vadd.f32 %v3189, %v3393
    %v3419 = vadd.f32 %v3190, %v3398
    %v3420 = vadd.f32 %v3191, %v3403
    %s3421 = scalar_lea.vmem %s5, 480
    %v3422 = vld [vmem:[%s3421] sm:$0xff]
    %v3423 = vld [vmem:[%s3421 + $0x8] sm:$0xff]
    %v3424 = vld [vmem:[%s3421 + $0x10] sm:$0xff]
    %v3425 = vld [vmem:[%s3421 + $0x18] sm:$0xff]
    %v3426 = vld [vmem:[%s3421 + $0x20] sm:$0xff]
    %v3427 = vld [vmem:[%s3421 + $0x28] sm:$0xff]
    %v3428 = vld [vmem:[%s3421 + $0x30] sm:$0xff]
    %v3429 = vld [vmem:[%s3421 + $0x38] sm:$0xff]
    %v3430 = vld [vmem:[%s3421 + $0x40] sm:$0xff]
    %v3431 = vld [vmem:[%s3421 + $0x48] sm:$0xff]
    %v3432 = vld [vmem:[%s3421 + $0x50] sm:$0xff]
    %v3433 = vld [vmem:[%s3421 + $0x58] sm:$0xff]
    %v3434 = vld [vmem:[%s3421 + $0x60] sm:$0xff]
    %v3435 = vld [vmem:[%s3421 + $0x68] sm:$0xff]
    %v3436 = vld [vmem:[%s3421 + $0x70] sm:$0xff]
    %s3437 = scalar_lea.vmem [#allocation3], 384
    %v3438 = vld [vmem:[%s3437] sm:$0xff]
    %v3439 = vld [vmem:[%s3437 + $0x8] sm:$0xff]
    %v3440 = vld [vmem:[%s3437 + $0x10] sm:$0xff]
    %v3441 = vld [vmem:[%s3437 + $0x18] sm:$0xff]
    %v3442 = vld [vmem:[%s3437 + $0x20] sm:$0xff]
    %v3443 = vld [vmem:[%s3437 + $0x28] sm:$0xff]
    %v3444 = vld [vmem:[%s3437 + $0x30] sm:$0xff]
    %v3445 = vld [vmem:[%s3437 + $0x38] sm:$0xff]
    %v3446 = vld [vmem:[%s3437 + $0x40] sm:$0xff]
    %v3447 = vld [vmem:[%s3437 + $0x48] sm:$0xff]
    %v3448 = vld [vmem:[%s3437 + $0x50] sm:$0xff]
    %v3449 = vld [vmem:[%s3437 + $0x58] sm:$0xff]
    %v3451 = vsel %vm2592, %v3422, 0
    %v3454 = vsel %vm2592, %v3423, 0
    %v3457 = vsel %vm2592, %v3424, 0
    %v3460 = vsel %vm2592, %v3425, 0
    %v3463 = vsel %vm2592, %v3426, 0
    %v3466 = vsel %vm2592, %v3427, 0
    %v3469 = vsel %vm2592, %v3428, 0
    %v3472 = vsel %vm2592, %v3429, 0
    %v3475 = vsel %vm2592, %v3430, 0
    %v3478 = vsel %vm2592, %v3431, 0
    %v3481 = vsel %vm2592, %v3432, 0
    %v3484 = vsel %vm2592, %v3433, 0
    %v3487 = vsel %vm2592, %v3434, 0
    %v3490 = vsel %vm2592, %v3435, 0
    %v3493 = vsel %vm2592, %v3436, 0
    %3495 = vmatprep.subr.mxu0 0.0
    %3496 = vmatpush1.msra.mxu0 0.0
    %3497 = vmatprep.subr.mxu0 0.0
    %3498 = vmatpush1.msra.mxu0 0.0
    %3499 = vmatprep.subr.mxu0 0.0
    %3500 = vmatpush1.msra.mxu0 0.0
    %3501 = vmatprep.subr.mxu0 0.0
    %3502 = vmatpush1.msra.mxu0 0.0
    %3503 = vmatprep.subr.mxu0 0.0
    %3504 = vmatpush1.msra.mxu0 %v3449
    %3505 = vmatprep.subr.mxu0 0.0
    %3506 = vmatpush1.msra.mxu0 %v3448
    %3507 = vmatprep.subr.mxu0 0.0
    %3508 = vmatpush1.msra.mxu0 %v3447
    %3509 = vmatprep.subr.mxu0 0.0
    %3510 = vmatpush1.msra.mxu0 %v3446
    %3511 = vmatprep.subr.mxu0 0.0
    %3512 = vmatpush1.msra.mxu0 %v3445
    %3513 = vmatprep.subr.mxu0 0.0
    %3514 = vmatpush1.msra.mxu0 %v3444
    %3515 = vmatprep.subr.mxu0 0.0
    %3516 = vmatpush1.msra.mxu0 %v3443
    %3517 = vmatprep.subr.mxu0 0.0
    %3518 = vmatpush1.msra.mxu0 %v3442
    %3519 = vmatprep.subr.mxu0 0.0
    %3520 = vmatpush1.msra.mxu0 %v3441
    %3521 = vmatprep.subr.mxu0 0.0
    %3522 = vmatpush1.msra.mxu0 %v3440
    %3523 = vmatprep.subr.mxu0 0.0
    %3524 = vmatpush1.msra.mxu0 %v3439
    %3525 = vmatprep.subr.mxu0 0.0
    %3526 = vmatpush1.msra.mxu0 %v3438
    %3527 = vmatprep.subr.mxu0 0.0
    %3528 = vmatpush2.msra.mxu0 0.0
    %3529 = vmatprep.subr.mxu0 0.0
    %3530 = vmatpush2.msra.mxu0 0.0
    %3531 = vmatprep.subr.mxu0 0.0
    %3532 = vmatpush2.msra.mxu0 0.0
    %3533 = vmatprep.subr.mxu0 0.0
    %3534 = vmatpush2.msra.mxu0 0.0
    %3535 = vmatprep.subr.mxu0 0.0
    %3536 = vmatpush2.msra.mxu0 0.0
    %3537 = vmatprep.subr.mxu0 0.0
    %3538 = vmatpush2.msra.mxu0 0.0
    %3539 = vmatprep.subr.mxu0 0.0
    %3540 = vmatpush2.msra.mxu0 0.0
    %3541 = vmatprep.subr.mxu0 0.0
    %3542 = vmatpush2.msra.mxu0 0.0
    %3543 = vmatprep.subr.mxu0 0.0
    %3544 = vmatpush2.msra.mxu0 0.0
    %3545 = vmatprep.subr.mxu0 0.0
    %3546 = vmatpush2.msra.mxu0 0.0
    %3547 = vmatprep.subr.mxu0 0.0
    %3548 = vmatpush2.msra.mxu0 0.0
    %3549 = vmatprep.subr.mxu0 0.0
    %3550 = vmatpush2.msra.mxu0 0.0
    %3551 = vmatprep.subr.mxu0 0.0
    %3552 = vmatpush2.msra.mxu0 0.0
    %3553 = vmatprep.subr.mxu0 0.0
    %3554 = vmatpush2.msra.mxu0 0.0
    %3555 = vmatprep.subr.mxu0 0.0
    %3556 = vmatpush2.msra.mxu0 0.0
    %3557 = vmatprep.subr.mxu0 0.0
    %3558 = vmatpush2.msra.mxu0 0.0
    %3559 = vmatprep.mubr.f32.mxu0 0.0
    %3560 = vmatmul.mubr.f32.gmra.mxu0 %v3451
    %v3561 = vpop.f32.mrf.mxu0
    %v3562 = vadd.f32 0.0, %v3561
    %v3563 = vpop.f32.mrf.mxu0
    %3564 = vmatprep.mubr.f32.mxu0 0.0
    %3565 = vmatmul.mubr.f32.gmra.mxu0 %v3454
    %v3566 = vpop.f32.mrf.mxu0
    %v3567 = vadd.f32 0.0, %v3566
    %v3568 = vpop.f32.mrf.mxu0
    %3569 = vmatprep.mubr.f32.mxu0 0.0
    %3570 = vmatmul.mubr.f32.gmra.mxu0 %v3457
    %v3571 = vpop.f32.mrf.mxu0
    %v3572 = vadd.f32 0.0, %v3571
    %v3573 = vpop.f32.mrf.mxu0
    %3574 = vmatprep.mubr.f32.mxu0 0.0
    %3575 = vmatmul.mubr.f32.gmra.mxu0 %v3460
    %v3576 = vpop.f32.mrf.mxu0
    %v3577 = vadd.f32 0.0, %v3576
    %v3578 = vpop.f32.mrf.mxu0
    %3579 = vmatprep.mubr.f32.mxu0 0.0
    %3580 = vmatmul.mubr.f32.gmra.mxu0 %v3463
    %v3581 = vpop.f32.mrf.mxu0
    %v3582 = vadd.f32 0.0, %v3581
    %v3583 = vpop.f32.mrf.mxu0
    %3584 = vmatprep.mubr.f32.mxu0 0.0
    %3585 = vmatmul.mubr.f32.gmra.mxu0 %v3466
    %v3586 = vpop.f32.mrf.mxu0
    %v3587 = vadd.f32 0.0, %v3586
    %v3588 = vpop.f32.mrf.mxu0
    %3589 = vmatprep.mubr.f32.mxu0 0.0
    %3590 = vmatmul.mubr.f32.gmra.mxu0 %v3469
    %v3591 = vpop.f32.mrf.mxu0
    %v3592 = vadd.f32 0.0, %v3591
    %v3593 = vpop.f32.mrf.mxu0
    %3594 = vmatprep.mubr.f32.mxu0 0.0
    %3595 = vmatmul.mubr.f32.gmra.mxu0 %v3472
    %v3596 = vpop.f32.mrf.mxu0
    %v3597 = vadd.f32 0.0, %v3596
    %v3598 = vpop.f32.mrf.mxu0
    %3599 = vmatprep.mubr.f32.mxu0 0.0
    %3600 = vmatmul.mubr.f32.gmra.mxu0 %v3475
    %v3601 = vpop.f32.mrf.mxu0
    %v3602 = vadd.f32 0.0, %v3601
    %v3603 = vpop.f32.mrf.mxu0
    %3604 = vmatprep.mubr.f32.mxu0 0.0
    %3605 = vmatmul.mubr.f32.gmra.mxu0 %v3478
    %v3606 = vpop.f32.mrf.mxu0
    %v3607 = vadd.f32 0.0, %v3606
    %v3608 = vpop.f32.mrf.mxu0
    %3609 = vmatprep.mubr.f32.mxu0 0.0
    %3610 = vmatmul.mubr.f32.gmra.mxu0 %v3481
    %v3611 = vpop.f32.mrf.mxu0
    %v3612 = vadd.f32 0.0, %v3611
    %v3613 = vpop.f32.mrf.mxu0
    %3614 = vmatprep.mubr.f32.mxu0 0.0
    %3615 = vmatmul.mubr.f32.gmra.mxu0 %v3484
    %v3616 = vpop.f32.mrf.mxu0
    %v3617 = vadd.f32 0.0, %v3616
    %v3618 = vpop.f32.mrf.mxu0
    %3619 = vmatprep.mubr.f32.mxu0 0.0
    %3620 = vmatmul.mubr.f32.gmra.mxu0 %v3487
    %v3621 = vpop.f32.mrf.mxu0
    %v3622 = vadd.f32 0.0, %v3621
    %v3623 = vpop.f32.mrf.mxu0
    %3624 = vmatprep.mubr.f32.mxu0 0.0
    %3625 = vmatmul.mubr.f32.gmra.mxu0 %v3490
    %v3626 = vpop.f32.mrf.mxu0
    %v3627 = vadd.f32 0.0, %v3626
    %v3628 = vpop.f32.mrf.mxu0
    %3629 = vmatprep.mubr.f32.mxu0 0.0
    %3630 = vmatmul.mubr.f32.gmra.mxu0 %v3493
    %v3631 = vpop.f32.mrf.mxu0
    %v3632 = vadd.f32 0.0, %v3631
    %v3633 = vpop.f32.mrf.mxu0
    %3634 = vdwg.mxu0
    %v3635 = vadd.f32 %v3406, %v3562
    %v3636 = vadd.f32 %v3407, %v3567
    %v3637 = vadd.f32 %v3408, %v3572
    %v3638 = vadd.f32 %v3409, %v3577
    %v3639 = vadd.f32 %v3410, %v3582
    %v3640 = vadd.f32 %v3411, %v3587
    %v3641 = vadd.f32 %v3412, %v3592
    %v3642 = vadd.f32 %v3413, %v3597
    %v3643 = vadd.f32 %v3414, %v3602
    %v3644 = vadd.f32 %v3415, %v3607
    %v3645 = vadd.f32 %v3416, %v3612
    %v3646 = vadd.f32 %v3417, %v3617
    %v3647 = vadd.f32 %v3418, %v3622
    %v3648 = vadd.f32 %v3419, %v3627
    %v3649 = vadd.f32 %v3420, %v3632
    %s3650 = scalar_lea.vmem %s5, 600
    %v3651 = vld [vmem:[%s3650] sm:$0xff]
    %v3652 = vld [vmem:[%s3650 + $0x8] sm:$0xff]
    %v3653 = vld [vmem:[%s3650 + $0x10] sm:$0xff]
    %v3654 = vld [vmem:[%s3650 + $0x18] sm:$0xff]
    %v3655 = vld [vmem:[%s3650 + $0x20] sm:$0xff]
    %v3656 = vld [vmem:[%s3650 + $0x28] sm:$0xff]
    %v3657 = vld [vmem:[%s3650 + $0x30] sm:$0xff]
    %v3658 = vld [vmem:[%s3650 + $0x38] sm:$0xff]
    %v3659 = vld [vmem:[%s3650 + $0x40] sm:$0xff]
    %v3660 = vld [vmem:[%s3650 + $0x48] sm:$0xff]
    %v3661 = vld [vmem:[%s3650 + $0x50] sm:$0xff]
    %v3662 = vld [vmem:[%s3650 + $0x58] sm:$0xff]
    %v3663 = vld [vmem:[%s3650 + $0x60] sm:$0xff]
    %v3664 = vld [vmem:[%s3650 + $0x68] sm:$0xff]
    %v3665 = vld [vmem:[%s3650 + $0x70] sm:$0xff]
    %s3666 = scalar_lea.vmem [#allocation3], 480
    %v3667 = vld [vmem:[%s3666] sm:$0xff]
    %v3668 = vld [vmem:[%s3666 + $0x8] sm:$0xff]
    %v3669 = vld [vmem:[%s3666 + $0x10] sm:$0xff]
    %v3670 = vld [vmem:[%s3666 + $0x18] sm:$0xff]
    %v3671 = vld [vmem:[%s3666 + $0x20] sm:$0xff]
    %v3672 = vld [vmem:[%s3666 + $0x28] sm:$0xff]
    %v3673 = vld [vmem:[%s3666 + $0x30] sm:$0xff]
    %v3674 = vld [vmem:[%s3666 + $0x38] sm:$0xff]
    %v3675 = vld [vmem:[%s3666 + $0x40] sm:$0xff]
    %v3676 = vld [vmem:[%s3666 + $0x48] sm:$0xff]
    %v3677 = vld [vmem:[%s3666 + $0x50] sm:$0xff]
    %v3678 = vld [vmem:[%s3666 + $0x58] sm:$0xff]
    %v3680 = vsel %vm2592, %v3651, 0
    %v3683 = vsel %vm2592, %v3652, 0
    %v3686 = vsel %vm2592, %v3653, 0
    %v3689 = vsel %vm2592, %v3654, 0
    %v3692 = vsel %vm2592, %v3655, 0
    %v3695 = vsel %vm2592, %v3656, 0
    %v3698 = vsel %vm2592, %v3657, 0
    %v3701 = vsel %vm2592, %v3658, 0
    %v3704 = vsel %vm2592, %v3659, 0
    %v3707 = vsel %vm2592, %v3660, 0
    %v3710 = vsel %vm2592, %v3661, 0
    %v3713 = vsel %vm2592, %v3662, 0
    %v3716 = vsel %vm2592, %v3663, 0
    %v3719 = vsel %vm2592, %v3664, 0
    %v3722 = vsel %vm2592, %v3665, 0
    %3724 = vmatprep.subr.mxu0 0.0
    %3725 = vmatpush1.msra.mxu0 0.0
    %3726 = vmatprep.subr.mxu0 0.0
    %3727 = vmatpush1.msra.mxu0 0.0
    %3728 = vmatprep.subr.mxu0 0.0
    %3729 = vmatpush1.msra.mxu0 0.0
    %3730 = vmatprep.subr.mxu0 0.0
    %3731 = vmatpush1.msra.mxu0 0.0
    %3732 = vmatprep.subr.mxu0 0.0
    %3733 = vmatpush1.msra.mxu0 %v3678
    %3734 = vmatprep.subr.mxu0 0.0
    %3735 = vmatpush1.msra.mxu0 %v3677
    %3736 = vmatprep.subr.mxu0 0.0
    %3737 = vmatpush1.msra.mxu0 %v3676
    %3738 = vmatprep.subr.mxu0 0.0
    %3739 = vmatpush1.msra.mxu0 %v3675
    %3740 = vmatprep.subr.mxu0 0.0
    %3741 = vmatpush1.msra.mxu0 %v3674
    %3742 = vmatprep.subr.mxu0 0.0
    %3743 = vmatpush1.msra.mxu0 %v3673
    %3744 = vmatprep.subr.mxu0 0.0
    %3745 = vmatpush1.msra.mxu0 %v3672
    %3746 = vmatprep.subr.mxu0 0.0
    %3747 = vmatpush1.msra.mxu0 %v3671
    %3748 = vmatprep.subr.mxu0 0.0
    %3749 = vmatpush1.msra.mxu0 %v3670
    %3750 = vmatprep.subr.mxu0 0.0
    %3751 = vmatpush1.msra.mxu0 %v3669
    %3752 = vmatprep.subr.mxu0 0.0
    %3753 = vmatpush1.msra.mxu0 %v3668
    %3754 = vmatprep.subr.mxu0 0.0
    %3755 = vmatpush1.msra.mxu0 %v3667
    %3756 = vmatprep.subr.mxu0 0.0
    %3757 = vmatpush2.msra.mxu0 0.0
    %3758 = vmatprep.subr.mxu0 0.0
    %3759 = vmatpush2.msra.mxu0 0.0
    %3760 = vmatprep.subr.mxu0 0.0
    %3761 = vmatpush2.msra.mxu0 0.0
    %3762 = vmatprep.subr.mxu0 0.0
    %3763 = vmatpush2.msra.mxu0 0.0
    %3764 = vmatprep.subr.mxu0 0.0
    %3765 = vmatpush2.msra.mxu0 0.0
    %3766 = vmatprep.subr.mxu0 0.0
    %3767 = vmatpush2.msra.mxu0 0.0
    %3768 = vmatprep.subr.mxu0 0.0
    %3769 = vmatpush2.msra.mxu0 0.0
    %3770 = vmatprep.subr.mxu0 0.0
    %3771 = vmatpush2.msra.mxu0 0.0
    %3772 = vmatprep.subr.mxu0 0.0
    %3773 = vmatpush2.msra.mxu0 0.0
    %3774 = vmatprep.subr.mxu0 0.0
    %3775 = vmatpush2.msra.mxu0 0.0
    %3776 = vmatprep.subr.mxu0 0.0
    %3777 = vmatpush2.msra.mxu0 0.0
    %3778 = vmatprep.subr.mxu0 0.0
    %3779 = vmatpush2.msra.mxu0 0.0
    %3780 = vmatprep.subr.mxu0 0.0
    %3781 = vmatpush2.msra.mxu0 0.0
    %3782 = vmatprep.subr.mxu0 0.0
    %3783 = vmatpush2.msra.mxu0 0.0
    %3784 = vmatprep.subr.mxu0 0.0
    %3785 = vmatpush2.msra.mxu0 0.0
    %3786 = vmatprep.subr.mxu0 0.0
    %3787 = vmatpush2.msra.mxu0 0.0
    %3788 = vmatprep.mubr.f32.mxu0 0.0
    %3789 = vmatmul.mubr.f32.gmra.mxu0 %v3680
    %v3790 = vpop.f32.mrf.mxu0
    %v3791 = vadd.f32 0.0, %v3790
    %v3792 = vpop.f32.mrf.mxu0
    %3793 = vmatprep.mubr.f32.mxu0 0.0
    %3794 = vmatmul.mubr.f32.gmra.mxu0 %v3683
    %v3795 = vpop.f32.mrf.mxu0
    %v3796 = vadd.f32 0.0, %v3795
    %v3797 = vpop.f32.mrf.mxu0
    %3798 = vmatprep.mubr.f32.mxu0 0.0
    %3799 = vmatmul.mubr.f32.gmra.mxu0 %v3686
    %v3800 = vpop.f32.mrf.mxu0
    %v3801 = vadd.f32 0.0, %v3800
    %v3802 = vpop.f32.mrf.mxu0
    %3803 = vmatprep.mubr.f32.mxu0 0.0
    %3804 = vmatmul.mubr.f32.gmra.mxu0 %v3689
    %v3805 = vpop.f32.mrf.mxu0
    %v3806 = vadd.f32 0.0, %v3805
    %v3807 = vpop.f32.mrf.mxu0
    %3808 = vmatprep.mubr.f32.mxu0 0.0
    %3809 = vmatmul.mubr.f32.gmra.mxu0 %v3692
    %v3810 = vpop.f32.mrf.mxu0
    %v3811 = vadd.f32 0.0, %v3810
    %v3812 = vpop.f32.mrf.mxu0
    %3813 = vmatprep.mubr.f32.mxu0 0.0
    %3814 = vmatmul.mubr.f32.gmra.mxu0 %v3695
    %v3815 = vpop.f32.mrf.mxu0
    %v3816 = vadd.f32 0.0, %v3815
    %v3817 = vpop.f32.mrf.mxu0
    %3818 = vmatprep.mubr.f32.mxu0 0.0
    %3819 = vmatmul.mubr.f32.gmra.mxu0 %v3698
    %v3820 = vpop.f32.mrf.mxu0
    %v3821 = vadd.f32 0.0, %v3820
    %v3822 = vpop.f32.mrf.mxu0
    %3823 = vmatprep.mubr.f32.mxu0 0.0
    %3824 = vmatmul.mubr.f32.gmra.mxu0 %v3701
    %v3825 = vpop.f32.mrf.mxu0
    %v3826 = vadd.f32 0.0, %v3825
    %v3827 = vpop.f32.mrf.mxu0
    %3828 = vmatprep.mubr.f32.mxu0 0.0
    %3829 = vmatmul.mubr.f32.gmra.mxu0 %v3704
    %v3830 = vpop.f32.mrf.mxu0
    %v3831 = vadd.f32 0.0, %v3830
    %v3832 = vpop.f32.mrf.mxu0
    %3833 = vmatprep.mubr.f32.mxu0 0.0
    %3834 = vmatmul.mubr.f32.gmra.mxu0 %v3707
    %v3835 = vpop.f32.mrf.mxu0
    %v3836 = vadd.f32 0.0, %v3835
    %v3837 = vpop.f32.mrf.mxu0
    %3838 = vmatprep.mubr.f32.mxu0 0.0
    %3839 = vmatmul.mubr.f32.gmra.mxu0 %v3710
    %v3840 = vpop.f32.mrf.mxu0
    %v3841 = vadd.f32 0.0, %v3840
    %v3842 = vpop.f32.mrf.mxu0
    %3843 = vmatprep.mubr.f32.mxu0 0.0
    %3844 = vmatmul.mubr.f32.gmra.mxu0 %v3713
    %v3845 = vpop.f32.mrf.mxu0
    %v3846 = vadd.f32 0.0, %v3845
    %v3847 = vpop.f32.mrf.mxu0
    %3848 = vmatprep.mubr.f32.mxu0 0.0
    %3849 = vmatmul.mubr.f32.gmra.mxu0 %v3716
    %v3850 = vpop.f32.mrf.mxu0
    %v3851 = vadd.f32 0.0, %v3850
    %v3852 = vpop.f32.mrf.mxu0
    %3853 = vmatprep.mubr.f32.mxu0 0.0
    %3854 = vmatmul.mubr.f32.gmra.mxu0 %v3719
    %v3855 = vpop.f32.mrf.mxu0
    %v3856 = vadd.f32 0.0, %v3855
    %v3857 = vpop.f32.mrf.mxu0
    %3858 = vmatprep.mubr.f32.mxu0 0.0
    %3859 = vmatmul.mubr.f32.gmra.mxu0 %v3722
    %v3860 = vpop.f32.mrf.mxu0
    %v3861 = vadd.f32 0.0, %v3860
    %v3862 = vpop.f32.mrf.mxu0
    %3863 = vdwg.mxu0
    %v3864 = vadd.f32 %v3635, %v3791
    %v3865 = vadd.f32 %v3636, %v3796
    %v3866 = vadd.f32 %v3637, %v3801
    %v3867 = vadd.f32 %v3638, %v3806
    %v3868 = vadd.f32 %v3639, %v3811
    %v3869 = vadd.f32 %v3640, %v3816
    %v3870 = vadd.f32 %v3641, %v3821
    %v3871 = vadd.f32 %v3642, %v3826
    %v3872 = vadd.f32 %v3643, %v3831
    %v3873 = vadd.f32 %v3644, %v3836
    %v3874 = vadd.f32 %v3645, %v3841
    %v3875 = vadd.f32 %v3646, %v3846
    %v3876 = vadd.f32 %v3647, %v3851
    %v3877 = vadd.f32 %v3648, %v3856
    %v3878 = vadd.f32 %v3649, %v3861
    %v3879 = vld [vmem:[%s6] sm:$0xff]
    %v3880 = vld [vmem:[%s6 + $0x8] sm:$0xff]
    %v3881 = vld [vmem:[%s6 + $0x10] sm:$0xff]
    %v3882 = vld [vmem:[%s6 + $0x18] sm:$0xff]
    %v3883 = vld [vmem:[%s6 + $0x20] sm:$0xff]
    %v3884 = vld [vmem:[%s6 + $0x28] sm:$0xff]
    %v3885 = vld [vmem:[%s6 + $0x30] sm:$0xff]
    %v3886 = vld [vmem:[%s6 + $0x38] sm:$0xff]
    %v3887 = vld [vmem:[%s6 + $0x40] sm:$0xff]
    %v3888 = vld [vmem:[%s6 + $0x48] sm:$0xff]
    %v3889 = vld [vmem:[%s6 + $0x50] sm:$0xff]
    %v3890 = vld [vmem:[%s6 + $0x58] sm:$0xff]
    %v3891 = vld [vmem:[%s6 + $0x60] sm:$0xff]
    %v3892 = vld [vmem:[%s6 + $0x68] sm:$0xff]
    %v3893 = vld [vmem:[%s6 + $0x70] sm:$0xff]
    %3895 = vset.pattern.permute.xlu0 0
    %3896 = vperm.xlu0 %3895, %v3879
    %v3897 = vpop.permute.xlu0 %3896
    %3900 = vset.pattern.permute.xlu0 0
    %3901 = vperm.xlu0 %3900, %v3880
    %v3902 = vpop.permute.xlu0 %3901
    %3905 = vset.pattern.permute.xlu0 0
    %3906 = vperm.xlu0 %3905, %v3881
    %v3907 = vpop.permute.xlu0 %3906
    %3910 = vset.pattern.permute.xlu0 0
    %3911 = vperm.xlu0 %3910, %v3882
    %v3912 = vpop.permute.xlu0 %3911
    %3915 = vset.pattern.permute.xlu0 0
    %3916 = vperm.xlu0 %3915, %v3883
    %v3917 = vpop.permute.xlu0 %3916
    %3920 = vset.pattern.permute.xlu0 0
    %3921 = vperm.xlu0 %3920, %v3884
    %v3922 = vpop.permute.xlu0 %3921
    %3925 = vset.pattern.permute.xlu0 0
    %3926 = vperm.xlu0 %3925, %v3885
    %v3927 = vpop.permute.xlu0 %3926
    %3930 = vset.pattern.permute.xlu0 0
    %3931 = vperm.xlu0 %3930, %v3886
    %v3932 = vpop.permute.xlu0 %3931
    %3935 = vset.pattern.permute.xlu0 0
    %3936 = vperm.xlu0 %3935, %v3887
    %v3937 = vpop.permute.xlu0 %3936
    %3940 = vset.pattern.permute.xlu0 0
    %3941 = vperm.xlu0 %3940, %v3888
    %v3942 = vpop.permute.xlu0 %3941
    %3945 = vset.pattern.permute.xlu0 0
    %3946 = vperm.xlu0 %3945, %v3889
    %v3947 = vpop.permute.xlu0 %3946
    %3950 = vset.pattern.permute.xlu0 0
    %3951 = vperm.xlu0 %3950, %v3890
    %v3952 = vpop.permute.xlu0 %3951
    %3955 = vset.pattern.permute.xlu0 0
    %3956 = vperm.xlu0 %3955, %v3891
    %v3957 = vpop.permute.xlu0 %3956
    %3960 = vset.pattern.permute.xlu0 0
    %3961 = vperm.xlu0 %3960, %v3892
    %v3962 = vpop.permute.xlu0 %3961
    %3965 = vset.pattern.permute.xlu0 0
    %3966 = vperm.xlu0 %3965, %v3893
    %v3967 = vpop.permute.xlu0 %3966
    %v3969 = vadd.f32 %v3864, %v3897
    %v3970 = vadd.f32 %v3865, %v3902
    %v3971 = vadd.f32 %v3866, %v3907
    %v3972 = vadd.f32 %v3867, %v3912
    %v3973 = vadd.f32 %v3868, %v3917
    %v3974 = vadd.f32 %v3869, %v3922
    %v3975 = vadd.f32 %v3870, %v3927
    %v3976 = vadd.f32 %v3871, %v3932
    %v3977 = vadd.f32 %v3872, %v3937
    %v3978 = vadd.f32 %v3873, %v3942
    %v3979 = vadd.f32 %v3874, %v3947
    %v3980 = vadd.f32 %v3875, %v3952
    %v3981 = vadd.f32 %v3876, %v3957
    %v3982 = vadd.f32 %v3877, %v3962
    %v3983 = vadd.f32 %v3878, %v3967
    %v3984 = vmax.f32 %v3969, 0.0
    %v3985 = vmax.f32 %v3970, 0.0
    %v3986 = vmax.f32 %v3971, 0.0
    %v3987 = vmax.f32 %v3972, 0.0
    %v3988 = vmax.f32 %v3973, 0.0
    %v3989 = vmax.f32 %v3974, 0.0
    %v3990 = vmax.f32 %v3975, 0.0
    %v3991 = vmax.f32 %v3976, 0.0
    %v3992 = vmax.f32 %v3977, 0.0
    %v3993 = vmax.f32 %v3978, 0.0
    %v3994 = vmax.f32 %v3979, 0.0
    %v3995 = vmax.f32 %v3980, 0.0
    %v3996 = vmax.f32 %v3981, 0.0
    %v3997 = vmax.f32 %v3982, 0.0
    %v3998 = vmax.f32 %v3983, 0.0
    %v3999 = vld [vmem:[%s7] sm:$0xff]
    %v4000 = vld [vmem:[%s7 + $0x8] sm:$0xff]
    %v4001 = vld [vmem:[%s7 + $0x10] sm:$0xff]
    %v4002 = vld [vmem:[%s7 + $0x18] sm:$0xff]
    %v4003 = vld [vmem:[%s7 + $0x20] sm:$0xff]
    %v4004 = vld [vmem:[%s7 + $0x28] sm:$0xff]
    %v4005 = vld [vmem:[%s7 + $0x30] sm:$0xff]
    %v4006 = vld [vmem:[%s7 + $0x38] sm:$0xff]
    %v4007 = vld [vmem:[%s7 + $0x40] sm:$0xff]
    %v4008 = vld [vmem:[%s7 + $0x48] sm:$0xff]
    %v4009 = vld [vmem:[%s7 + $0x50] sm:$0xf]
    %v4010 = vld [vmem:[%s8] sm:$0xff]
    %v4011 = vld [vmem:[%s8 + $0x8] sm:$0xff]
    %v4012 = vld [vmem:[%s8 + $0x10] sm:$0xff]
    %v4013 = vld [vmem:[%s8 + $0x18] sm:$0xff]
    %v4014 = vld [vmem:[%s8 + $0x20] sm:$0xff]
    %v4015 = vld [vmem:[%s8 + $0x28] sm:$0xff]
    %v4016 = vld [vmem:[%s8 + $0x30] sm:$0xff]
    %v4017 = vld [vmem:[%s8 + $0x38] sm:$0xff]
    %v4018 = vld [vmem:[%s8 + $0x40] sm:$0xff]
    %v4019 = vld [vmem:[%s8 + $0x48] sm:$0xff]
    %v4020 = vld [vmem:[%s8 + $0x50] sm:$0xf]
    %4022 = vset.pattern.permute.xlu0 0
    %4023 = vperm.xlu0 %4022, %v4010
    %v4024 = vpop.permute.xlu0 %4023
    %4027 = vset.pattern.permute.xlu0 0
    %4028 = vperm.xlu0 %4027, %v4011
    %v4029 = vpop.permute.xlu0 %4028
    %4032 = vset.pattern.permute.xlu0 0
    %4033 = vperm.xlu0 %4032, %v4012
    %v4034 = vpop.permute.xlu0 %4033
    %4037 = vset.pattern.permute.xlu0 0
    %4038 = vperm.xlu0 %4037, %v4013
    %v4039 = vpop.permute.xlu0 %4038
    %4042 = vset.pattern.permute.xlu0 0
    %4043 = vperm.xlu0 %4042, %v4014
    %v4044 = vpop.permute.xlu0 %4043
    %4047 = vset.pattern.permute.xlu0 0
    %4048 = vperm.xlu0 %4047, %v4015
    %v4049 = vpop.permute.xlu0 %4048
    %4052 = vset.pattern.permute.xlu0 0
    %4053 = vperm.xlu0 %4052, %v4016
    %v4054 = vpop.permute.xlu0 %4053
    %4057 = vset.pattern.permute.xlu0 0
    %4058 = vperm.xlu0 %4057, %v4017
    %v4059 = vpop.permute.xlu0 %4058
    %4062 = vset.pattern.permute.xlu0 0
    %4063 = vperm.xlu0 %4062, %v4018
    %v4064 = vpop.permute.xlu0 %4063
    %4067 = vset.pattern.permute.xlu0 0
    %4068 = vperm.xlu0 %4067, %v4019
    %v4069 = vpop.permute.xlu0 %4068
    %4072 = vset.pattern.permute.xlu0 0
    %4073 = vperm.xlu0 %4072, %v4020
    %v4074 = vpop.permute.xlu0 %4073
    %vm4076 = vcmask 982016
    %v4078 = vsel %vm4076, %v3999, 0
    %v4081 = vsel %vm4076, %v4000, 0
    %v4084 = vsel %vm4076, %v4001, 0
    %v4087 = vsel %vm4076, %v4002, 0
    %v4090 = vsel %vm4076, %v4003, 0
    %v4093 = vsel %vm4076, %v4004, 0
    %v4096 = vsel %vm4076, %v4005, 0
    %v4099 = vsel %vm4076, %v4006, 0
    %v4102 = vsel %vm4076, %v4007, 0
    %v4105 = vsel %vm4076, %v4008, 0
    %v4108 = vsel %vm4076, %v4009, 0
    %4110 = vmatprep.subr.mxu0 0.0
    %4111 = vmatpush1.msra.mxu0 0.0
    %4112 = vmatprep.subr.mxu0 0.0
    %4113 = vmatpush1.msra.mxu0 %v3998
    %4114 = vmatprep.subr.mxu0 0.0
    %4115 = vmatpush1.msra.mxu0 %v3997
    %4116 = vmatprep.subr.mxu0 0.0
    %4117 = vmatpush1.msra.mxu0 %v3996
    %4118 = vmatprep.subr.mxu0 0.0
    %4119 = vmatpush1.msra.mxu0 %v3995
    %4120 = vmatprep.subr.mxu0 0.0
    %4121 = vmatpush1.msra.mxu0 %v3994
    %4122 = vmatprep.subr.mxu0 0.0
    %4123 = vmatpush1.msra.mxu0 %v3993
    %4124 = vmatprep.subr.mxu0 0.0
    %4125 = vmatpush1.msra.mxu0 %v3992
    %4126 = vmatprep.subr.mxu0 0.0
    %4127 = vmatpush1.msra.mxu0 %v3991
    %4128 = vmatprep.subr.mxu0 0.0
    %4129 = vmatpush1.msra.mxu0 %v3990
    %4130 = vmatprep.subr.mxu0 0.0
    %4131 = vmatpush1.msra.mxu0 %v3989
    %4132 = vmatprep.subr.mxu0 0.0
    %4133 = vmatpush1.msra.mxu0 %v3988
    %4134 = vmatprep.subr.mxu0 0.0
    %4135 = vmatpush1.msra.mxu0 %v3987
    %4136 = vmatprep.subr.mxu0 0.0
    %4137 = vmatpush1.msra.mxu0 %v3986
    %4138 = vmatprep.subr.mxu0 0.0
    %4139 = vmatpush1.msra.mxu0 %v3985
    %4140 = vmatprep.subr.mxu0 0.0
    %4141 = vmatpush1.msra.mxu0 %v3984
    %4142 = vmatprep.subr.mxu0 0.0
    %4143 = vmatpush2.msra.mxu0 0.0
    %4144 = vmatprep.subr.mxu0 0.0
    %4145 = vmatpush2.msra.mxu0 0.0
    %4146 = vmatprep.subr.mxu0 0.0
    %4147 = vmatpush2.msra.mxu0 0.0
    %4148 = vmatprep.subr.mxu0 0.0
    %4149 = vmatpush2.msra.mxu0 0.0
    %4150 = vmatprep.subr.mxu0 0.0
    %4151 = vmatpush2.msra.mxu0 0.0
    %4152 = vmatprep.subr.mxu0 0.0
    %4153 = vmatpush2.msra.mxu0 0.0
    %4154 = vmatprep.subr.mxu0 0.0
    %4155 = vmatpush2.msra.mxu0 0.0
    %4156 = vmatprep.subr.mxu0 0.0
    %4157 = vmatpush2.msra.mxu0 0.0
    %4158 = vmatprep.subr.mxu0 0.0
    %4159 = vmatpush2.msra.mxu0 0.0
    %4160 = vmatprep.subr.mxu0 0.0
    %4161 = vmatpush2.msra.mxu0 0.0
    %4162 = vmatprep.subr.mxu0 0.0
    %4163 = vmatpush2.msra.mxu0 0.0
    %4164 = vmatprep.subr.mxu0 0.0
    %4165 = vmatpush2.msra.mxu0 0.0
    %4166 = vmatprep.subr.mxu0 0.0
    %4167 = vmatpush2.msra.mxu0 0.0
    %4168 = vmatprep.subr.mxu0 0.0
    %4169 = vmatpush2.msra.mxu0 0.0
    %4170 = vmatprep.subr.mxu0 0.0
    %4171 = vmatpush2.msra.mxu0 0.0
    %4172 = vmatprep.subr.mxu0 0.0
    %4173 = vmatpush2.msra.mxu0 0.0
    %4174 = vmatprep.mubr.f32.mxu0 0.0
    %4175 = vmatmul.mubr.f32.gmra.mxu0 %v4078
    %v4176 = vpop.f32.mrf.mxu0
    %v4177 = vadd.f32 %v4024, %v4176
    %v4178 = vpop.f32.mrf.mxu0
    %4179 = vmatprep.mubr.f32.mxu0 0.0
    %4180 = vmatmul.mubr.f32.gmra.mxu0 %v4081
    %v4181 = vpop.f32.mrf.mxu0
    %v4182 = vadd.f32 %v4029, %v4181
    %v4183 = vpop.f32.mrf.mxu0
    %4184 = vmatprep.mubr.f32.mxu0 0.0
    %4185 = vmatmul.mubr.f32.gmra.mxu0 %v4084
    %v4186 = vpop.f32.mrf.mxu0
    %v4187 = vadd.f32 %v4034, %v4186
    %v4188 = vpop.f32.mrf.mxu0
    %4189 = vmatprep.mubr.f32.mxu0 0.0
    %4190 = vmatmul.mubr.f32.gmra.mxu0 %v4087
    %v4191 = vpop.f32.mrf.mxu0
    %v4192 = vadd.f32 %v4039, %v4191
    %v4193 = vpop.f32.mrf.mxu0
    %4194 = vmatprep.mubr.f32.mxu0 0.0
    %4195 = vmatmul.mubr.f32.gmra.mxu0 %v4090
    %v4196 = vpop.f32.mrf.mxu0
    %v4197 = vadd.f32 %v4044, %v4196
    %v4198 = vpop.f32.mrf.mxu0
    %4199 = vmatprep.mubr.f32.mxu0 0.0
    %4200 = vmatmul.mubr.f32.gmra.mxu0 %v4093
    %v4201 = vpop.f32.mrf.mxu0
    %v4202 = vadd.f32 %v4049, %v4201
    %v4203 = vpop.f32.mrf.mxu0
    %4204 = vmatprep.mubr.f32.mxu0 0.0
    %4205 = vmatmul.mubr.f32.gmra.mxu0 %v4096
    %v4206 = vpop.f32.mrf.mxu0
    %v4207 = vadd.f32 %v4054, %v4206
    %v4208 = vpop.f32.mrf.mxu0
    %4209 = vmatprep.mubr.f32.mxu0 0.0
    %4210 = vmatmul.mubr.f32.gmra.mxu0 %v4099
    %v4211 = vpop.f32.mrf.mxu0
    %v4212 = vadd.f32 %v4059, %v4211
    %v4213 = vpop.f32.mrf.mxu0
    %4214 = vmatprep.mubr.f32.mxu0 0.0
    %4215 = vmatmul.mubr.f32.gmra.mxu0 %v4102
    %v4216 = vpop.f32.mrf.mxu0
    %v4217 = vadd.f32 %v4064, %v4216
    %v4218 = vpop.f32.mrf.mxu0
    %4219 = vmatprep.mubr.f32.mxu0 0.0
    %4220 = vmatmul.mubr.f32.gmra.mxu0 %v4105
    %v4221 = vpop.f32.mrf.mxu0
    %v4222 = vadd.f32 %v4069, %v4221
    %v4223 = vpop.f32.mrf.mxu0
    %4224 = vmatprep.mubr.f32.mxu0 0.0
    %4225 = vmatmul.mubr.f32.gmra.mxu0 %v4108
    %v4226 = vpop.f32.mrf.mxu0
    %v4227 = vadd.f32 %v4074, %v4226
    %v4228 = vpop.f32.mrf.mxu0
    %4229 = vdwg.mxu0
    %v4230 = vmax.f32 %v4177, 0.0
    %v4231 = vmax.f32 %v4182, 0.0
    %v4232 = vmax.f32 %v4187, 0.0
    %v4233 = vmax.f32 %v4192, 0.0
    %v4234 = vmax.f32 %v4197, 0.0
    %v4235 = vmax.f32 %v4202, 0.0
    %v4236 = vmax.f32 %v4207, 0.0
    %v4237 = vmax.f32 %v4212, 0.0
    %v4238 = vmax.f32 %v4217, 0.0
    %v4239 = vmax.f32 %v4222, 0.0
    %v4240 = vmax.f32 %v4227, 0.0
    %v4241 = vld [vmem:[%s9] sm:$0xff]
    %v4242 = vld [vmem:[%s9 + $0x8] sm:$0x3]
    %v4243 = vld [vmem:[%s10] sm:$0xff]
    %v4244 = vld [vmem:[%s10 + $0x8] sm:$0x3]
    %4246 = vset.pattern.permute.xlu0 0
    %4247 = vperm.xlu0 %4246, %v4243
    %v4248 = vpop.permute.xlu0 %4247
    %4251 = vset.pattern.permute.xlu0 0
    %4252 = vperm.xlu0 %4251, %v4244
    %v4253 = vpop.permute.xlu0 %4252
    %vm4255 = vcmask 687104
    %v4257 = vsel %vm4255, %v4241, 0
    %v4260 = vsel %vm4255, %v4242, 0
    %vm4262 = vcmask 1043456
    %v4264 = vsel %vm4262, %v4240, 0
    %4266 = vmatprep.subr.mxu0 0.0
    %4267 = vmatpush1.msra.mxu0 0.0
    %4268 = vmatprep.subr.mxu0 0.0
    %4269 = vmatpush1.msra.mxu0 0.0
    %4270 = vmatprep.subr.mxu0 0.0
    %4271 = vmatpush1.msra.mxu0 0.0
    %4272 = vmatprep.subr.mxu0 0.0
    %4273 = vmatpush1.msra.mxu0 0.0
    %4274 = vmatprep.subr.mxu0 0.0
    %4275 = vmatpush1.msra.mxu0 0.0
    %4276 = vmatprep.subr.mxu0 0.0
    %4277 = vmatpush1.msra.mxu0 %v4264
    %4278 = vmatprep.subr.mxu0 0.0
    %4279 = vmatpush1.msra.mxu0 %v4239
    %4280 = vmatprep.subr.mxu0 0.0
    %4281 = vmatpush1.msra.mxu0 %v4238
    %4282 = vmatprep.subr.mxu0 0.0
    %4283 = vmatpush1.msra.mxu0 %v4237
    %4284 = vmatprep.subr.mxu0 0.0
    %4285 = vmatpush1.msra.mxu0 %v4236
    %4286 = vmatprep.subr.mxu0 0.0
    %4287 = vmatpush1.msra.mxu0 %v4235
    %4288 = vmatprep.subr.mxu0 0.0
    %4289 = vmatpush1.msra.mxu0 %v4234
    %4290 = vmatprep.subr.mxu0 0.0
    %4291 = vmatpush1.msra.mxu0 %v4233
    %4292 = vmatprep.subr.mxu0 0.0
    %4293 = vmatpush1.msra.mxu0 %v4232
    %4294 = vmatprep.subr.mxu0 0.0
    %4295 = vmatpush1.msra.mxu0 %v4231
    %4296 = vmatprep.subr.mxu0 0.0
    %4297 = vmatpush1.msra.mxu0 %v4230
    %4298 = vmatprep.subr.mxu0 0.0
    %4299 = vmatpush2.msra.mxu0 0.0
    %4300 = vmatprep.subr.mxu0 0.0
    %4301 = vmatpush2.msra.mxu0 0.0
    %4302 = vmatprep.subr.mxu0 0.0
    %4303 = vmatpush2.msra.mxu0 0.0
    %4304 = vmatprep.subr.mxu0 0.0
    %4305 = vmatpush2.msra.mxu0 0.0
    %4306 = vmatprep.subr.mxu0 0.0
    %4307 = vmatpush2.msra.mxu0 0.0
    %4308 = vmatprep.subr.mxu0 0.0
    %4309 = vmatpush2.msra.mxu0 0.0
    %4310 = vmatprep.subr.mxu0 0.0
    %4311 = vmatpush2.msra.mxu0 0.0
    %4312 = vmatprep.subr.mxu0 0.0
    %4313 = vmatpush2.msra.mxu0 0.0
    %4314 = vmatprep.subr.mxu0 0.0
    %4315 = vmatpush2.msra.mxu0 0.0
    %4316 = vmatprep.subr.mxu0 0.0
    %4317 = vmatpush2.msra.mxu0 0.0
    %4318 = vmatprep.subr.mxu0 0.0
    %4319 = vmatpush2.msra.mxu0 0.0
    %4320 = vmatprep.subr.mxu0 0.0
    %4321 = vmatpush2.msra.mxu0 0.0
    %4322 = vmatprep.subr.mxu0 0.0
    %4323 = vmatpush2.msra.mxu0 0.0
    %4324 = vmatprep.subr.mxu0 0.0
    %4325 = vmatpush2.msra.mxu0 0.0
    %4326 = vmatprep.subr.mxu0 0.0
    %4327 = vmatpush2.msra.mxu0 0.0
    %4328 = vmatprep.subr.mxu0 0.0
    %4329 = vmatpush2.msra.mxu0 0.0
    %4330 = vmatprep.mubr.f32.mxu0 0.0
    %4331 = vmatmul.mubr.f32.gmra.mxu0 %v4257
    %v4332 = vpop.f32.mrf.mxu0
    %v4333 = vadd.f32 %v4248, %v4332
    %v4334 = vpop.f32.mrf.mxu0
    %4335 = vmatprep.mubr.f32.mxu0 0.0
    %4336 = vmatmul.mubr.f32.gmra.mxu0 %v4260
    %v4337 = vpop.f32.mrf.mxu0
    %v4338 = vadd.f32 %v4253, %v4337
    %v4339 = vpop.f32.mrf.mxu0
    %4340 = vdwg.mxu0
    %4341 = vst [vmem:[%s11] sm:$0xff] %v4333
    %4342 = vst [vmem:[%s11 + $0x8] sm:$0x3] %v4338
    // Predicated region
    $region90: #{image_classification_forward.1} parent=1 // pred_check
      _
    $region91: #{image_classification_forward.1} parent=1 // pred_check_branch
      %4344 = sbr.rel (0) target = $region93
    $region92: #{image_classification_forward.1} parent=1 // pred_region
      _
    $region93: #{image_classification_forward.1} parent=1 // pred_fallthru
      _
    // Predicated region
    $region94: #{image_classification_forward.1} parent=1 // pred_check
      _
    $region95: #{image_classification_forward.1} parent=1 // pred_check_branch
      %4346 = sbr.rel (0) target = $region97
    $region96: #{image_classification_forward.1} parent=1 // pred_region
      _
    $region97: #{image_classification_forward.1} parent=1 // pred_fallthru
      _
    %4347 = vsyncpa [#allocation7], 1
    %4348 = vsyncpa [#allocation9], 1
    %4349 = vsyncpa [#allocation12], 1

</llo_original>
